<compile_context>
chip_gen: v7x
topology: tpu7x:2x2x1
jax: 0.10.0
libtpu: 0.0.40
codegen_flags: <defaults>
</compile_context>

<pallas_src>
import functools

import jax
import jax.numpy as jnp
import numpy as np
from jax.experimental import pallas as pl
from jax.experimental.pallas import tpu as pltpu


# ------------------------------ small helpers ------------------------------

def _round_up(x, m):
    return ((x + m - 1) // m) * m


def _choose_row_tile(m, cap=512):
    """Row tile for the M-gridded matmul: multiple of 8, <= cap, <= array."""
    if m >= cap:
        return cap
    if m >= 8:
        return (m // 8) * 8
    return m


# ----------------------------- Pallas kernels ------------------------------

def _matmul_bias_relu_kernel(a_ref, w_ref, b_ref, o_ref):
    # a: (TM, K), w: (K, F), b: (1, F) -> o: (TM, F)
    acc = jnp.dot(a_ref[...], w_ref[...], preferred_element_type=jnp.float32)
    o_ref[...] = jnp.maximum(acc + b_ref[...], 0.0)


def matmul_bias_relu(a, w, b):
    """Row-tiled (im2col) matmul + bias + ReLU.  a:(M,K) w:(K,F) b:(1,F)."""
    M, K = a.shape
    _, F = w.shape
    tm = _choose_row_tile(M)
    grid = (pl.cdiv(M, tm),)
    return pl.pallas_call(
        _matmul_bias_relu_kernel,
        out_shape=jax.ShapeDtypeStruct((M, F), jnp.float32),
        grid=grid,
        in_specs=[
            pl.BlockSpec((tm, K), lambda i: (i, 0)),
            pl.BlockSpec((K, F), lambda i: (0, 0)),
            pl.BlockSpec((1, F), lambda i: (0, 0)),
        ],
        out_specs=pl.BlockSpec((tm, F), lambda i: (i, 0)),
        compiler_params=pltpu.CompilerParams(
            dimension_semantics=("parallel",),
            vmem_limit_bytes=32 * 1024 * 1024,
        ),
        cost_estimate=pl.CostEstimate(
            flops=2 * M * K * F,
            transcendentals=0,
            bytes_accessed=4 * (M * K + K * F + M * F),
        ),
    )(a, w, b)


def _conv3x3_s1_relu_wide_kernel(x_ref, w_ref, b_ref, o_ref, *,
                                 width, out_rows, pad_rows):
    # x_ref: (1, H*W, C) flattened NHWC image (VMEM resident)
    # w_ref: (9, C, F)   taps in (ki, kj) row-major order
    # b_ref: (1, F)
    # o_ref: (1, out_rows + pad_rows, F)   "wide" layout: row p = oh*W + ow
    nf = w_ref.shape[2]
    acc = jnp.zeros((out_rows, nf), jnp.float32)
    for ki in range(3):
        for kj in range(3):
            s = ki * width + kj
            lhs = x_ref[0, pl.ds(s, out_rows), :]           # (out_rows, C)
            acc = acc + jnp.dot(lhs, w_ref[ki * 3 + kj],
                                preferred_element_type=jnp.float32)
    result = jnp.maximum(acc + b_ref[...], 0.0)
    if pad_rows:
        o_ref[0] = jnp.zeros((out_rows + pad_rows, nf), jnp.float32)
    o_ref[0, pl.ds(0, out_rows), :] = result


def conv3x3_s1_relu_wide(x_flat, width, w_oihw, b, pad_rows=0):
    """Fused stride-1 3x3 conv + ReLU, no HBM im2col.

    x_flat: (N, H*W, C) flattened NHWC activation.
    Returns (N, L + pad_rows, F) with L = (OH-1)*W + OW; valid outputs live at
    rows p = oh*W + ow (ow < OW); other rows are harmless junk (or zeros in the
    pad region) and are matched by zero FC-weight rows downstream.
    """
    n, hw, c = x_flat.shape
    f = w_oihw.shape[0]
    height = hw // width
    oh, ow = height - 2, width - 2
    out_rows = (oh - 1) * width + ow
    w9 = jnp.transpose(w_oihw, (2, 3, 1, 0)).reshape(9, c, f)
    b2 = b.reshape(1, f)
    kern = functools.partial(_conv3x3_s1_relu_wide_kernel,
                             width=width, out_rows=out_rows, pad_rows=pad_rows)
    return pl.pallas_call(
        kern,
        out_shape=jax.ShapeDtypeStruct((n, out_rows + pad_rows, f), jnp.float32),
        grid=(n,),
        in_specs=[
            pl.BlockSpec((1, hw, c), lambda i: (i, 0, 0)),
            pl.BlockSpec((9, c, f), lambda i: (0, 0, 0)),
            pl.BlockSpec((1, f), lambda i: (0, 0)),
        ],
        out_specs=pl.BlockSpec((1, out_rows + pad_rows, f), lambda i: (i, 0, 0)),
        compiler_params=pltpu.CompilerParams(
            dimension_semantics=("parallel",),
            vmem_limit_bytes=32 * 1024 * 1024,
        ),
        cost_estimate=pl.CostEstimate(
            flops=2 * n * out_rows * 9 * c * f,
            transcendentals=0,
            bytes_accessed=4 * (n * hw * c + n * (out_rows + pad_rows) * f + 9 * c * f),
        ),
    )(x_flat, w9, b2)


def _fc_ln_kernel(h_ref, w_ref, b_ref, g_ref, beta_ref, o_ref, acc_ref, *,
                  apply_tanh):
    # K-tiled FC with f32 accumulator; LN (+tanh) epilogue on the last K block.
    kb = pl.program_id(0)

    @pl.when(kb == 0)
    def _():
        acc_ref[...] = jnp.zeros_like(acc_ref)

    acc_ref[...] += jnp.dot(h_ref[...], w_ref[...],
                            preferred_element_type=jnp.float32)

    @pl.when(kb == pl.num_programs(0) - 1)
    def _():
        y = acc_ref[...] + b_ref[...]
        mean = jnp.mean(y, axis=-1, keepdims=True)
        var = jnp.mean((y - mean) ** 2, axis=-1, keepdims=True)     # biased (torch LN)
        out = (y - mean) * jax.lax.rsqrt(var + 1e-5) * g_ref[...] + beta_ref[...]
        if apply_tanh:
            out = jnp.tanh(out)
        o_ref[...] = out


def fc_ln(h, w, b, gamma, beta, tk, apply_tanh):
    """h: (N, K_pad) (zero-padded), w: (K_pad, F) (zero-padded rows)."""
    n, k_pad = h.shape
    _, f = w.shape
    assert k_pad % tk == 0 and w.shape[0] == k_pad
    grid = (k_pad // tk,)
    kern = functools.partial(_fc_ln_kernel, apply_tanh=apply_tanh)
    return pl.pallas_call(
        kern,
        out_shape=jax.ShapeDtypeStruct((n, f), jnp.float32),
        grid=grid,
        in_specs=[
            pl.BlockSpec((n, tk), lambda kb: (0, kb)),
            pl.BlockSpec((tk, f), lambda kb: (kb, 0)),
            pl.BlockSpec((1, f), lambda kb: (0, 0)),
            pl.BlockSpec((1, f), lambda kb: (0, 0)),
            pl.BlockSpec((1, f), lambda kb: (0, 0)),
        ],
        out_specs=pl.BlockSpec((n, f), lambda kb: (0, 0)),
        scratch_shapes=[pltpu.VMEM((n, f), jnp.float32)],
        compiler_params=pltpu.CompilerParams(
            dimension_semantics=("arbitrary",),
            vmem_limit_bytes=32 * 1024 * 1024,
        ),
        cost_estimate=pl.CostEstimate(
            flops=2 * n * k_pad * f,
            transcendentals=n * f,
            bytes_accessed=4 * (n * k_pad + k_pad * f + n * f),
        ),
    )(h, w, b, gamma, beta)


# ------------------------------- glue (JAX) --------------------------------

def _im2col(x_nhwc, kh, kw, stride):
    """Extract conv patches.  Returns (N*OH*OW, kh*kw*C) and output dims."""
    N, H, W, C = x_nhwc.shape
    OH = (H - kh) // stride + 1
    OW = (W - kw) // stride + 1
    cols = []
    for i in range(kh):
        for j in range(kw):
            cols.append(
                x_nhwc[:, i:i + stride * (OH - 1) + 1:stride,
                          j:j + stride * (OW - 1) + 1:stride, :]
            )
    p = jnp.stack(cols, axis=3)                      # (N, OH, OW, kh*kw, C)
    return p.reshape(N * OH * OW, kh * kw * C), (N, OH, OW)


class PixelEncoderPallas:
    """Pallas port of PixelEncoder (single-stream conv stack)."""

    def __init__(self, obs_shape, feature_dim, num_layers=2, num_filters=32,
                 output_logits=False, key=jax.random.PRNGKey(42)):
        assert len(obs_shape) == 3
        C, H, W = obs_shape
        self.obs_shape = obs_shape
        self.feature_dim = feature_dim
        self.num_layers = num_layers
        self.num_filters = num_filters
        self.output_logits = output_logits

        # spatial output size: first conv stride 2, rest stride 1, kernel 3, no pad
        out_dim = (H - 3) // 2 + 1
        for _ in range(num_layers - 1):
            out_dim = out_dim - 2
        self.out_dim = out_dim
        flat_dim = num_filters * out_dim * out_dim

        keys = jax.random.split(key, 2 * num_layers + 2)
        self.conv_w, self.conv_b = [], []
        in_c = C
        for i in range(num_layers):
            kw_ = keys[2 * i]
            kb_ = keys[2 * i + 1]
            fan_in = in_c * 3 * 3
            bound = 1.0 / np.sqrt(fan_in)
            self.conv_w.append(jax.random.uniform(
                kw_, (num_filters, in_c, 3, 3), jnp.float32, -bound, bound))
            self.conv_b.append(jax.random.uniform(
                kb_, (num_filters,), jnp.float32, -bound, bound))
            in_c = num_filters

        bound = 1.0 / np.sqrt(flat_dim)
        # FC weight in PyTorch (C,H,W)-flatten row order, already transposed to
        # (flat_dim, feature_dim).  Kept for the pure-JAX reference path.
        self.fc_w_chw = jax.random.uniform(
            keys[-2], (flat_dim, feature_dim), jnp.float32, -bound, bound)
        self.fc_b = jax.random.uniform(
            keys[-1], (feature_dim,), jnp.float32, -bound, bound)
        self.ln_gamma = jnp.ones((feature_dim,), jnp.float32)
        self.ln_beta = jnp.zeros((feature_dim,), jnp.float32)

        # ---- layout of the last conv output seen by the Pallas path --------
        # num_layers >= 2: "wide" layout (row p = oh*Win + ow, channels minor).
        # num_layers == 1: plain NHWC flatten of the stride-2 conv output.
        win_last = out_dim + 2 if num_layers >= 2 else out_dim
        l_final = (out_dim - 1) * win_last + out_dim
        self.k_valid = l_final * num_filters
        self.tk_fc = min(2048, _round_up(self.k_valid, 512))
        self.k_pad = _round_up(self.k_valid, self.tk_fc)
        if num_layers >= 2 and self.k_pad % num_filters == 0:
            self.pad_rows = self.k_pad // num_filters - l_final   # kernel zero-pads
        else:
            self.pad_rows = 0                                      # wrapper pads

        # Fold the CHW-order flatten into the FC weight: one-time permutation
        # of rows into (spatial-wide, channel) order + zero rows for junk/pad
        # columns.  Deletes the runtime NHWC->NCHW transpose.
        dd = out_dim
        oh = np.arange(dd)[:, None, None]
        ow = np.arange(dd)[None, :, None]
        cc = np.arange(num_filters)[None, None, :]
        dst = ((oh * win_last + ow) * num_filters + cc).reshape(-1)
        src = (cc * (dd * dd) + oh * dd + ow).reshape(-1)
        self.fc_w = (jnp.zeros((self.k_pad, feature_dim), jnp.float32)
                     .at[dst].set(self.fc_w_chw[src]))

    # ------------------------------ forward --------------------------------

    def forward_conv(self, obs_nchw):
        obs = obs_nchw.astype(jnp.float32)
        scale = jnp.where(jnp.max(obs) > 1.0, 1.0 / 255.0, 1.0)
        x = jnp.transpose(obs, (0, 2, 3, 1))            # NCHW -> NHWC
        n = x.shape[0]
        nf = self.num_filters

        # Layer 1: stride-2 conv.  The /255 scale is folded into the (tiny)
        # weight matrix, so obs is never rescaled through HBM.
        a, (_, oh1, ow1) = _im2col(x, 3, 3, 2)
        f1, c1, kh, kw = self.conv_w[0].shape
        w_mat = (jnp.transpose(self.conv_w[0], (2, 3, 1, 0))
                 .reshape(kh * kw * c1, f1) * scale)
        y = matmul_bias_relu(a, w_mat, self.conv_b[0].reshape(1, f1))
        h_flat = y.reshape(n, oh1 * ow1, f1)            # (N, D*D, F), channels minor
        d = oh1

        # Layers 2..L: fused stride-1 3x3 convs on the VMEM-resident activation.
        for i in range(1, self.num_layers):
            last = (i == self.num_layers - 1)
            pad_rows = self.pad_rows if last else 0
            wide = conv3x3_s1_relu_wide(h_flat, d, self.conv_w[i],
                                        self.conv_b[i], pad_rows=pad_rows)
            od = d - 2
            if last:
                h_flat = wide                           # consumed directly by FC
            else:
                # tidy back to exact (N, OD*OD, F) for the next conv layer
                l = (od - 1) * d + od
                tmp = jnp.pad(wide, ((0, 0), (0, od * d - l), (0, 0)))
                tmp = tmp.reshape(n, od, d, nf)[:, :, :od, :]
                h_flat = tmp.reshape(n, od * od, nf)
            d = od

        return h_flat.reshape(n, -1)

    def forward(self, obs_nchw):
        h = self.forward_conv(obs_nchw)
        if h.shape[1] < self.k_pad:                     # only for non-default configs
            h = jnp.pad(h, ((0, 0), (0, self.k_pad - h.shape[1])))
        return fc_ln(
            h, self.fc_w,
            self.fc_b.reshape(1, -1),
            self.ln_gamma.reshape(1, -1),
            self.ln_beta.reshape(1, -1),
            tk=self.tk_fc,
            apply_tanh=not self.output_logits,
        )


# ---------------------------- pure-JAX reference ----------------------------

def _reference_forward(enc, obs_nchw):
    obs = obs_nchw.astype(jnp.float32)
    scale = jnp.where(jnp.max(obs) > 1.0, 1.0 / 255.0, 1.0)
    obs = obs * scale
    x = jnp.transpose(obs, (0, 2, 3, 1))
    strides = [2] + [1] * (enc.num_layers - 1)
    for i in range(enc.num_layers):
        a, (N, OH, OW) = _im2col(x, 3, 3, strides[i])
        Fc, Ci, KH, KW = enc.conv_w[i].shape
        w_mat = jnp.transpose(enc.conv_w[i], (2, 3, 1, 0)).reshape(KH * KW * Ci, Fc)
        y = jnp.dot(a, w_mat, precision=jax.lax.Precision.HIGHEST) + enc.conv_b[i]
        x = jnp.maximum(y, 0.0).reshape(N, OH, OW, Fc)
    h = jnp.transpose(x, (0, 3, 1, 2)).reshape(x.shape[0], -1)   # CHW flatten
    y = jnp.dot(h, enc.fc_w_chw, precision=jax.lax.Precision.HIGHEST) + enc.fc_b
    mean = jnp.mean(y, axis=-1, keepdims=True)
    var = jnp.mean((y - mean) ** 2, axis=-1, keepdims=True)
    y_hat = (y - mean) * jax.lax.rsqrt(var + 1e-5)
    out = y_hat * enc.ln_gamma + enc.ln_beta
    return out if enc.output_logits else jnp.tanh(out)


if __name__ == "__main__":
    key = jax.random.PRNGKey(0)
    batch, channels, spatial, feature_dim = 2, 4, 16, 32
    obs = jax.random.uniform(key, (batch, channels, spatial, spatial),
                             jnp.float32, 0.0, 255.0)   # exercises /255 branch

    enc = PixelEncoderPallas(obs_shape=(channels, spatial, spatial),
                             feature_dim=feature_dim)

    out = jax.jit(enc.forward)(obs)
    out = jax.block_until_ready(out)
    assert out.shape == (batch, feature_dim), out.shape

    ref = jax.block_until_ready(_reference_forward(enc, obs))
    np.testing.assert_allclose(np.asarray(out), np.asarray(ref),
                               rtol=1e-3, atol=1e-3)
    print("KERNEL_OK")
</pallas_src>

<mosaic_0001>
module attributes {stable_mosaic.version = 11 : i64} {
  func.func @_conv3x3_s1_relu_wide_kernel(%arg0: i32, %arg1: memref<1x49x32xf32, #tpu.memory_space<vmem>>, %arg2: memref<9x32x32xf32, #tpu.memory_space<vmem>>, %arg3: memref<1x32xf32, #tpu.memory_space<vmem>>, %arg4: memref<1x48x32xf32, #tpu.memory_space<vmem>>) attributes {dimension_semantics = [#tpu.dimension_semantics<parallel>], iteration_bounds = array<i64: 2>, scalar_prefetch = 0 : i64, scratch_operands = 0 : i64, tpu.core_type = #tpu.core_type<tc>, window_params = [{transform_indices = @transform_0, window_bounds = array<i64: 1, 49, 32>}, {pipeline_mode = #tpu.pipeline_mode<synchronous>, transform_indices = @transform_1, window_bounds = array<i64: 9, 32, 32>}, {pipeline_mode = #tpu.pipeline_mode<synchronous>, transform_indices = @transform_2, window_bounds = array<i64: 1, 32>}, {transform_indices = @transform_3, window_bounds = array<i64: 1, 48, 32>}]} {
    %cst = arith.constant 0.000000e+00 : f32
    %0 = vector.broadcast %cst : f32 to vector<33x32xf32>
    %c0 = arith.constant 0 : index
    %c0_0 = arith.constant 0 : index
    %c0_1 = arith.constant 0 : index
    %1 = vector.load %arg1[%c0, %c0_0, %c0_1] : memref<1x49x32xf32, #tpu.memory_space<vmem>>, vector<1x33x32xf32>
    %2 = vector.shape_cast %1 : vector<1x33x32xf32> to vector<33x32xf32>
    %c0_2 = arith.constant 0 : index
    %c0_3 = arith.constant 0 : index
    %c0_4 = arith.constant 0 : index
    %3 = vector.load %arg2[%c0_2, %c0_3, %c0_4] : memref<9x32x32xf32, #tpu.memory_space<vmem>>, vector<1x32x32xf32>
    %4 = vector.shape_cast %3 : vector<1x32x32xf32> to vector<32x32xf32>
    %cst_5 = arith.constant dense<0.000000e+00> : vector<33x32xf32>
    %5 = tpu.matmul %2, %4, %cst_5 {dimension_numbers = #tpu.dot_dimension_numbers<[1], [0], [0], [1], [0, 0, 1, 1], [], []>} : vector<33x32xf32>, vector<32x32xf32>, vector<33x32xf32> -> vector<33x32xf32>
    %6 = arith.addf %0, %5 : vector<33x32xf32>
    %c0_6 = arith.constant 0 : index
    %c1 = arith.constant 1 : index
    %c0_7 = arith.constant 0 : index
    %7 = vector.load %arg1[%c0_6, %c1, %c0_7] : memref<1x49x32xf32, #tpu.memory_space<vmem>>, vector<1x33x32xf32>
    %8 = vector.shape_cast %7 : vector<1x33x32xf32> to vector<33x32xf32>
    %c1_8 = arith.constant 1 : index
    %c0_9 = arith.constant 0 : index
    %c0_10 = arith.constant 0 : index
    %9 = vector.load %arg2[%c1_8, %c0_9, %c0_10] : memref<9x32x32xf32, #tpu.memory_space<vmem>>, vector<1x32x32xf32>
    %10 = vector.shape_cast %9 : vector<1x32x32xf32> to vector<32x32xf32>
    %cst_11 = arith.constant dense<0.000000e+00> : vector<33x32xf32>
    %11 = tpu.matmul %8, %10, %cst_11 {dimension_numbers = #tpu.dot_dimension_numbers<[1], [0], [0], [1], [0, 0, 1, 1], [], []>} : vector<33x32xf32>, vector<32x32xf32>, vector<33x32xf32> -> vector<33x32xf32>
    %12 = arith.addf %6, %11 : vector<33x32xf32>
    %c0_12 = arith.constant 0 : index
    %c2 = arith.constant 2 : index
    %c0_13 = arith.constant 0 : index
    %13 = vector.load %arg1[%c0_12, %c2, %c0_13] : memref<1x49x32xf32, #tpu.memory_space<vmem>>, vector<1x33x32xf32>
    %14 = vector.shape_cast %13 : vector<1x33x32xf32> to vector<33x32xf32>
    %c2_14 = arith.constant 2 : index
    %c0_15 = arith.constant 0 : index
    %c0_16 = arith.constant 0 : index
    %15 = vector.load %arg2[%c2_14, %c0_15, %c0_16] : memref<9x32x32xf32, #tpu.memory_space<vmem>>, vector<1x32x32xf32>
    %16 = vector.shape_cast %15 : vector<1x32x32xf32> to vector<32x32xf32>
    %cst_17 = arith.constant dense<0.000000e+00> : vector<33x32xf32>
    %17 = tpu.matmul %14, %16, %cst_17 {dimension_numbers = #tpu.dot_dimension_numbers<[1], [0], [0], [1], [0, 0, 1, 1], [], []>} : vector<33x32xf32>, vector<32x32xf32>, vector<33x32xf32> -> vector<33x32xf32>
    %18 = arith.addf %12, %17 : vector<33x32xf32>
    %c0_18 = arith.constant 0 : index
    %c7 = arith.constant 7 : index
    %c0_19 = arith.constant 0 : index
    %19 = vector.load %arg1[%c0_18, %c7, %c0_19] : memref<1x49x32xf32, #tpu.memory_space<vmem>>, vector<1x33x32xf32>
    %20 = vector.shape_cast %19 : vector<1x33x32xf32> to vector<33x32xf32>
    %c3 = arith.constant 3 : index
    %c0_20 = arith.constant 0 : index
    %c0_21 = arith.constant 0 : index
    %21 = vector.load %arg2[%c3, %c0_20, %c0_21] : memref<9x32x32xf32, #tpu.memory_space<vmem>>, vector<1x32x32xf32>
    %22 = vector.shape_cast %21 : vector<1x32x32xf32> to vector<32x32xf32>
    %cst_22 = arith.constant dense<0.000000e+00> : vector<33x32xf32>
    %23 = tpu.matmul %20, %22, %cst_22 {dimension_numbers = #tpu.dot_dimension_numbers<[1], [0], [0], [1], [0, 0, 1, 1], [], []>} : vector<33x32xf32>, vector<32x32xf32>, vector<33x32xf32> -> vector<33x32xf32>
    %24 = arith.addf %18, %23 : vector<33x32xf32>
    %c0_23 = arith.constant 0 : index
    %c8 = arith.constant 8 : index
    %c0_24 = arith.constant 0 : index
    %25 = vector.load %arg1[%c0_23, %c8, %c0_24] : memref<1x49x32xf32, #tpu.memory_space<vmem>>, vector<1x33x32xf32>
    %26 = vector.shape_cast %25 : vector<1x33x32xf32> to vector<33x32xf32>
    %c4 = arith.constant 4 : index
    %c0_25 = arith.constant 0 : index
    %c0_26 = arith.constant 0 : index
    %27 = vector.load %arg2[%c4, %c0_25, %c0_26] : memref<9x32x32xf32, #tpu.memory_space<vmem>>, vector<1x32x32xf32>
    %28 = vector.shape_cast %27 : vector<1x32x32xf32> to vector<32x32xf32>
    %cst_27 = arith.constant dense<0.000000e+00> : vector<33x32xf32>
    %29 = tpu.matmul %26, %28, %cst_27 {dimension_numbers = #tpu.dot_dimension_numbers<[1], [0], [0], [1], [0, 0, 1, 1], [], []>} : vector<33x32xf32>, vector<32x32xf32>, vector<33x32xf32> -> vector<33x32xf32>
    %30 = arith.addf %24, %29 : vector<33x32xf32>
    %c0_28 = arith.constant 0 : index
    %c9 = arith.constant 9 : index
    %c0_29 = arith.constant 0 : index
    %31 = vector.load %arg1[%c0_28, %c9, %c0_29] : memref<1x49x32xf32, #tpu.memory_space<vmem>>, vector<1x33x32xf32>
    %32 = vector.shape_cast %31 : vector<1x33x32xf32> to vector<33x32xf32>
    %c5 = arith.constant 5 : index
    %c0_30 = arith.constant 0 : index
    %c0_31 = arith.constant 0 : index
    %33 = vector.load %arg2[%c5, %c0_30, %c0_31] : memref<9x32x32xf32, #tpu.memory_space<vmem>>, vector<1x32x32xf32>
    %34 = vector.shape_cast %33 : vector<1x32x32xf32> to vector<32x32xf32>
    %cst_32 = arith.constant dense<0.000000e+00> : vector<33x32xf32>
    %35 = tpu.matmul %32, %34, %cst_32 {dimension_numbers = #tpu.dot_dimension_numbers<[1], [0], [0], [1], [0, 0, 1, 1], [], []>} : vector<33x32xf32>, vector<32x32xf32>, vector<33x32xf32> -> vector<33x32xf32>
    %36 = arith.addf %30, %35 : vector<33x32xf32>
    %c0_33 = arith.constant 0 : index
    %c14 = arith.constant 14 : index
    %c0_34 = arith.constant 0 : index
    %37 = vector.load %arg1[%c0_33, %c14, %c0_34] : memref<1x49x32xf32, #tpu.memory_space<vmem>>, vector<1x33x32xf32>
    %38 = vector.shape_cast %37 : vector<1x33x32xf32> to vector<33x32xf32>
    %c6 = arith.constant 6 : index
    %c0_35 = arith.constant 0 : index
    %c0_36 = arith.constant 0 : index
    %39 = vector.load %arg2[%c6, %c0_35, %c0_36] : memref<9x32x32xf32, #tpu.memory_space<vmem>>, vector<1x32x32xf32>
    %40 = vector.shape_cast %39 : vector<1x32x32xf32> to vector<32x32xf32>
    %cst_37 = arith.constant dense<0.000000e+00> : vector<33x32xf32>
    %41 = tpu.matmul %38, %40, %cst_37 {dimension_numbers = #tpu.dot_dimension_numbers<[1], [0], [0], [1], [0, 0, 1, 1], [], []>} : vector<33x32xf32>, vector<32x32xf32>, vector<33x32xf32> -> vector<33x32xf32>
    %42 = arith.addf %36, %41 : vector<33x32xf32>
    %c0_38 = arith.constant 0 : index
    %c15 = arith.constant 15 : index
    %c0_39 = arith.constant 0 : index
    %43 = vector.load %arg1[%c0_38, %c15, %c0_39] : memref<1x49x32xf32, #tpu.memory_space<vmem>>, vector<1x33x32xf32>
    %44 = vector.shape_cast %43 : vector<1x33x32xf32> to vector<33x32xf32>
    %c7_40 = arith.constant 7 : index
    %c0_41 = arith.constant 0 : index
    %c0_42 = arith.constant 0 : index
    %45 = vector.load %arg2[%c7_40, %c0_41, %c0_42] : memref<9x32x32xf32, #tpu.memory_space<vmem>>, vector<1x32x32xf32>
    %46 = vector.shape_cast %45 : vector<1x32x32xf32> to vector<32x32xf32>
    %cst_43 = arith.constant dense<0.000000e+00> : vector<33x32xf32>
    %47 = tpu.matmul %44, %46, %cst_43 {dimension_numbers = #tpu.dot_dimension_numbers<[1], [0], [0], [1], [0, 0, 1, 1], [], []>} : vector<33x32xf32>, vector<32x32xf32>, vector<33x32xf32> -> vector<33x32xf32>
    %48 = arith.addf %42, %47 : vector<33x32xf32>
    %c0_44 = arith.constant 0 : index
    %c16 = arith.constant 16 : index
    %c0_45 = arith.constant 0 : index
    %49 = vector.load %arg1[%c0_44, %c16, %c0_45] : memref<1x49x32xf32, #tpu.memory_space<vmem>>, vector<1x33x32xf32>
    %50 = vector.shape_cast %49 : vector<1x33x32xf32> to vector<33x32xf32>
    %c8_46 = arith.constant 8 : index
    %c0_47 = arith.constant 0 : index
    %c0_48 = arith.constant 0 : index
    %51 = vector.load %arg2[%c8_46, %c0_47, %c0_48] : memref<9x32x32xf32, #tpu.memory_space<vmem>>, vector<1x32x32xf32>
    %52 = vector.shape_cast %51 : vector<1x32x32xf32> to vector<32x32xf32>
    %cst_49 = arith.constant dense<0.000000e+00> : vector<33x32xf32>
    %53 = tpu.matmul %50, %52, %cst_49 {dimension_numbers = #tpu.dot_dimension_numbers<[1], [0], [0], [1], [0, 0, 1, 1], [], []>} : vector<33x32xf32>, vector<32x32xf32>, vector<33x32xf32> -> vector<33x32xf32>
    %54 = arith.addf %48, %53 : vector<33x32xf32>
    %c0_50 = arith.constant 0 : index
    %c0_51 = arith.constant 0 : index
    %55 = vector.load %arg3[%c0_50, %c0_51] : memref<1x32xf32, #tpu.memory_space<vmem>>, vector<1x32xf32>
    %56 = vector.broadcast %55 : vector<1x32xf32> to vector<33x32xf32>
    %57 = arith.addf %54, %56 : vector<33x32xf32>
    %cst_52 = arith.constant 0.000000e+00 : f32
    %58 = vector.broadcast %cst_52 : f32 to vector<33x32xf32>
    %59 = arith.maximumf %57, %58 : vector<33x32xf32>
    %cst_53 = arith.constant 0.000000e+00 : f32
    %60 = vector.broadcast %cst_53 : f32 to vector<48x32xf32>
    %c0_54 = arith.constant 0 : index
    %c0_55 = arith.constant 0 : index
    %c0_56 = arith.constant 0 : index
    %61 = vector.load %arg4[%c0_54, %c0_55, %c0_56] : memref<1x48x32xf32, #tpu.memory_space<vmem>>, vector<1x48x32xf32>
    %62 = vector.shape_cast %61 : vector<1x48x32xf32> to vector<48x32xf32>
    %63 = vector.shape_cast %60 : vector<48x32xf32> to vector<1x48x32xf32>
    tpu.vector_store %arg4[%c0_54, %c0_55, %c0_56], %63 {strides = array<i32>} : memref<1x48x32xf32, #tpu.memory_space<vmem>>, vector<1x48x32xf32>,
    %c0_57 = arith.constant 0 : index
    %c0_58 = arith.constant 0 : index
    %c0_59 = arith.constant 0 : index
    %64 = vector.load %arg4[%c0_57, %c0_58, %c0_59] : memref<1x48x32xf32, #tpu.memory_space<vmem>>, vector<1x33x32xf32>
    %65 = vector.shape_cast %64 : vector<1x33x32xf32> to vector<33x32xf32>
    %66 = vector.shape_cast %59 : vector<33x32xf32> to vector<1x33x32xf32>
    tpu.vector_store %arg4[%c0_57, %c0_58, %c0_59], %66 {strides = array<i32>} : memref<1x48x32xf32, #tpu.memory_space<vmem>>, vector<1x33x32xf32>,
    return
  }
  func.func @transform_0(%arg0: i32) -> (i32, i32, i32) {
    %c0_i32 = arith.constant 0 : i32
    %c0_i32_0 = arith.constant 0 : i32
    %c0_i32_1 = arith.constant 0 : i32
    return %arg0, %c0_i32, %c0_i32_0 : i32, i32, i32
  }
  func.func @transform_1(%arg0: i32) -> (i32, i32, i32) {
    %c0_i32 = arith.constant 0 : i32
    %c0_i32_0 = arith.constant 0 : i32
    %c0_i32_1 = arith.constant 0 : i32
    %c0_i32_2 = arith.constant 0 : i32
    return %c0_i32, %c0_i32_0, %c0_i32_1 : i32, i32, i32
  }
  func.func @transform_2(%arg0: i32) -> (i32, i32) {
    %c0_i32 = arith.constant 0 : i32
    %c0_i32_0 = arith.constant 0 : i32
    %c0_i32_1 = arith.constant 0 : i32
    return %c0_i32, %c0_i32_0 : i32, i32
  }
  func.func @transform_3(%arg0: i32) -> (i32, i32, i32) {
    %c0_i32 = arith.constant 0 : i32
    %c0_i32_0 = arith.constant 0 : i32
    %c0_i32_1 = arith.constant 0 : i32
    return %arg0, %c0_i32, %c0_i32_0 : i32, i32, i32
  }
}

module attributes {stable_mosaic.version = 11 : i64} {
  func.func @_matmul_bias_relu_kernel(%arg0: i32, %arg1: memref<96x36xf32, #tpu.memory_space<vmem>>, %arg2: memref<36x32xf32, #tpu.memory_space<vmem>>, %arg3: memref<1x32xf32, #tpu.memory_space<vmem>>, %arg4: memref<96x32xf32, #tpu.memory_space<vmem>>) attributes {dimension_semantics = [#tpu.dimension_semantics<parallel>], iteration_bounds = array<i64: 2>, scalar_prefetch = 0 : i64, scratch_operands = 0 : i64, tpu.core_type = #tpu.core_type<tc>, window_params = [{transform_indices = @transform_0, window_bounds = array<i64: 96, 36>}, {pipeline_mode = #tpu.pipeline_mode<synchronous>, transform_indices = @transform_1, window_bounds = array<i64: 36, 32>}, {pipeline_mode = #tpu.pipeline_mode<synchronous>, transform_indices = @transform_2, window_bounds = array<i64: 1, 32>}, {transform_indices = @transform_3, window_bounds = array<i64: 96, 32>}]} {
    %c0 = arith.constant 0 : index
    %c0_0 = arith.constant 0 : index
    %0 = vector.load %arg1[%c0, %c0_0] : memref<96x36xf32, #tpu.memory_space<vmem>>, vector<96x36xf32>
    %c0_1 = arith.constant 0 : index
    %c0_2 = arith.constant 0 : index
    %1 = vector.load %arg2[%c0_1, %c0_2] : memref<36x32xf32, #tpu.memory_space<vmem>>, vector<36x32xf32>
    %cst = arith.constant dense<0.000000e+00> : vector<96x32xf32>
    %2 = tpu.matmul %0, %1, %cst {dimension_numbers = #tpu.dot_dimension_numbers<[1], [0], [0], [1], [0, 0, 1, 1], [], []>} : vector<96x36xf32>, vector<36x32xf32>, vector<96x32xf32> -> vector<96x32xf32>
    %c0_3 = arith.constant 0 : index
    %c0_4 = arith.constant 0 : index
    %3 = vector.load %arg3[%c0_3, %c0_4] : memref<1x32xf32, #tpu.memory_space<vmem>>, vector<1x32xf32>
    %4 = vector.broadcast %3 : vector<1x32xf32> to vector<96x32xf32>
    %5 = arith.addf %2, %4 : vector<96x32xf32>
    %cst_5 = arith.constant 0.000000e+00 : f32
    %6 = vector.broadcast %cst_5 : f32 to vector<96x32xf32>
    %7 = arith.maximumf %5, %6 : vector<96x32xf32>
    %c0_6 = arith.constant 0 : index
    %c0_7 = arith.constant 0 : index
    %8 = vector.load %arg4[%c0_6, %c0_7] : memref<96x32xf32, #tpu.memory_space<vmem>>, vector<96x32xf32>
    tpu.vector_store %arg4[%c0_6, %c0_7], %7 {strides = array<i32>} : memref<96x32xf32, #tpu.memory_space<vmem>>, vector<96x32xf32>,
    return
  }
  func.func @transform_0(%arg0: i32) -> (i32, i32) {
    %c0_i32 = arith.constant 0 : i32
    %c0_i32_0 = arith.constant 0 : i32
    return %arg0, %c0_i32 : i32, i32
  }
  func.func @transform_1(%arg0: i32) -> (i32, i32) {
    %c0_i32 = arith.constant 0 : i32
    %c0_i32_0 = arith.constant 0 : i32
    %c0_i32_1 = arith.constant 0 : i32
    return %c0_i32, %c0_i32_0 : i32, i32
  }
  func.func @transform_2(%arg0: i32) -> (i32, i32) {
    %c0_i32 = arith.constant 0 : i32
    %c0_i32_0 = arith.constant 0 : i32
    %c0_i32_1 = arith.constant 0 : i32
    return %c0_i32, %c0_i32_0 : i32, i32
  }
  func.func @transform_3(%arg0: i32) -> (i32, i32) {
    %c0_i32 = arith.constant 0 : i32
    %c0_i32_0 = arith.constant 0 : i32
    return %arg0, %c0_i32 : i32, i32
  }
}

module attributes {stable_mosaic.version = 11 : i64} {
  func.func @_fc_ln_kernel(%arg0: i32, %arg1: memref<2x1536xf32, #tpu.memory_space<vmem>>, %arg2: memref<1536x32xf32, #tpu.memory_space<vmem>>, %arg3: memref<1x32xf32, #tpu.memory_space<vmem>>, %arg4: memref<1x32xf32, #tpu.memory_space<vmem>>, %arg5: memref<1x32xf32, #tpu.memory_space<vmem>>, %arg6: memref<2x32xf32, #tpu.memory_space<vmem>>, %arg7: memref<2x32xf32, #tpu.memory_space<vmem>>) attributes {dimension_semantics = [#tpu.dimension_semantics<arbitrary>], iteration_bounds = array<i64: 1>, scalar_prefetch = 0 : i64, scratch_operands = 1 : i64, tpu.core_type = #tpu.core_type<tc>, window_params = [{transform_indices = @transform_0, window_bounds = array<i64: 2, 1536>}, {transform_indices = @transform_1, window_bounds = array<i64: 1536, 32>}, {pipeline_mode = #tpu.pipeline_mode<synchronous>, transform_indices = @transform_2, window_bounds = array<i64: 1, 32>}, {pipeline_mode = #tpu.pipeline_mode<synchronous>, transform_indices = @transform_3, window_bounds = array<i64: 1, 32>}, {pipeline_mode = #tpu.pipeline_mode<synchronous>, transform_indices = @transform_4, window_bounds = array<i64: 1, 32>}, {pipeline_mode = #tpu.pipeline_mode<synchronous>, transform_indices = @transform_5, window_bounds = array<i64: 2, 32>}]} {
    %c0_i32 = arith.constant 0 : i32
    %0 = arith.cmpi eq, %arg0, %c0_i32 : i32
    %1 = arith.extui %0 : i1 to i32
    %c0_i32_0 = arith.constant 0 : i32
    %2 = arith.cmpi ne, %1, %c0_i32_0 : i32
    scf.if %2 {
      %cst_10 = arith.constant 0.000000e+00 : f32
      %12 = vector.broadcast %cst_10 : f32 to vector<2x32xf32>
      %c0_11 = arith.constant 0 : index
      %c0_12 = arith.constant 0 : index
      %13 = vector.load %arg7[%c0_11, %c0_12] : memref<2x32xf32, #tpu.memory_space<vmem>>, vector<2x32xf32>
      tpu.vector_store %arg7[%c0_11, %c0_12], %12 {strides = array<i32>} : memref<2x32xf32, #tpu.memory_space<vmem>>, vector<2x32xf32>,
    } else {
    }
    %c0 = arith.constant 0 : index
    %c0_1 = arith.constant 0 : index
    %3 = vector.load %arg7[%c0, %c0_1] : memref<2x32xf32, #tpu.memory_space<vmem>>, vector<2x32xf32>
    %c0_2 = arith.constant 0 : index
    %c0_3 = arith.constant 0 : index
    %4 = vector.load %arg1[%c0_2, %c0_3] : memref<2x1536xf32, #tpu.memory_space<vmem>>, vector<2x1536xf32>
    %c0_4 = arith.constant 0 : index
    %c0_5 = arith.constant 0 : index
    %5 = vector.load %arg2[%c0_4, %c0_5] : memref<1536x32xf32, #tpu.memory_space<vmem>>, vector<1536x32xf32>
    %cst = arith.constant dense<0.000000e+00> : vector<2x32xf32>
    %6 = tpu.matmul %4, %5, %cst {dimension_numbers = #tpu.dot_dimension_numbers<[1], [0], [0], [1], [0, 0, 1, 1], [], []>} : vector<2x1536xf32>, vector<1536x32xf32>, vector<2x32xf32> -> vector<2x32xf32>
    %7 = arith.addf %3, %6 : vector<2x32xf32>
    %c0_6 = arith.constant 0 : index
    %c0_7 = arith.constant 0 : index
    %8 = vector.load %arg7[%c0_6, %c0_7] : memref<2x32xf32, #tpu.memory_space<vmem>>, vector<2x32xf32>
    tpu.vector_store %arg7[%c0_6, %c0_7], %7 {strides = array<i32>} : memref<2x32xf32, #tpu.memory_space<vmem>>, vector<2x32xf32>,
    %c0_i32_8 = arith.constant 0 : i32
    %9 = arith.cmpi eq, %arg0, %c0_i32_8 : i32
    %10 = arith.extui %9 : i1 to i32
    %c0_i32_9 = arith.constant 0 : i32
    %11 = arith.cmpi ne, %10, %c0_i32_9 : i32
    scf.if %11 {
      %c0_10 = arith.constant 0 : index
      %c0_11 = arith.constant 0 : index
      %12 = vector.load %arg7[%c0_10, %c0_11] : memref<2x32xf32, #tpu.memory_space<vmem>>, vector<2x32xf32>
      %c0_12 = arith.constant 0 : index
      %c0_13 = arith.constant 0 : index
      %13 = vector.load %arg3[%c0_12, %c0_13] : memref<1x32xf32, #tpu.memory_space<vmem>>, vector<1x32xf32>
      %14 = vector.broadcast %13 : vector<1x32xf32> to vector<2x32xf32>
      %15 = arith.addf %12, %14 : vector<2x32xf32>
      %cst_14 = arith.constant dense<0.000000e+00> : vector<2xf32>
      %16 = vector.multi_reduction <add>, %15, %cst_14 [1] : vector<2x32xf32> to vector<2xf32>
      %17 = vector.shape_cast %16 : vector<2xf32> to vector<2x1xf32>
      %cst_15 = arith.constant 3.200000e+01 : f32
      %18 = vector.broadcast %cst_15 : f32 to vector<2x1xf32>
      %19 = arith.divf %17, %18 : vector<2x1xf32>
      %20 = vector.broadcast %19 : vector<2x1xf32> to vector<2x32xf32>
      %21 = arith.subf %15, %20 : vector<2x32xf32>
      %22 = arith.mulf %21, %21 : vector<2x32xf32>
      %cst_16 = arith.constant dense<0.000000e+00> : vector<2xf32>
      %23 = vector.multi_reduction <add>, %22, %cst_16 [1] : vector<2x32xf32> to vector<2xf32>
      %24 = vector.shape_cast %23 : vector<2xf32> to vector<2x1xf32>
      %cst_17 = arith.constant 3.200000e+01 : f32
      %25 = vector.broadcast %cst_17 : f32 to vector<2x1xf32>
      %26 = arith.divf %24, %25 : vector<2x1xf32>
      %27 = vector.broadcast %19 : vector<2x1xf32> to vector<2x32xf32>
      %28 = arith.subf %15, %27 : vector<2x32xf32>
      %cst_18 = arith.constant 9.99999974E-6 : f32
      %29 = vector.broadcast %cst_18 : f32 to vector<2x1xf32>
      %30 = arith.addf %26, %29 : vector<2x1xf32>
      %31 = math.rsqrt %30 : vector<2x1xf32>
      %32 = vector.broadcast %31 : vector<2x1xf32> to vector<2x32xf32>
      %33 = arith.mulf %28, %32 : vector<2x32xf32>
      %c0_19 = arith.constant 0 : index
      %c0_20 = arith.constant 0 : index
      %34 = vector.load %arg4[%c0_19, %c0_20] : memref<1x32xf32, #tpu.memory_space<vmem>>, vector<1x32xf32>
      %35 = vector.broadcast %34 : vector<1x32xf32> to vector<2x32xf32>
      %36 = arith.mulf %33, %35 : vector<2x32xf32>
      %c0_21 = arith.constant 0 : index
      %c0_22 = arith.constant 0 : index
      %37 = vector.load %arg5[%c0_21, %c0_22] : memref<1x32xf32, #tpu.memory_space<vmem>>, vector<1x32xf32>
      %38 = vector.broadcast %37 : vector<1x32xf32> to vector<2x32xf32>
      %39 = arith.addf %36, %38 : vector<2x32xf32>
      %40 = math.tanh %39 : vector<2x32xf32>
      %c0_23 = arith.constant 0 : index
      %c0_24 = arith.constant 0 : index
      %41 = vector.load %arg6[%c0_23, %c0_24] : memref<2x32xf32, #tpu.memory_space<vmem>>, vector<2x32xf32>
      tpu.vector_store %arg6[%c0_23, %c0_24], %40 {strides = array<i32>} : memref<2x32xf32, #tpu.memory_space<vmem>>, vector<2x32xf32>,
    } else {
    }
    return
  }
  func.func @transform_0(%arg0: i32) -> (i32, i32) {
    %c0_i32 = arith.constant 0 : i32
    %c0_i32_0 = arith.constant 0 : i32
    return %c0_i32, %arg0 : i32, i32
  }
  func.func @transform_1(%arg0: i32) -> (i32, i32) {
    %c0_i32 = arith.constant 0 : i32
    %c0_i32_0 = arith.constant 0 : i32
    return %arg0, %c0_i32 : i32, i32
  }
  func.func @transform_2(%arg0: i32) -> (i32, i32) {
    %c0_i32 = arith.constant 0 : i32
    %c0_i32_0 = arith.constant 0 : i32
    %c0_i32_1 = arith.constant 0 : i32
    return %c0_i32, %c0_i32_0 : i32, i32
  }
  func.func @transform_3(%arg0: i32) -> (i32, i32) {
    %c0_i32 = arith.constant 0 : i32
    %c0_i32_0 = arith.constant 0 : i32
    %c0_i32_1 = arith.constant 0 : i32
    return %c0_i32, %c0_i32_0 : i32, i32
  }
  func.func @transform_4(%arg0: i32) -> (i32, i32) {
    %c0_i32 = arith.constant 0 : i32
    %c0_i32_0 = arith.constant 0 : i32
    %c0_i32_1 = arith.constant 0 : i32
    return %c0_i32, %c0_i32_0 : i32, i32
  }
  func.func @transform_5(%arg0: i32) -> (i32, i32) {
    %c0_i32 = arith.constant 0 : i32
    %c0_i32_0 = arith.constant 0 : i32
    %c0_i32_1 = arith.constant 0 : i32
    return %c0_i32, %c0_i32_0 : i32, i32
  }
}

</mosaic_0001>

<llo_original>
// kernel: forward.3
$region0: #{forward.3}
  #allocation0 [shape = 'u32[]', space=smem, size = 0x4, offset = 0x4, fixed_abs, tag = 'smem constant byte address 0x4 - core index']
  #allocation1 [shape = 'u32[144,128]{1,0:T(1,128)}', space=vmem, size = 0x12000, scoped, tag = 'internal scratch']
  %s0 = inlined_call_operand.vmem [shape: f32[98,36], index: 0, kind: input, shape index: {}]
  %s1 = inlined_call_operand.vmem [shape: f32[36,32], index: 1, kind: input, shape index: {}]
  %s2 = inlined_call_operand.vmem [shape: f32[1,32], index: 2, kind: input, shape index: {}]
  %s3 = inlined_call_operand.vmem [shape: f32[98,32], index: 3, kind: output, shape index: {}]
  %s4 = sld [smem:[#allocation0]]
  $region93: #{forward.3} parent=0
    _
  %s6 = ssub.s32 1, %s4
  %s7 = scalar_select 0, %s6, %s4
  $region1: #{forward.3} parent=0
    #allocation2 [shape = 'u8[98304]{0}', space=vmem, size = 0x18000, scoped, tag = 'output window, operand 0']
    loop: start=0, step=1, limit=4
    $region2: #{forward.3} parent=1 // loop_pre_header
      _
    $region3: #{forward.3} parent=1 // loop_header
      %s9 = sphi 0, %s13
      %p10 = scmp.ge.s32.totalorder %s9, 4
      %s19 = sphi 0, %s21
      %s22 = sphi 0, %s19
      %s23 = sphi 0, %s22
      %s39 = sphi 0, %s23
      %s43 = sphi 0, %s43
      %s45 = sphi 0, %s43
      %s46 = sphi 0, %s45
      %s60 = sphi 0, %s46
      %s64 = sphi 0, %s64
      %s66 = sphi 0, %s64
      %s67 = sphi 0, %s66
      %s81 = sphi 0, %s67
      %s87 = sphi 0, %s89
      %s90 = sphi 0, %s87
      %s91 = sphi 0, %s90
      %s107 = sphi 0, %s91
    $region4: #{forward.3} parent=1 // loop_header_branch
      %12 = sbr.rel (%p10) target = $region8
    $region5: #{forward.3} parent=1 // loop_body
      %s14 = ssub.s32 %s9, 1
      %s15 = ssub.s32 %s9, 2
      %s16 = sadd.s32 %s9, 1
      %s17 = ssub.s32 %s9, %s16
      %p18 = scmp.eq.s32.totalorder %s17, 0
      %s20 = sadd.s32 %s19, 1
      %s21 = scalar_select %p18, %s19, %s20
      %p24 = pneg %p18
      %p25 = scmp.eq.s32.totalorder %s9, 1
      %p26 = por %p24, %p25
      %p27 = scmp.ne.s32.totalorder %s19, %s22
      %p28 = scmp.eq.s32.totalorder %s9, 0
      %p29 = por %p27, %p28
      %p30 = scmp.ne.s32.totalorder %s19, %s22
      %p31 = scmp.eq.s32.totalorder %s14, 1
      %p32 = por %p30, %p31
      %p33 = scmp.ne.s32.totalorder %s22, %s23
      %p34 = scmp.eq.s32.totalorder %s14, 0
      %p35 = por %p33, %p34
      %p36 = scmp.ne.s32.totalorder %s22, %s23
      %p37 = scmp.eq.s32.totalorder %s15, 1
      %p38 = por %p36, %p37
      %p40 = scmp.ne.s32.totalorder %s23, %s39
      %p41 = scmp.eq.s32.totalorder %s15, 0
      %p42 = por %p40, %p41
      %s44 = sadd.s32 %s43, 1
      %p47 = scmp.eq.s32.totalorder %s9, 1
      %p48 = scmp.ne.s32.totalorder %s43, %s45
      %p49 = scmp.eq.s32.totalorder %s9, 0
      %p50 = por %p48, %p49
      %p51 = scmp.ne.s32.totalorder %s43, %s45
      %p52 = scmp.eq.s32.totalorder %s14, 1
      %p53 = por %p51, %p52
      %p54 = scmp.ne.s32.totalorder %s45, %s46
      %p55 = scmp.eq.s32.totalorder %s14, 0
      %p56 = por %p54, %p55
      %p57 = scmp.ne.s32.totalorder %s45, %s46
      %p58 = scmp.eq.s32.totalorder %s15, 1
      %p59 = por %p57, %p58
      %p61 = scmp.ne.s32.totalorder %s46, %s60
      %p62 = scmp.eq.s32.totalorder %s15, 0
      %p63 = por %p61, %p62
      %s65 = sadd.s32 %s64, 1
      %p68 = scmp.eq.s32.totalorder %s9, 1
      %p69 = scmp.ne.s32.totalorder %s64, %s66
      %p70 = scmp.eq.s32.totalorder %s9, 0
      %p71 = por %p69, %p70
      %p72 = scmp.ne.s32.totalorder %s64, %s66
      %p73 = scmp.eq.s32.totalorder %s14, 1
      %p74 = por %p72, %p73
      %p75 = scmp.ne.s32.totalorder %s66, %s67
      %p76 = scmp.eq.s32.totalorder %s14, 0
      %p77 = por %p75, %p76
      %p78 = scmp.ne.s32.totalorder %s66, %s67
      %p79 = scmp.eq.s32.totalorder %s15, 1
      %p80 = por %p78, %p79
      %p82 = scmp.ne.s32.totalorder %s67, %s81
      %p83 = scmp.eq.s32.totalorder %s15, 0
      %p84 = por %p82, %p83
      %s85 = ssub.s32 %s9, %s16
      %p86 = scmp.eq.s32.totalorder %s85, 0
      %s88 = sadd.s32 %s87, 1
      %s89 = scalar_select %p86, %s87, %s88
      %p92 = pneg %p86
      %p93 = scmp.eq.s32.totalorder %s9, 1
      %p94 = por %p92, %p93
      %p95 = scmp.ne.s32.totalorder %s87, %s90
      %p96 = scmp.eq.s32.totalorder %s9, 0
      %p97 = por %p95, %p96
      %p98 = scmp.ne.s32.totalorder %s87, %s90
      %p99 = scmp.eq.s32.totalorder %s14, 1
      %p100 = por %p98, %p99
      %p101 = scmp.ne.s32.totalorder %s90, %s91
      %p102 = scmp.eq.s32.totalorder %s14, 0
      %p103 = por %p101, %p102
      %p104 = scmp.ne.s32.totalorder %s90, %s91
      %p105 = scmp.eq.s32.totalorder %s15, 1
      %p106 = por %p104, %p105
      %p108 = scmp.ne.s32.totalorder %s91, %s107
      %p109 = scmp.eq.s32.totalorder %s15, 0
      %p110 = por %p108, %p109
      %p111 = scmp.le.s32.totalorder 1, %s9
      %p112 = scmp.lt.s32.totalorder %s9, 3
      %p113 = pnand %p111, %p112
      %p114 = pneg %p113
      // Predicated region
      $region9: #{forward.3} parent=5 // pred_check
        _
      $region10: #{forward.3} parent=5 // pred_check_branch
        %116 = sbr.rel (%p113) target = $region12
      $region11: #{forward.3} parent=5 // pred_region
        %s117 = ssub.s32 %s9, 1
        // Predicated region
        $region13: #{forward.3} parent=11 // pred_check
          %p118 = pneg %p56
        $region14: #{forward.3} parent=11 // pred_check_branch
          %120 = sbr.rel (%p118) target = $region16
        $region15: #{forward.3} parent=11 // pred_region
          _
        $region16: #{forward.3} parent=11 // pred_fallthru
          _
        // Predicated region
        $region17: #{forward.3} parent=11 // pred_check
          %p121 = pneg %p77
        $region18: #{forward.3} parent=11 // pred_check_branch
          %123 = sbr.rel (%p121) target = $region20
        $region19: #{forward.3} parent=11 // pred_region
          _
        $region20: #{forward.3} parent=11 // pred_fallthru
          _
      $region12: #{forward.3} parent=5 // pred_fallthru
        _
      %p124 = scmp.lt.s32.totalorder %s9, 2
      // Predicated region
      $region21: #{forward.3} parent=5 // pred_check
        %p125 = pneg %p124
      $region22: #{forward.3} parent=5 // pred_check_branch
        %127 = sbr.rel (%p125) target = $region24
      $region23: #{forward.3} parent=5 // pred_region
        // Predicated region
        $region25: #{forward.3} parent=23 // pred_check
          %p128 = pneg %p29
        $region26: #{forward.3} parent=23 // pred_check_branch
          %130 = sbr.rel (%p128) target = $region28
        $region27: #{forward.3} parent=23 // pred_region
          %s131 = smul.u32 12, %s9
          %s132 = ssub.s32 13, %s131
          %p133 = scmp.lt.s32.totalorder %s132, 12
          %s134 = scalar_select %p133, %s132, 12
          %s135 = smul.u32 128, %s134
          %p136 = scmp.lt.s32.totalorder %s131, 12
          %s137 = scalar_select %p136, %s131, 12
          %s138 = smul.addr %s137, 8
          %s139 = scalar_lea.vmem %s0, %s138
          %s140 = smul.u32 12, %s9
          %s141 = ssub.s32 13, %s140
          %p142 = scmp.lt.s32.totalorder %s141, 12
          %s143 = scalar_select %p142, %s141, 12
          %s144 = smul.u32 128, %s143
        $region28: #{forward.3} parent=23 // pred_fallthru
          _
      $region24: #{forward.3} parent=5 // pred_fallthru
        _
      %p145 = scmp.le.s32.totalorder 1, %s9
      %p146 = scmp.lt.s32.totalorder %s9, 3
      %p147 = pnand %p145, %p146
      %p148 = pneg %p147
      // Predicated region
      $region29: #{forward.3} parent=5 // pred_check
        _
      $region30: #{forward.3} parent=5 // pred_check_branch
        %150 = sbr.rel (%p147) target = $region32
      $region31: #{forward.3} parent=5 // pred_region
        %s151 = ssub.s32 %s9, 1
        %s152 = smul.u32 12, %s14
        %s153 = ssub.s32 13, %s152
        %p154 = scmp.lt.s32.totalorder %s153, 12
        %s155 = scalar_select %p154, %s153, 12
        %s156 = smul.u32 128, %s155
        %p157 = scmp.lt.s32.totalorder %s152, 12
        %s158 = scalar_select %p157, %s152, 12
        %s159 = smul.addr %s158, 8
        %s160 = scalar_lea.vmem %s0, %s159
        %p161 = pneg %p35
        %p162 = pneg %p32
        %p163 = pneg %p56
        %p164 = pneg %p53
        %p165 = pneg %p77
        %p166 = pneg %p74
        %p167 = pneg %p103
        %p168 = pneg %p100
        %s169 = sand.u32 %s90, 1
        %s170 = sand.u32 %s90, 1
        %s171 = smul.addr %s170, 96
        %s172 = scalar_lea.vmem [#allocation2], %s171
        %s173 = smul.u32 12, %s14
        %s174 = ssub.s32 13, %s173
        %p175 = scmp.lt.s32.totalorder %s174, 12
        %s176 = scalar_select %p175, %s174, 12
        %s177 = smul.u32 128, %s176
        %p178 = scmp.lt.s32.totalorder %s173, 12
        %s179 = scalar_select %p178, %s173, 12
        %s180 = smul.addr %s179, 8
        %s181 = scalar_lea.vmem %s0, %s180
        %s182 = smul.u32 12, %s14
        %s183 = ssub.s32 13, %s182
        %p184 = scmp.lt.s32.totalorder %s183, 12
        %s185 = scalar_select %p184, %s183, 12
        %s186 = smul.u32 128, %s185
        %s187 = smul.u32 12, %s14
        %s188 = ssub.s32 13, %s187
        %p189 = scmp.lt.s32.totalorder %s188, 12
        %s190 = scalar_select %p189, %s188, 12
        %s191 = smul.u32 128, %s190
        %v192 = vld [vmem:[%s181] sm:$0xff]
        %v193 = vld [vmem:[%s181 + $0x8] sm:$0xff]
        %v194 = vld [vmem:[%s181 + $0x10] sm:$0xff]
        %v195 = vld [vmem:[%s181 + $0x18] sm:$0xff]
        %v196 = vld [vmem:[%s181 + $0x20] sm:$0xff]
        %v197 = vld [vmem:[%s181 + $0x28] sm:$0xff]
        %v198 = vld [vmem:[%s181 + $0x30] sm:$0xff]
        %v199 = vld [vmem:[%s181 + $0x38] sm:$0xff]
        %v200 = vld [vmem:[%s181 + $0x40] sm:$0xff]
        %v201 = vld [vmem:[%s181 + $0x48] sm:$0xff]
        %v202 = vld [vmem:[%s181 + $0x50] sm:$0xff]
        %v203 = vld [vmem:[%s181 + $0x58] sm:$0xff]
        %v204 = vld [vmem:[%s1] sm:$0xff]
        %v205 = vld [vmem:[%s1 + $0x8] sm:$0xff]
        %v206 = vld [vmem:[%s1 + $0x10] sm:$0xff]
        %v207 = vld [vmem:[%s1 + $0x18] sm:$0xff]
        %v208 = vld [vmem:[%s1 + $0x20] sm:$0xf]
        %v209 = vld [vmem:[%s2] sm:$0x1]
        %v211 = vlaneseq
        %v212 = vshrl.u32 %v211, 7
        %v213 = vsub.s32 0, %v212
        %v214 = vrot.slane %v209, %v213
        %vm216 = vcmask 293888
        %v218 = vsel %vm216, %v192, 0
        %v221 = vsel %vm216, %v193, 0
        %v224 = vsel %vm216, %v194, 0
        %v227 = vsel %vm216, %v195, 0
        %v230 = vsel %vm216, %v196, 0
        %v233 = vsel %vm216, %v197, 0
        %v236 = vsel %vm216, %v198, 0
        %v239 = vsel %vm216, %v199, 0
        %v242 = vsel %vm216, %v200, 0
        %v245 = vsel %vm216, %v201, 0
        %v248 = vsel %vm216, %v202, 0
        %v251 = vsel %vm216, %v203, 0
        %vm253 = vcmask 1043456
        %v255 = vsel %vm253, %v208, 0
        %257 = vmatprep.subr.mxu0 0.0
        %258 = vmatpush1.msra.mxu0 %v204
        %259 = vmatprep.subr.mxu0 0.0
        %260 = vmatpush1.msra.mxu0 %v205
        %261 = vmatprep.subr.mxu0 0.0
        %262 = vmatpush1.msra.mxu0 %v206
        %263 = vmatprep.subr.mxu0 0.0
        %264 = vmatpush1.msra.mxu0 %v207
        %265 = vmatprep.subr.mxu0 0.0
        %266 = vmatpush1.msra.mxu0 %v255
        %267 = vmatprep.subr.mxu0 0.0
        %268 = vmatpush1.msra.mxu0 0.0
        %269 = vmatprep.subr.mxu0 0.0
        %270 = vmatpush1.msra.mxu0 0.0
        %271 = vmatprep.subr.mxu0 0.0
        %272 = vmatpush1.msra.mxu0 0.0
        %273 = vmatprep.subr.mxu0 0.0
        %274 = vmatpush1.msra.mxu0 0.0
        %275 = vmatprep.subr.mxu0 0.0
        %276 = vmatpush1.msra.mxu0 0.0
        %277 = vmatprep.subr.mxu0 0.0
        %278 = vmatpush1.msra.mxu0 0.0
        %279 = vmatprep.subr.mxu0 0.0
        %280 = vmatpush1.msra.mxu0 0.0
        %281 = vmatprep.subr.mxu0 0.0
        %282 = vmatpush1.msra.mxu0 0.0
        %283 = vmatprep.subr.mxu0 0.0
        %284 = vmatpush1.msra.mxu0 0.0
        %285 = vmatprep.subr.mxu0 0.0
        %286 = vmatpush1.msra.mxu0 0.0
        %287 = vmatprep.subr.mxu0 0.0
        %288 = vmatpush1.msra.mxu0 0.0
        %289 = vmatprep.subr.mxu0 0.0
        %290 = vmatpush1.msra.mxu0 0.0
        %291 = vmatprep.subr.mxu0 0.0
        %292 = vmatpush1.msra.mxu0 0.0
        %293 = vmatprep.subr.mxu0 0.0
        %294 = vmatpush1.msra.mxu0 0.0
        %295 = vmatprep.subr.mxu0 0.0
        %296 = vmatpush1.msra.mxu0 0.0
        %297 = vmatprep.subr.mxu0 0.0
        %298 = vmatpush1.msra.mxu0 0.0
        %299 = vmatprep.subr.mxu0 0.0
        %300 = vmatpush1.msra.mxu0 0.0
        %301 = vmatprep.subr.mxu0 0.0
        %302 = vmatpush1.msra.mxu0 0.0
        %303 = vmatprep.subr.mxu0 0.0
        %304 = vmatpush1.msra.mxu0 0.0
        %305 = vmatprep.subr.mxu0 0.0
        %306 = vmatpush1.msra.mxu0 0.0
        %307 = vmatprep.subr.mxu0 0.0
        %308 = vmatpush1.msra.mxu0 0.0
        %309 = vmatprep.subr.mxu0 0.0
        %310 = vmatpush1.msra.mxu0 0.0
        %311 = vmatprep.subr.mxu0 0.0
        %312 = vmatpush1.msra.mxu0 0.0
        %313 = vmatprep.subr.mxu0 0.0
        %314 = vmatpush1.msra.mxu0 0.0
        %315 = vmatprep.subr.mxu0 0.0
        %316 = vmatpush1.msra.mxu0 0.0
        %317 = vmatprep.subr.mxu0 0.0
        %318 = vmatpush1.msra.mxu0 0.0
        %319 = vmatprep.subr.mxu0 0.0
        %320 = vmatpush1.msra.mxu0 0.0
        %321 = vmatprep.mubr.f32.mxu0 0.0
        %322 = vmatmul.mubr.f32.gmra.mrb[0].mxu0 %v218
        %v323 = vpop.f32.mrb[0].mxu0
        %v324 = vadd.f32 %v214, %v323
        %v325 = vpop.f32.mrb[0].mxu0
        %326 = vmatprep.mubr.f32.mxu0 0.0
        %327 = vmatmul.mubr.f32.gmra.mrb[0].mxu0 %v221
        %v328 = vpop.f32.mrb[0].mxu0
        %v329 = vadd.f32 %v214, %v328
        %v330 = vpop.f32.mrb[0].mxu0
        %331 = vmatprep.mubr.f32.mxu0 0.0
        %332 = vmatmul.mubr.f32.gmra.mrb[0].mxu0 %v224
        %v333 = vpop.f32.mrb[0].mxu0
        %v334 = vadd.f32 %v214, %v333
        %v335 = vpop.f32.mrb[0].mxu0
        %336 = vmatprep.mubr.f32.mxu0 0.0
        %337 = vmatmul.mubr.f32.gmra.mrb[0].mxu0 %v227
        %v338 = vpop.f32.mrb[0].mxu0
        %v339 = vadd.f32 %v214, %v338
        %v340 = vpop.f32.mrb[0].mxu0
        %341 = vmatprep.mubr.f32.mxu0 0.0
        %342 = vmatmul.mubr.f32.gmra.mrb[0].mxu0 %v230
        %v343 = vpop.f32.mrb[0].mxu0
        %v344 = vadd.f32 %v214, %v343
        %v345 = vpop.f32.mrb[0].mxu0
        %346 = vmatprep.mubr.f32.mxu0 0.0
        %347 = vmatmul.mubr.f32.gmra.mrb[0].mxu0 %v233
        %v348 = vpop.f32.mrb[0].mxu0
        %v349 = vadd.f32 %v214, %v348
        %v350 = vpop.f32.mrb[0].mxu0
        %351 = vmatprep.mubr.f32.mxu0 0.0
        %352 = vmatmul.mubr.f32.gmra.mrb[0].mxu0 %v236
        %v353 = vpop.f32.mrb[0].mxu0
        %v354 = vadd.f32 %v214, %v353
        %v355 = vpop.f32.mrb[0].mxu0
        %356 = vmatprep.mubr.f32.mxu0 0.0
        %357 = vmatmul.mubr.f32.gmra.mrb[0].mxu0 %v239
        %v358 = vpop.f32.mrb[0].mxu0
        %v359 = vadd.f32 %v214, %v358
        %v360 = vpop.f32.mrb[0].mxu0
        %361 = vmatprep.mubr.f32.mxu0 0.0
        %362 = vmatmul.mubr.f32.gmra.mrb[0].mxu0 %v242
        %v363 = vpop.f32.mrb[0].mxu0
        %v364 = vadd.f32 %v214, %v363
        %v365 = vpop.f32.mrb[0].mxu0
        %366 = vmatprep.mubr.f32.mxu0 0.0
        %367 = vmatmul.mubr.f32.gmra.mrb[0].mxu0 %v245
        %v368 = vpop.f32.mrb[0].mxu0
        %v369 = vadd.f32 %v214, %v368
        %v370 = vpop.f32.mrb[0].mxu0
        %371 = vmatprep.mubr.f32.mxu0 0.0
        %372 = vmatmul.mubr.f32.gmra.mrb[0].mxu0 %v248
        %v373 = vpop.f32.mrb[0].mxu0
        %v374 = vadd.f32 %v214, %v373
        %v375 = vpop.f32.mrb[0].mxu0
        %376 = vmatprep.mubr.f32.mxu0 0.0
        %377 = vmatmul.mubr.f32.gmra.mrb[0].mxu0 %v251
        %v378 = vpop.f32.mrb[0].mxu0
        %v379 = vadd.f32 %v214, %v378
        %v380 = vpop.f32.mrb[0].mxu0
        %381 = vdwg.mxu0
        %v382 = vmax.f32 %v324, 0.0
        %v383 = vmax.f32 %v329, 0.0
        %v384 = vmax.f32 %v334, 0.0
        %v385 = vmax.f32 %v339, 0.0
        %v386 = vmax.f32 %v344, 0.0
        %v387 = vmax.f32 %v349, 0.0
        %v388 = vmax.f32 %v354, 0.0
        %v389 = vmax.f32 %v359, 0.0
        %v390 = vmax.f32 %v364, 0.0
        %v391 = vmax.f32 %v369, 0.0
        %v392 = vmax.f32 %v374, 0.0
        %v393 = vmax.f32 %v379, 0.0
        %vm394 = vcmask 261120
        %395 = vst.msk [vmem:[%s172] sm:$0xff] %vm394, %v382
        %396 = vst.msk [vmem:[%s172 + $0x8] sm:$0xff] %vm394, %v383
        %397 = vst.msk [vmem:[%s172 + $0x10] sm:$0xff] %vm394, %v384
        %398 = vst.msk [vmem:[%s172 + $0x18] sm:$0xff] %vm394, %v385
        %399 = vst.msk [vmem:[%s172 + $0x20] sm:$0xff] %vm394, %v386
        %400 = vst.msk [vmem:[%s172 + $0x28] sm:$0xff] %vm394, %v387
        %401 = vst.msk [vmem:[%s172 + $0x30] sm:$0xff] %vm394, %v388
        %402 = vst.msk [vmem:[%s172 + $0x38] sm:$0xff] %vm394, %v389
        %403 = vst.msk [vmem:[%s172 + $0x40] sm:$0xff] %vm394, %v390
        %404 = vst.msk [vmem:[%s172 + $0x48] sm:$0xff] %vm394, %v391
        %405 = vst.msk [vmem:[%s172 + $0x50] sm:$0xff] %vm394, %v392
        %406 = vst.msk [vmem:[%s172 + $0x58] sm:$0xff] %vm394, %v393
        %s407 = sand.u32 %s90, 1
        %s408 = sand.u32 %s90, 1
        %s409 = smul.addr %s408, 96
        %s410 = scalar_lea.vmem [#allocation2], %s409
        // Predicated region
        $region33: #{forward.3} parent=31 // pred_check
          %p411 = pneg %p100
        $region34: #{forward.3} parent=31 // pred_check_branch
          %413 = sbr.rel (%p411) target = $region36
        $region35: #{forward.3} parent=31 // pred_region
          %s414 = smul.u32 12, %s14
          %s415 = ssub.s32 13, %s414
          %p416 = scmp.lt.s32.totalorder %s415, 12
          %s417 = scalar_select %p416, %s415, 12
          %s418 = smul.u32 128, %s417
          %p419 = scmp.ne.s32.totalorder 0, %s418
          %s420 = smul.addr %s414, 8
          %s421 = scalar_lea.vmem %s3, %s420
          // Predicated region
          $region37: #{forward.3} parent=35 // pred_check
            %p422 = pneg %p419
          $region38: #{forward.3} parent=35 // pred_check_branch
            %424 = sbr.rel (%p422) target = $region40
          $region39: #{forward.3} parent=35 // pred_region
            // Predicated region
            $region41: #{forward.3} parent=39 // pred_check
              _
            $region42: #{forward.3} parent=39 // pred_check_branch
              %426 = sbr.rel (0) target = $region44
            $region43: #{forward.3} parent=39 // pred_region
              // Predicated region
              $region63: #{forward.3} parent=43 // pred_check
                _
              $region64: #{forward.3} parent=43 // pred_check_branch
                %498 = sbr.rel (0) target = $region66
              $region65: #{forward.3} parent=43 // pred_region
                %s499 = sdiv.u32.pop %s417, 12
                %s500 = srem.u32.pop %s417, 12
                // While loop
                $region67: #{forward.3} parent=65 // loop_pre_header
                  _
                $region68: #{forward.3} parent=65 // loop_header
                  %s502 = sphi 0, %s504
                  %p503 = scmp.ge.s32.totalorder %s502, %s499
                  %s507 = sphi 0, %s536
                  %s508 = sphi %s410, %s539
                  %s509 = sphi %s421, %s540
                $region69: #{forward.3} parent=65 // loop_header_branch
                  %506 = sbr.rel (%p503) target = $region73
                $region70: #{forward.3} parent=65 // loop_body
                  %v510 = vld [vmem:[%s508] sm:$0xff]
                  %511 = vst [vmem:[%s509] sm:$0xff] %v510
                  %v512 = vld [vmem:[%s508 + $0x8] sm:$0xff]
                  %513 = vst [vmem:[%s509 + $0x8] sm:$0xff] %v512
                  %v514 = vld [vmem:[%s508 + $0x10] sm:$0xff]
                  %515 = vst [vmem:[%s509 + $0x10] sm:$0xff] %v514
                  %v516 = vld [vmem:[%s508 + $0x18] sm:$0xff]
                  %517 = vst [vmem:[%s509 + $0x18] sm:$0xff] %v516
                  %v518 = vld [vmem:[%s508 + $0x20] sm:$0xff]
                  %519 = vst [vmem:[%s509 + $0x20] sm:$0xff] %v518
                  %v520 = vld [vmem:[%s508 + $0x28] sm:$0xff]
                  %521 = vst [vmem:[%s509 + $0x28] sm:$0xff] %v520
                  %v522 = vld [vmem:[%s508 + $0x30] sm:$0xff]
                  %523 = vst [vmem:[%s509 + $0x30] sm:$0xff] %v522
                  %v524 = vld [vmem:[%s508 + $0x38] sm:$0xff]
                  %525 = vst [vmem:[%s509 + $0x38] sm:$0xff] %v524
                  %v526 = vld [vmem:[%s508 + $0x40] sm:$0xff]
                  %527 = vst [vmem:[%s509 + $0x40] sm:$0xff] %v526
                  %v528 = vld [vmem:[%s508 + $0x48] sm:$0xff]
                  %529 = vst [vmem:[%s509 + $0x48] sm:$0xff] %v528
                  %v530 = vld [vmem:[%s508 + $0x50] sm:$0xff]
                  %531 = vst [vmem:[%s509 + $0x50] sm:$0xff] %v530
                  %v532 = vld [vmem:[%s508 + $0x58] sm:$0xff]
                  %533 = vst [vmem:[%s509 + $0x58] sm:$0xff] %v532
                  %s534 = sadd.s32 1, %s507
                  %p535 = scmp.ge.s32.totalorder %s534, %s499
                  %s536 = scalar_select %p535, 0, %s534
                  %s537 = smul.u32 %s536, 96
                  %s538 = smul.u32 %s536, 96
                  %s539 = scalar_lea.vmem %s410, %s537 [#allocation2]
                  %s540 = scalar_lea.vmem %s421, %s538
                $region71: #{forward.3} parent=65 // loop_footer
                  %s504 = sadd.s32 %s502, 1
                $region72: #{forward.3} parent=65 // loop_footer_branch
                  %501 = sbr.rel target = $region68
                $region73: #{forward.3} parent=65 // loop_exit
                  _
                %s541 = sdiv.u32.pop %s417, 12
                %s542 = srem.u32.pop %s417, 12
                %s543 = smul.u32 %s541, 12
                %s544 = smul.u32 8, %s543
                %s545 = scalar_lea.vmem %s410, %s544 [#allocation2]
                %s546 = smul.u32 8, %s543
                %s547 = scalar_lea.vmem %s421, %s546
                // While loop
                $region74: #{forward.3} parent=65 // loop_pre_header
                  _
                $region75: #{forward.3} parent=65 // loop_header
                  %s549 = sphi 0, %s551
                  %p550 = scmp.ge.s32.totalorder %s549, %s542
                  %s554 = sphi 0, %s561
                  %s555 = sphi %s545, %s564
                  %s556 = sphi %s547, %s565
                $region76: #{forward.3} parent=65 // loop_header_branch
                  %553 = sbr.rel (%p550) target = $region80
                $region77: #{forward.3} parent=65 // loop_body
                  %v557 = vld [vmem:[%s555] sm:$0xff]
                  %558 = vst [vmem:[%s556] sm:$0xff] %v557
                  %s559 = sadd.s32 1, %s554
                  %p560 = scmp.ge.s32.totalorder %s559, %s542
                  %s561 = scalar_select %p560, 0, %s559
                  %s562 = smul.u32 %s561, 8
                  %s563 = smul.u32 %s561, 8
                  %s564 = scalar_lea.vmem %s545, %s562 [#allocation2]
                  %s565 = scalar_lea.vmem %s547, %s563
                $region78: #{forward.3} parent=65 // loop_footer
                  %s551 = sadd.s32 %s549, 1
                $region79: #{forward.3} parent=65 // loop_footer_branch
                  %548 = sbr.rel target = $region75
                $region80: #{forward.3} parent=65 // loop_exit
                  _
              $region66: #{forward.3} parent=43 // pred_fallthru
                _
              // Predicated region
              $region81: #{forward.3} parent=43 // pred_check
                _
              $region82: #{forward.3} parent=43 // pred_check_branch
                %567 = sbr.rel target = $region84
              $region83: #{forward.3} parent=43 // pred_region
                _
              $region84: #{forward.3} parent=43 // pred_fallthru
                _
            $region44: #{forward.3} parent=39 // pred_fallthru
              _
            // Predicated region
            $region45: #{forward.3} parent=39 // pred_check
              _
            $region46: #{forward.3} parent=39 // pred_check_branch
              %428 = sbr.rel target = $region48
            $region47: #{forward.3} parent=39 // pred_region
              %s430 = sdiv.u32.pop %s417, 12
              %s431 = srem.u32.pop %s417, 12
              // While loop
              $region49: #{forward.3} parent=47 // loop_pre_header
                _
              $region50: #{forward.3} parent=47 // loop_header
                %s433 = sphi 0, %s435
                %p434 = scmp.ge.s32.totalorder %s433, %s430
                %s438 = sphi 0, %s467
                %s439 = sphi %s410, %s470
                %s440 = sphi %s421, %s471
              $region51: #{forward.3} parent=47 // loop_header_branch
                %437 = sbr.rel (%p434) target = $region55
              $region52: #{forward.3} parent=47 // loop_body
                %v441 = vld [vmem:[%s439] sm:$0xff]
                %442 = vst [vmem:[%s440] sm:$0xff] %v441
                %v443 = vld [vmem:[%s439 + $0x8] sm:$0xff]
                %444 = vst [vmem:[%s440 + $0x8] sm:$0xff] %v443
                %v445 = vld [vmem:[%s439 + $0x10] sm:$0xff]
                %446 = vst [vmem:[%s440 + $0x10] sm:$0xff] %v445
                %v447 = vld [vmem:[%s439 + $0x18] sm:$0xff]
                %448 = vst [vmem:[%s440 + $0x18] sm:$0xff] %v447
                %v449 = vld [vmem:[%s439 + $0x20] sm:$0xff]
                %450 = vst [vmem:[%s440 + $0x20] sm:$0xff] %v449
                %v451 = vld [vmem:[%s439 + $0x28] sm:$0xff]
                %452 = vst [vmem:[%s440 + $0x28] sm:$0xff] %v451
                %v453 = vld [vmem:[%s439 + $0x30] sm:$0xff]
                %454 = vst [vmem:[%s440 + $0x30] sm:$0xff] %v453
                %v455 = vld [vmem:[%s439 + $0x38] sm:$0xff]
                %456 = vst [vmem:[%s440 + $0x38] sm:$0xff] %v455
                %v457 = vld [vmem:[%s439 + $0x40] sm:$0xff]
                %458 = vst [vmem:[%s440 + $0x40] sm:$0xff] %v457
                %v459 = vld [vmem:[%s439 + $0x48] sm:$0xff]
                %460 = vst [vmem:[%s440 + $0x48] sm:$0xff] %v459
                %v461 = vld [vmem:[%s439 + $0x50] sm:$0xff]
                %462 = vst [vmem:[%s440 + $0x50] sm:$0xff] %v461
                %v463 = vld [vmem:[%s439 + $0x58] sm:$0xff]
                %464 = vst [vmem:[%s440 + $0x58] sm:$0xff] %v463
                %s465 = sadd.s32 1, %s438
                %p466 = scmp.ge.s32.totalorder %s465, %s430
                %s467 = scalar_select %p466, 0, %s465
                %s468 = smul.u32 %s467, 96
                %s469 = smul.u32 %s467, 96
                %s470 = scalar_lea.vmem %s410, %s468 [#allocation2]
                %s471 = scalar_lea.vmem %s421, %s469
              $region53: #{forward.3} parent=47 // loop_footer
                %s435 = sadd.s32 %s433, 1
              $region54: #{forward.3} parent=47 // loop_footer_branch
                %432 = sbr.rel target = $region50
              $region55: #{forward.3} parent=47 // loop_exit
                _
              %s472 = sdiv.u32.pop %s417, 12
              %s473 = srem.u32.pop %s417, 12
              %s474 = smul.u32 %s472, 12
              %s475 = smul.u32 8, %s474
              %s476 = scalar_lea.vmem %s410, %s475 [#allocation2]
              %s477 = smul.u32 8, %s474
              %s478 = scalar_lea.vmem %s421, %s477
              // While loop
              $region56: #{forward.3} parent=47 // loop_pre_header
                _
              $region57: #{forward.3} parent=47 // loop_header
                %s480 = sphi 0, %s482
                %p481 = scmp.ge.s32.totalorder %s480, %s473
                %s485 = sphi 0, %s492
                %s486 = sphi %s476, %s495
                %s487 = sphi %s478, %s496
              $region58: #{forward.3} parent=47 // loop_header_branch
                %484 = sbr.rel (%p481) target = $region62
              $region59: #{forward.3} parent=47 // loop_body
                %v488 = vld [vmem:[%s486] sm:$0xff]
                %489 = vst [vmem:[%s487] sm:$0xff] %v488
                %s490 = sadd.s32 1, %s485
                %p491 = scmp.ge.s32.totalorder %s490, %s473
                %s492 = scalar_select %p491, 0, %s490
                %s493 = smul.u32 %s492, 8
                %s494 = smul.u32 %s492, 8
                %s495 = scalar_lea.vmem %s476, %s493 [#allocation2]
                %s496 = scalar_lea.vmem %s478, %s494
              $region60: #{forward.3} parent=47 // loop_footer
                %s482 = sadd.s32 %s480, 1
              $region61: #{forward.3} parent=47 // loop_footer_branch
                %479 = sbr.rel target = $region57
              $region62: #{forward.3} parent=47 // loop_exit
                _
            $region48: #{forward.3} parent=39 // pred_fallthru
              _
          $region40: #{forward.3} parent=35 // pred_fallthru
            _
          %568 = vnop
        $region36: #{forward.3} parent=31 // pred_fallthru
          _
      $region32: #{forward.3} parent=5 // pred_fallthru
        _
      %p569 = scmp.le.s32.totalorder 2, %s9
      // Predicated region
      $region85: #{forward.3} parent=5 // pred_check
        %p570 = pneg %p569
      $region86: #{forward.3} parent=5 // pred_check_branch
        %572 = sbr.rel (%p570) target = $region88
      $region87: #{forward.3} parent=5 // pred_region
        %s573 = ssub.s32 %s9, 2
        // Predicated region
        $region89: #{forward.3} parent=87 // pred_check
          %p574 = pneg %p106
        $region90: #{forward.3} parent=87 // pred_check_branch
          %576 = sbr.rel (%p574) target = $region92
        $region91: #{forward.3} parent=87 // pred_region
          %s577 = sand.u32 %s91, 1
          %s578 = sand.u32 %s91, 1
          %s579 = smul.addr %s578, 96
          %s580 = scalar_lea.vmem [#allocation2], %s579
        $region92: #{forward.3} parent=87 // pred_fallthru
          _
      $region88: #{forward.3} parent=5 // pred_fallthru
        _
    $region6: #{forward.3} parent=1 // loop_footer
      %s13 = sadd.s32 1, %s9
    $region7: #{forward.3} parent=1 // loop_footer_branch
      %8 = sbr.rel target = $region3
    $region8: #{forward.3} parent=1 // loop_exit
      _

// kernel: forward.5
$region0: #{forward.5}
  #allocation0 [shape = 'u32[]', space=smem, size = 0x4, offset = 0x4, fixed_abs, tag = 'smem constant byte address 0x4 - core index']
  #allocation1 [shape = 'u32[144,128]{1,0:T(1,128)}', space=vmem, size = 0x12000, scoped, tag = 'internal scratch']
  #allocation2 [shape = 'f32[2,32]{1,0:T(2,128)}', space=vmem, size = 0x400, scoped, tag = 'scratch operand']
  %s0 = inlined_call_operand.vmem [shape: f32[2,1536], index: 0, kind: input, shape index: {}]
  %s1 = inlined_call_operand.vmem [shape: f32[1536,32], index: 1, kind: input, shape index: {}]
  %s2 = inlined_call_operand.vmem [shape: f32[1,32], index: 2, kind: input, shape index: {}]
  %s3 = inlined_call_operand.vmem [shape: f32[1,32], index: 3, kind: input, shape index: {}]
  %s4 = inlined_call_operand.vmem [shape: f32[1,32], index: 4, kind: input, shape index: {}]
  %s5 = inlined_call_operand.hbm [shape: f32[2,32], index: 5, kind: output, shape index: {}]
  %s6 = sld [smem:[#allocation0]]
  $region38: #{forward.5} parent=0
    _
  %s8 = ssub.s32 1, %s6
  %s9 = scalar_select 0, %s8, %s6
  $region1: #{forward.5} parent=0
    #allocation3 [shape = 'u8[1024]{0}', space=vmem, size = 0x400, scoped, tag = 'output window, operand 0, single buffered']
    #allocation4 [shape = 's32[1]{0}', space=sflag, size = 0x4, scoped, tag = 'scoped memory for forward.5']
    %10 = vsyncpa [#allocation4], 0
    // Predicated region
    $region2: #{forward.5} parent=1 // pred_check
      _
    $region3: #{forward.5} parent=1 // pred_check_branch
      %12 = sbr.rel (0) target = $region5
    $region4: #{forward.5} parent=1 // pred_region
      _
    $region5: #{forward.5} parent=1 // pred_fallthru
      _
    // Predicated region
    $region6: #{forward.5} parent=1 // pred_check
      _
    $region7: #{forward.5} parent=1 // pred_check_branch
      %14 = sbr.rel (0) target = $region9
    $region8: #{forward.5} parent=1 // pred_region
      _
    $region9: #{forward.5} parent=1 // pred_fallthru
      _
    // Predicated region
    $region10: #{forward.5} parent=1 // pred_check
      _
    $region11: #{forward.5} parent=1 // pred_check_branch
      %16 = sbr.rel (0) target = $region13
    $region12: #{forward.5} parent=1 // pred_region
      _
    $region13: #{forward.5} parent=1 // pred_fallthru
      _
    // Predicated region
    $region14: #{forward.5} parent=1 // pred_check
      _
    $region15: #{forward.5} parent=1 // pred_check_branch
      %18 = sbr.rel (0) target = $region17
    $region16: #{forward.5} parent=1 // pred_region
      _
    $region17: #{forward.5} parent=1 // pred_fallthru
      _
    // Predicated region
    $region18: #{forward.5} parent=1 // pred_check
      _
    $region19: #{forward.5} parent=1 // pred_check_branch
      %20 = sbr.rel (0) target = $region21
    $region20: #{forward.5} parent=1 // pred_region
      _
    $region21: #{forward.5} parent=1 // pred_fallthru
      _
    %p21 = scmp.eq.s32.totalorder 0, 0
    // Predicated region
    $region22: #{forward.5} parent=1 // pred_check
      %p22 = pneg %p21
    $region23: #{forward.5} parent=1 // pred_check_branch
      %24 = sbr.rel (%p22) target = $region25
    $region24: #{forward.5} parent=1 // pred_region
      %vm25 = vcmask 254976
      %26 = vst.msk [vmem:[#allocation2] sm:$0x3] %vm25, 0.0
    $region25: #{forward.5} parent=1 // pred_fallthru
      _
    %v27 = vld [vmem:[#allocation2] sm:$0x3]
    %v28 = vld [vmem:[%s0] sm:$0xff]
    %v29 = vld [vmem:[%s0 + $0x8] sm:$0xff]
    %v30 = vld [vmem:[%s0 + $0x10] sm:$0xff]
    %v31 = vld [vmem:[%s1] sm:$0xff]
    %v32 = vld [vmem:[%s1 + $0x8] sm:$0xff]
    %v33 = vld [vmem:[%s1 + $0x10] sm:$0xff]
    %v34 = vld [vmem:[%s1 + $0x18] sm:$0xff]
    %v35 = vld [vmem:[%s1 + $0x20] sm:$0xff]
    %v36 = vld [vmem:[%s1 + $0x28] sm:$0xff]
    %v37 = vld [vmem:[%s1 + $0x30] sm:$0xff]
    %v38 = vld [vmem:[%s1 + $0x38] sm:$0xff]
    %v39 = vld [vmem:[%s1 + $0x40] sm:$0xff]
    %v40 = vld [vmem:[%s1 + $0x48] sm:$0xff]
    %v41 = vld [vmem:[%s1 + $0x50] sm:$0xff]
    %v42 = vld [vmem:[%s1 + $0x58] sm:$0xff]
    %v43 = vld [vmem:[%s1 + $0x60] sm:$0xff]
    %v44 = vld [vmem:[%s1 + $0x68] sm:$0xff]
    %v45 = vld [vmem:[%s1 + $0x70] sm:$0xff]
    %v46 = vld [vmem:[%s1 + $0x78] sm:$0xff]
    %v47 = vld [vmem:[%s1 + $0x80] sm:$0xff]
    %v48 = vld [vmem:[%s1 + $0x88] sm:$0xff]
    %v49 = vld [vmem:[%s1 + $0x90] sm:$0xff]
    %v50 = vld [vmem:[%s1 + $0x98] sm:$0xff]
    %v51 = vld [vmem:[%s1 + $0xa0] sm:$0xff]
    %v52 = vld [vmem:[%s1 + $0xa8] sm:$0xff]
    %v53 = vld [vmem:[%s1 + $0xb0] sm:$0xff]
    %v54 = vld [vmem:[%s1 + $0xb8] sm:$0xff]
    %v55 = vld [vmem:[%s1 + $0xc0] sm:$0xff]
    %v56 = vld [vmem:[%s1 + $0xc8] sm:$0xff]
    %v57 = vld [vmem:[%s1 + $0xd0] sm:$0xff]
    %v58 = vld [vmem:[%s1 + $0xd8] sm:$0xff]
    %v59 = vld [vmem:[%s1 + $0xe0] sm:$0xff]
    %v60 = vld [vmem:[%s1 + $0xe8] sm:$0xff]
    %v61 = vld [vmem:[%s1 + $0xf0] sm:$0xff]
    %v62 = vld [vmem:[%s1 + $0xf8] sm:$0xff]
    %v63 = vld [vmem:[%s1 + $0x100] sm:$0xff]
    %v64 = vld [vmem:[%s1 + $0x108] sm:$0xff]
    %v65 = vld [vmem:[%s1 + $0x110] sm:$0xff]
    %v66 = vld [vmem:[%s1 + $0x118] sm:$0xff]
    %v67 = vld [vmem:[%s1 + $0x120] sm:$0xff]
    %v68 = vld [vmem:[%s1 + $0x128] sm:$0xff]
    %v69 = vld [vmem:[%s1 + $0x130] sm:$0xff]
    %v70 = vld [vmem:[%s1 + $0x138] sm:$0xff]
    %v71 = vld [vmem:[%s1 + $0x140] sm:$0xff]
    %v72 = vld [vmem:[%s1 + $0x148] sm:$0xff]
    %v73 = vld [vmem:[%s1 + $0x150] sm:$0xff]
    %v74 = vld [vmem:[%s1 + $0x158] sm:$0xff]
    %v75 = vld [vmem:[%s1 + $0x160] sm:$0xff]
    %v76 = vld [vmem:[%s1 + $0x168] sm:$0xff]
    %v77 = vld [vmem:[%s1 + $0x170] sm:$0xff]
    %v78 = vld [vmem:[%s1 + $0x178] sm:$0xff]
    %v79 = vld [vmem:[%s1 + $0x180] sm:$0xff]
    %v80 = vld [vmem:[%s1 + $0x188] sm:$0xff]
    %v81 = vld [vmem:[%s1 + $0x190] sm:$0xff]
    %v82 = vld [vmem:[%s1 + $0x198] sm:$0xff]
    %v83 = vld [vmem:[%s1 + $0x1a0] sm:$0xff]
    %v84 = vld [vmem:[%s1 + $0x1a8] sm:$0xff]
    %v85 = vld [vmem:[%s1 + $0x1b0] sm:$0xff]
    %v86 = vld [vmem:[%s1 + $0x1b8] sm:$0xff]
    %v87 = vld [vmem:[%s1 + $0x1c0] sm:$0xff]
    %v88 = vld [vmem:[%s1 + $0x1c8] sm:$0xff]
    %v89 = vld [vmem:[%s1 + $0x1d0] sm:$0xff]
    %v90 = vld [vmem:[%s1 + $0x1d8] sm:$0xff]
    %v91 = vld [vmem:[%s1 + $0x1e0] sm:$0xff]
    %v92 = vld [vmem:[%s1 + $0x1e8] sm:$0xff]
    %v93 = vld [vmem:[%s1 + $0x1f0] sm:$0xff]
    %v94 = vld [vmem:[%s1 + $0x1f8] sm:$0xff]
    %v95 = vld [vmem:[%s1 + $0x200] sm:$0xff]
    %v96 = vld [vmem:[%s1 + $0x208] sm:$0xff]
    %v97 = vld [vmem:[%s1 + $0x210] sm:$0xff]
    %v98 = vld [vmem:[%s1 + $0x218] sm:$0xff]
    %v99 = vld [vmem:[%s1 + $0x220] sm:$0xff]
    %v100 = vld [vmem:[%s1 + $0x228] sm:$0xff]
    %v101 = vld [vmem:[%s1 + $0x230] sm:$0xff]
    %v102 = vld [vmem:[%s1 + $0x238] sm:$0xff]
    %v103 = vld [vmem:[%s1 + $0x240] sm:$0xff]
    %v104 = vld [vmem:[%s1 + $0x248] sm:$0xff]
    %v105 = vld [vmem:[%s1 + $0x250] sm:$0xff]
    %v106 = vld [vmem:[%s1 + $0x258] sm:$0xff]
    %v107 = vld [vmem:[%s1 + $0x260] sm:$0xff]
    %v108 = vld [vmem:[%s1 + $0x268] sm:$0xff]
    %v109 = vld [vmem:[%s1 + $0x270] sm:$0xff]
    %v110 = vld [vmem:[%s1 + $0x278] sm:$0xff]
    %v111 = vld [vmem:[%s1 + $0x280] sm:$0xff]
    %v112 = vld [vmem:[%s1 + $0x288] sm:$0xff]
    %v113 = vld [vmem:[%s1 + $0x290] sm:$0xff]
    %v114 = vld [vmem:[%s1 + $0x298] sm:$0xff]
    %v115 = vld [vmem:[%s1 + $0x2a0] sm:$0xff]
    %v116 = vld [vmem:[%s1 + $0x2a8] sm:$0xff]
    %v117 = vld [vmem:[%s1 + $0x2b0] sm:$0xff]
    %v118 = vld [vmem:[%s1 + $0x2b8] sm:$0xff]
    %v119 = vld [vmem:[%s1 + $0x2c0] sm:$0xff]
    %v120 = vld [vmem:[%s1 + $0x2c8] sm:$0xff]
    %v121 = vld [vmem:[%s1 + $0x2d0] sm:$0xff]
    %v122 = vld [vmem:[%s1 + $0x2d8] sm:$0xff]
    %v123 = vld [vmem:[%s1 + $0x2e0] sm:$0xff]
    %v124 = vld [vmem:[%s1 + $0x2e8] sm:$0xff]
    %v125 = vld [vmem:[%s1 + $0x2f0] sm:$0xff]
    %v126 = vld [vmem:[%s1 + $0x2f8] sm:$0xff]
    %v127 = vld [vmem:[%s1 + $0x300] sm:$0xff]
    %v128 = vld [vmem:[%s1 + $0x308] sm:$0xff]
    %v129 = vld [vmem:[%s1 + $0x310] sm:$0xff]
    %v130 = vld [vmem:[%s1 + $0x318] sm:$0xff]
    %v131 = vld [vmem:[%s1 + $0x320] sm:$0xff]
    %v132 = vld [vmem:[%s1 + $0x328] sm:$0xff]
    %v133 = vld [vmem:[%s1 + $0x330] sm:$0xff]
    %v134 = vld [vmem:[%s1 + $0x338] sm:$0xff]
    %v135 = vld [vmem:[%s1 + $0x340] sm:$0xff]
    %v136 = vld [vmem:[%s1 + $0x348] sm:$0xff]
    %v137 = vld [vmem:[%s1 + $0x350] sm:$0xff]
    %v138 = vld [vmem:[%s1 + $0x358] sm:$0xff]
    %v139 = vld [vmem:[%s1 + $0x360] sm:$0xff]
    %v140 = vld [vmem:[%s1 + $0x368] sm:$0xff]
    %v141 = vld [vmem:[%s1 + $0x370] sm:$0xff]
    %v142 = vld [vmem:[%s1 + $0x378] sm:$0xff]
    %v143 = vld [vmem:[%s1 + $0x380] sm:$0xff]
    %v144 = vld [vmem:[%s1 + $0x388] sm:$0xff]
    %v145 = vld [vmem:[%s1 + $0x390] sm:$0xff]
    %v146 = vld [vmem:[%s1 + $0x398] sm:$0xff]
    %v147 = vld [vmem:[%s1 + $0x3a0] sm:$0xff]
    %v148 = vld [vmem:[%s1 + $0x3a8] sm:$0xff]
    %v149 = vld [vmem:[%s1 + $0x3b0] sm:$0xff]
    %v150 = vld [vmem:[%s1 + $0x3b8] sm:$0xff]
    %v151 = vld [vmem:[%s1 + $0x3c0] sm:$0xff]
    %v152 = vld [vmem:[%s1 + $0x3c8] sm:$0xff]
    %v153 = vld [vmem:[%s1 + $0x3d0] sm:$0xff]
    %v154 = vld [vmem:[%s1 + $0x3d8] sm:$0xff]
    %v155 = vld [vmem:[%s1 + $0x3e0] sm:$0xff]
    %v156 = vld [vmem:[%s1 + $0x3e8] sm:$0xff]
    %v157 = vld [vmem:[%s1 + $0x3f0] sm:$0xff]
    %v158 = vld [vmem:[%s1 + $0x3f8] sm:$0xff]
    %v159 = vld [vmem:[%s1 + $0x400] sm:$0xff]
    %v160 = vld [vmem:[%s1 + $0x408] sm:$0xff]
    %v161 = vld [vmem:[%s1 + $0x410] sm:$0xff]
    %v162 = vld [vmem:[%s1 + $0x418] sm:$0xff]
    %v163 = vld [vmem:[%s1 + $0x420] sm:$0xff]
    %v164 = vld [vmem:[%s1 + $0x428] sm:$0xff]
    %v165 = vld [vmem:[%s1 + $0x430] sm:$0xff]
    %v166 = vld [vmem:[%s1 + $0x438] sm:$0xff]
    %v167 = vld [vmem:[%s1 + $0x440] sm:$0xff]
    %v168 = vld [vmem:[%s1 + $0x448] sm:$0xff]
    %v169 = vld [vmem:[%s1 + $0x450] sm:$0xff]
    %v170 = vld [vmem:[%s1 + $0x458] sm:$0xff]
    %v171 = vld [vmem:[%s1 + $0x460] sm:$0xff]
    %v172 = vld [vmem:[%s1 + $0x468] sm:$0xff]
    %v173 = vld [vmem:[%s1 + $0x470] sm:$0xff]
    %v174 = vld [vmem:[%s1 + $0x478] sm:$0xff]
    %v175 = vld [vmem:[%s1 + $0x480] sm:$0xff]
    %v176 = vld [vmem:[%s1 + $0x488] sm:$0xff]
    %v177 = vld [vmem:[%s1 + $0x490] sm:$0xff]
    %v178 = vld [vmem:[%s1 + $0x498] sm:$0xff]
    %v179 = vld [vmem:[%s1 + $0x4a0] sm:$0xff]
    %v180 = vld [vmem:[%s1 + $0x4a8] sm:$0xff]
    %v181 = vld [vmem:[%s1 + $0x4b0] sm:$0xff]
    %v182 = vld [vmem:[%s1 + $0x4b8] sm:$0xff]
    %v183 = vld [vmem:[%s1 + $0x4c0] sm:$0xff]
    %v184 = vld [vmem:[%s1 + $0x4c8] sm:$0xff]
    %v185 = vld [vmem:[%s1 + $0x4d0] sm:$0xff]
    %v186 = vld [vmem:[%s1 + $0x4d8] sm:$0xff]
    %v187 = vld [vmem:[%s1 + $0x4e0] sm:$0xff]
    %v188 = vld [vmem:[%s1 + $0x4e8] sm:$0xff]
    %v189 = vld [vmem:[%s1 + $0x4f0] sm:$0xff]
    %v190 = vld [vmem:[%s1 + $0x4f8] sm:$0xff]
    %v191 = vld [vmem:[%s1 + $0x500] sm:$0xff]
    %v192 = vld [vmem:[%s1 + $0x508] sm:$0xff]
    %v193 = vld [vmem:[%s1 + $0x510] sm:$0xff]
    %v194 = vld [vmem:[%s1 + $0x518] sm:$0xff]
    %v195 = vld [vmem:[%s1 + $0x520] sm:$0xff]
    %v196 = vld [vmem:[%s1 + $0x528] sm:$0xff]
    %v197 = vld [vmem:[%s1 + $0x530] sm:$0xff]
    %v198 = vld [vmem:[%s1 + $0x538] sm:$0xff]
    %v199 = vld [vmem:[%s1 + $0x540] sm:$0xff]
    %v200 = vld [vmem:[%s1 + $0x548] sm:$0xff]
    %v201 = vld [vmem:[%s1 + $0x550] sm:$0xff]
    %v202 = vld [vmem:[%s1 + $0x558] sm:$0xff]
    %v203 = vld [vmem:[%s1 + $0x560] sm:$0xff]
    %v204 = vld [vmem:[%s1 + $0x568] sm:$0xff]
    %v205 = vld [vmem:[%s1 + $0x570] sm:$0xff]
    %v206 = vld [vmem:[%s1 + $0x578] sm:$0xff]
    %v207 = vld [vmem:[%s1 + $0x580] sm:$0xff]
    %v208 = vld [vmem:[%s1 + $0x588] sm:$0xff]
    %v209 = vld [vmem:[%s1 + $0x590] sm:$0xff]
    %v210 = vld [vmem:[%s1 + $0x598] sm:$0xff]
    %v211 = vld [vmem:[%s1 + $0x5a0] sm:$0xff]
    %v212 = vld [vmem:[%s1 + $0x5a8] sm:$0xff]
    %v213 = vld [vmem:[%s1 + $0x5b0] sm:$0xff]
    %v214 = vld [vmem:[%s1 + $0x5b8] sm:$0xff]
    %v215 = vld [vmem:[%s1 + $0x5c0] sm:$0xff]
    %v216 = vld [vmem:[%s1 + $0x5c8] sm:$0xff]
    %v217 = vld [vmem:[%s1 + $0x5d0] sm:$0xff]
    %v218 = vld [vmem:[%s1 + $0x5d8] sm:$0xff]
    %v219 = vld [vmem:[%s1 + $0x5e0] sm:$0xff]
    %v220 = vld [vmem:[%s1 + $0x5e8] sm:$0xff]
    %v221 = vld [vmem:[%s1 + $0x5f0] sm:$0xff]
    %v222 = vld [vmem:[%s1 + $0x5f8] sm:$0xff]
    %v226 = vcombine.high %v28, %v28
    %v228 = vunpack.c.l.s4 1983009808
    %v229 = vunpack.c.0.s8 %v228
    %v230 = vlaneseq
    %v231 = vshrl.u32 %v230, 7
    %v232 = vsub.s32 %v229, %v231
    %v233 = vrot.slane %v28, %v232
    %v235 = vunpack.c.l.s4 1983009808
    %v236 = vunpack.c.0.s8 %v235
    %v237 = vlaneseq
    %v238 = vshrl.u32 %v237, 7
    %v239 = vsub.s32 %v236, %v238
    %v240 = vrot.slane %v226, %v239
    %v241 = vcombine.high %v233, %v233
    %v242 = vcombine.high %v240, %v240
    %v243 = vcombine.high %v29, %v29
    %v245 = vunpack.c.l.s4 1983009808
    %v246 = vunpack.c.0.s8 %v245
    %v247 = vlaneseq
    %v248 = vshrl.u32 %v247, 7
    %v249 = vsub.s32 %v246, %v248
    %v250 = vrot.slane %v29, %v249
    %v252 = vunpack.c.l.s4 1983009808
    %v253 = vunpack.c.0.s8 %v252
    %v254 = vlaneseq
    %v255 = vshrl.u32 %v254, 7
    %v256 = vsub.s32 %v253, %v255
    %v257 = vrot.slane %v243, %v256
    %v258 = vcombine.high %v250, %v250
    %v259 = vcombine.high %v257, %v257
    %v260 = vcombine.high %v30, %v30
    %v262 = vunpack.c.l.s4 1983009808
    %v263 = vunpack.c.0.s8 %v262
    %v264 = vlaneseq
    %v265 = vshrl.u32 %v264, 7
    %v266 = vsub.s32 %v263, %v265
    %v267 = vrot.slane %v30, %v266
    %v269 = vunpack.c.l.s4 1983009808
    %v270 = vunpack.c.0.s8 %v269
    %v271 = vlaneseq
    %v272 = vshrl.u32 %v271, 7
    %v273 = vsub.s32 %v270, %v272
    %v274 = vrot.slane %v260, %v273
    %v275 = vcombine.high %v267, %v267
    %v276 = vcombine.high %v274, %v274
    %289 = vmatprep.subr.mxu0 0.0
    %290 = vmatpush1.msra.mxu0 %v31
    %291 = vmatprep.subr.mxu0 0.0
    %292 = vmatpush1.msra.mxu0 %v32
    %293 = vmatprep.subr.mxu0 0.0
    %294 = vmatpush1.msra.mxu0 %v33
    %295 = vmatprep.subr.mxu0 0.0
    %296 = vmatpush1.msra.mxu0 %v34
    %297 = vmatprep.subr.mxu0 0.0
    %298 = vmatpush1.msra.mxu0 %v35
    %299 = vmatprep.subr.mxu0 0.0
    %300 = vmatpush1.msra.mxu0 %v36
    %301 = vmatprep.subr.mxu0 0.0
    %302 = vmatpush1.msra.mxu0 %v37
    %303 = vmatprep.subr.mxu0 0.0
    %304 = vmatpush1.msra.mxu0 %v38
    %305 = vmatprep.subr.mxu0 0.0
    %306 = vmatpush1.msra.mxu0 %v39
    %307 = vmatprep.subr.mxu0 0.0
    %308 = vmatpush1.msra.mxu0 %v40
    %309 = vmatprep.subr.mxu0 0.0
    %310 = vmatpush1.msra.mxu0 %v41
    %311 = vmatprep.subr.mxu0 0.0
    %312 = vmatpush1.msra.mxu0 %v42
    %313 = vmatprep.subr.mxu0 0.0
    %314 = vmatpush1.msra.mxu0 %v43
    %315 = vmatprep.subr.mxu0 0.0
    %316 = vmatpush1.msra.mxu0 %v44
    %317 = vmatprep.subr.mxu0 0.0
    %318 = vmatpush1.msra.mxu0 %v45
    %319 = vmatprep.subr.mxu0 0.0
    %320 = vmatpush1.msra.mxu0 %v46
    %321 = vmatprep.subr.mxu0 0.0
    %322 = vmatpush1.msra.mxu0 %v47
    %323 = vmatprep.subr.mxu0 0.0
    %324 = vmatpush1.msra.mxu0 %v48
    %325 = vmatprep.subr.mxu0 0.0
    %326 = vmatpush1.msra.mxu0 %v49
    %327 = vmatprep.subr.mxu0 0.0
    %328 = vmatpush1.msra.mxu0 %v50
    %329 = vmatprep.subr.mxu0 0.0
    %330 = vmatpush1.msra.mxu0 %v51
    %331 = vmatprep.subr.mxu0 0.0
    %332 = vmatpush1.msra.mxu0 %v52
    %333 = vmatprep.subr.mxu0 0.0
    %334 = vmatpush1.msra.mxu0 %v53
    %335 = vmatprep.subr.mxu0 0.0
    %336 = vmatpush1.msra.mxu0 %v54
    %337 = vmatprep.subr.mxu0 0.0
    %338 = vmatpush1.msra.mxu0 %v55
    %339 = vmatprep.subr.mxu0 0.0
    %340 = vmatpush1.msra.mxu0 %v56
    %341 = vmatprep.subr.mxu0 0.0
    %342 = vmatpush1.msra.mxu0 %v57
    %343 = vmatprep.subr.mxu0 0.0
    %344 = vmatpush1.msra.mxu0 %v58
    %345 = vmatprep.subr.mxu0 0.0
    %346 = vmatpush1.msra.mxu0 %v59
    %347 = vmatprep.subr.mxu0 0.0
    %348 = vmatpush1.msra.mxu0 %v60
    %349 = vmatprep.subr.mxu0 0.0
    %350 = vmatpush1.msra.mxu0 %v61
    %351 = vmatprep.subr.mxu0 0.0
    %352 = vmatpush1.msra.mxu0 %v62
    %353 = vmatprep.mubr.f32.mxu0 %v241
    %354 = vmatmul.mubr.f32.gmra.mrb[0].mxu0 %v233
    %v355 = vpop.f32.mrb[0].mxu0
    %v356 = vadd.f32 0.0, %v355
    %v357 = vpop.f32.mrb[0].mxu0
    %358 = vdwg.mxu0
    %359 = vmatprep.subr.mxu0 0.0
    %360 = vmatpush1.msra.mxu0 %v63
    %361 = vmatprep.subr.mxu0 0.0
    %362 = vmatpush1.msra.mxu0 %v64
    %363 = vmatprep.subr.mxu0 0.0
    %364 = vmatpush1.msra.mxu0 %v65
    %365 = vmatprep.subr.mxu0 0.0
    %366 = vmatpush1.msra.mxu0 %v66
    %367 = vmatprep.subr.mxu0 0.0
    %368 = vmatpush1.msra.mxu0 %v67
    %369 = vmatprep.subr.mxu0 0.0
    %370 = vmatpush1.msra.mxu0 %v68
    %371 = vmatprep.subr.mxu0 0.0
    %372 = vmatpush1.msra.mxu0 %v69
    %373 = vmatprep.subr.mxu0 0.0
    %374 = vmatpush1.msra.mxu0 %v70
    %375 = vmatprep.subr.mxu0 0.0
    %376 = vmatpush1.msra.mxu0 %v71
    %377 = vmatprep.subr.mxu0 0.0
    %378 = vmatpush1.msra.mxu0 %v72
    %379 = vmatprep.subr.mxu0 0.0
    %380 = vmatpush1.msra.mxu0 %v73
    %381 = vmatprep.subr.mxu0 0.0
    %382 = vmatpush1.msra.mxu0 %v74
    %383 = vmatprep.subr.mxu0 0.0
    %384 = vmatpush1.msra.mxu0 %v75
    %385 = vmatprep.subr.mxu0 0.0
    %386 = vmatpush1.msra.mxu0 %v76
    %387 = vmatprep.subr.mxu0 0.0
    %388 = vmatpush1.msra.mxu0 %v77
    %389 = vmatprep.subr.mxu0 0.0
    %390 = vmatpush1.msra.mxu0 %v78
    %391 = vmatprep.subr.mxu0 0.0
    %392 = vmatpush1.msra.mxu0 %v79
    %393 = vmatprep.subr.mxu0 0.0
    %394 = vmatpush1.msra.mxu0 %v80
    %395 = vmatprep.subr.mxu0 0.0
    %396 = vmatpush1.msra.mxu0 %v81
    %397 = vmatprep.subr.mxu0 0.0
    %398 = vmatpush1.msra.mxu0 %v82
    %399 = vmatprep.subr.mxu0 0.0
    %400 = vmatpush1.msra.mxu0 %v83
    %401 = vmatprep.subr.mxu0 0.0
    %402 = vmatpush1.msra.mxu0 %v84
    %403 = vmatprep.subr.mxu0 0.0
    %404 = vmatpush1.msra.mxu0 %v85
    %405 = vmatprep.subr.mxu0 0.0
    %406 = vmatpush1.msra.mxu0 %v86
    %407 = vmatprep.subr.mxu0 0.0
    %408 = vmatpush1.msra.mxu0 %v87
    %409 = vmatprep.subr.mxu0 0.0
    %410 = vmatpush1.msra.mxu0 %v88
    %411 = vmatprep.subr.mxu0 0.0
    %412 = vmatpush1.msra.mxu0 %v89
    %413 = vmatprep.subr.mxu0 0.0
    %414 = vmatpush1.msra.mxu0 %v90
    %415 = vmatprep.subr.mxu0 0.0
    %416 = vmatpush1.msra.mxu0 %v91
    %417 = vmatprep.subr.mxu0 0.0
    %418 = vmatpush1.msra.mxu0 %v92
    %419 = vmatprep.subr.mxu0 0.0
    %420 = vmatpush1.msra.mxu0 %v93
    %421 = vmatprep.subr.mxu0 0.0
    %422 = vmatpush1.msra.mxu0 %v94
    %423 = vmatprep.mubr.f32.mxu0 %v242
    %424 = vmatmul.mubr.f32.gmra.mrb[0].mxu0 %v240
    %v425 = vpop.f32.mrb[0].mxu0
    %v426 = vadd.f32 %v356, %v425
    %v427 = vpop.f32.mrb[0].mxu0
    %428 = vdwg.mxu0
    %429 = vmatprep.subr.mxu0 0.0
    %430 = vmatpush1.msra.mxu0 %v95
    %431 = vmatprep.subr.mxu0 0.0
    %432 = vmatpush1.msra.mxu0 %v96
    %433 = vmatprep.subr.mxu0 0.0
    %434 = vmatpush1.msra.mxu0 %v97
    %435 = vmatprep.subr.mxu0 0.0
    %436 = vmatpush1.msra.mxu0 %v98
    %437 = vmatprep.subr.mxu0 0.0
    %438 = vmatpush1.msra.mxu0 %v99
    %439 = vmatprep.subr.mxu0 0.0
    %440 = vmatpush1.msra.mxu0 %v100
    %441 = vmatprep.subr.mxu0 0.0
    %442 = vmatpush1.msra.mxu0 %v101
    %443 = vmatprep.subr.mxu0 0.0
    %444 = vmatpush1.msra.mxu0 %v102
    %445 = vmatprep.subr.mxu0 0.0
    %446 = vmatpush1.msra.mxu0 %v103
    %447 = vmatprep.subr.mxu0 0.0
    %448 = vmatpush1.msra.mxu0 %v104
    %449 = vmatprep.subr.mxu0 0.0
    %450 = vmatpush1.msra.mxu0 %v105
    %451 = vmatprep.subr.mxu0 0.0
    %452 = vmatpush1.msra.mxu0 %v106
    %453 = vmatprep.subr.mxu0 0.0
    %454 = vmatpush1.msra.mxu0 %v107
    %455 = vmatprep.subr.mxu0 0.0
    %456 = vmatpush1.msra.mxu0 %v108
    %457 = vmatprep.subr.mxu0 0.0
    %458 = vmatpush1.msra.mxu0 %v109
    %459 = vmatprep.subr.mxu0 0.0
    %460 = vmatpush1.msra.mxu0 %v110
    %461 = vmatprep.subr.mxu0 0.0
    %462 = vmatpush1.msra.mxu0 %v111
    %463 = vmatprep.subr.mxu0 0.0
    %464 = vmatpush1.msra.mxu0 %v112
    %465 = vmatprep.subr.mxu0 0.0
    %466 = vmatpush1.msra.mxu0 %v113
    %467 = vmatprep.subr.mxu0 0.0
    %468 = vmatpush1.msra.mxu0 %v114
    %469 = vmatprep.subr.mxu0 0.0
    %470 = vmatpush1.msra.mxu0 %v115
    %471 = vmatprep.subr.mxu0 0.0
    %472 = vmatpush1.msra.mxu0 %v116
    %473 = vmatprep.subr.mxu0 0.0
    %474 = vmatpush1.msra.mxu0 %v117
    %475 = vmatprep.subr.mxu0 0.0
    %476 = vmatpush1.msra.mxu0 %v118
    %477 = vmatprep.subr.mxu0 0.0
    %478 = vmatpush1.msra.mxu0 %v119
    %479 = vmatprep.subr.mxu0 0.0
    %480 = vmatpush1.msra.mxu0 %v120
    %481 = vmatprep.subr.mxu0 0.0
    %482 = vmatpush1.msra.mxu0 %v121
    %483 = vmatprep.subr.mxu0 0.0
    %484 = vmatpush1.msra.mxu0 %v122
    %485 = vmatprep.subr.mxu0 0.0
    %486 = vmatpush1.msra.mxu0 %v123
    %487 = vmatprep.subr.mxu0 0.0
    %488 = vmatpush1.msra.mxu0 %v124
    %489 = vmatprep.subr.mxu0 0.0
    %490 = vmatpush1.msra.mxu0 %v125
    %491 = vmatprep.subr.mxu0 0.0
    %492 = vmatpush1.msra.mxu0 %v126
    %493 = vmatprep.mubr.f32.mxu0 %v258
    %494 = vmatmul.mubr.f32.gmra.mrb[0].mxu0 %v250
    %v495 = vpop.f32.mrb[0].mxu0
    %v496 = vadd.f32 %v426, %v495
    %v497 = vpop.f32.mrb[0].mxu0
    %498 = vdwg.mxu0
    %499 = vmatprep.subr.mxu0 0.0
    %500 = vmatpush1.msra.mxu0 %v127
    %501 = vmatprep.subr.mxu0 0.0
    %502 = vmatpush1.msra.mxu0 %v128
    %503 = vmatprep.subr.mxu0 0.0
    %504 = vmatpush1.msra.mxu0 %v129
    %505 = vmatprep.subr.mxu0 0.0
    %506 = vmatpush1.msra.mxu0 %v130
    %507 = vmatprep.subr.mxu0 0.0
    %508 = vmatpush1.msra.mxu0 %v131
    %509 = vmatprep.subr.mxu0 0.0
    %510 = vmatpush1.msra.mxu0 %v132
    %511 = vmatprep.subr.mxu0 0.0
    %512 = vmatpush1.msra.mxu0 %v133
    %513 = vmatprep.subr.mxu0 0.0
    %514 = vmatpush1.msra.mxu0 %v134
    %515 = vmatprep.subr.mxu0 0.0
    %516 = vmatpush1.msra.mxu0 %v135
    %517 = vmatprep.subr.mxu0 0.0
    %518 = vmatpush1.msra.mxu0 %v136
    %519 = vmatprep.subr.mxu0 0.0
    %520 = vmatpush1.msra.mxu0 %v137
    %521 = vmatprep.subr.mxu0 0.0
    %522 = vmatpush1.msra.mxu0 %v138
    %523 = vmatprep.subr.mxu0 0.0
    %524 = vmatpush1.msra.mxu0 %v139
    %525 = vmatprep.subr.mxu0 0.0
    %526 = vmatpush1.msra.mxu0 %v140
    %527 = vmatprep.subr.mxu0 0.0
    %528 = vmatpush1.msra.mxu0 %v141
    %529 = vmatprep.subr.mxu0 0.0
    %530 = vmatpush1.msra.mxu0 %v142
    %531 = vmatprep.subr.mxu0 0.0
    %532 = vmatpush1.msra.mxu0 %v143
    %533 = vmatprep.subr.mxu0 0.0
    %534 = vmatpush1.msra.mxu0 %v144
    %535 = vmatprep.subr.mxu0 0.0
    %536 = vmatpush1.msra.mxu0 %v145
    %537 = vmatprep.subr.mxu0 0.0
    %538 = vmatpush1.msra.mxu0 %v146
    %539 = vmatprep.subr.mxu0 0.0
    %540 = vmatpush1.msra.mxu0 %v147
    %541 = vmatprep.subr.mxu0 0.0
    %542 = vmatpush1.msra.mxu0 %v148
    %543 = vmatprep.subr.mxu0 0.0
    %544 = vmatpush1.msra.mxu0 %v149
    %545 = vmatprep.subr.mxu0 0.0
    %546 = vmatpush1.msra.mxu0 %v150
    %547 = vmatprep.subr.mxu0 0.0
    %548 = vmatpush1.msra.mxu0 %v151
    %549 = vmatprep.subr.mxu0 0.0
    %550 = vmatpush1.msra.mxu0 %v152
    %551 = vmatprep.subr.mxu0 0.0
    %552 = vmatpush1.msra.mxu0 %v153
    %553 = vmatprep.subr.mxu0 0.0
    %554 = vmatpush1.msra.mxu0 %v154
    %555 = vmatprep.subr.mxu0 0.0
    %556 = vmatpush1.msra.mxu0 %v155
    %557 = vmatprep.subr.mxu0 0.0
    %558 = vmatpush1.msra.mxu0 %v156
    %559 = vmatprep.subr.mxu0 0.0
    %560 = vmatpush1.msra.mxu0 %v157
    %561 = vmatprep.subr.mxu0 0.0
    %562 = vmatpush1.msra.mxu0 %v158
    %563 = vmatprep.mubr.f32.mxu0 %v259
    %564 = vmatmul.mubr.f32.gmra.mrb[0].mxu0 %v257
    %v565 = vpop.f32.mrb[0].mxu0
    %v566 = vadd.f32 %v496, %v565
    %v567 = vpop.f32.mrb[0].mxu0
    %568 = vdwg.mxu0
    %569 = vmatprep.subr.mxu0 0.0
    %570 = vmatpush1.msra.mxu0 %v159
    %571 = vmatprep.subr.mxu0 0.0
    %572 = vmatpush1.msra.mxu0 %v160
    %573 = vmatprep.subr.mxu0 0.0
    %574 = vmatpush1.msra.mxu0 %v161
    %575 = vmatprep.subr.mxu0 0.0
    %576 = vmatpush1.msra.mxu0 %v162
    %577 = vmatprep.subr.mxu0 0.0
    %578 = vmatpush1.msra.mxu0 %v163
    %579 = vmatprep.subr.mxu0 0.0
    %580 = vmatpush1.msra.mxu0 %v164
    %581 = vmatprep.subr.mxu0 0.0
    %582 = vmatpush1.msra.mxu0 %v165
    %583 = vmatprep.subr.mxu0 0.0
    %584 = vmatpush1.msra.mxu0 %v166
    %585 = vmatprep.subr.mxu0 0.0
    %586 = vmatpush1.msra.mxu0 %v167
    %587 = vmatprep.subr.mxu0 0.0
    %588 = vmatpush1.msra.mxu0 %v168
    %589 = vmatprep.subr.mxu0 0.0
    %590 = vmatpush1.msra.mxu0 %v169
    %591 = vmatprep.subr.mxu0 0.0
    %592 = vmatpush1.msra.mxu0 %v170
    %593 = vmatprep.subr.mxu0 0.0
    %594 = vmatpush1.msra.mxu0 %v171
    %595 = vmatprep.subr.mxu0 0.0
    %596 = vmatpush1.msra.mxu0 %v172
    %597 = vmatprep.subr.mxu0 0.0
    %598 = vmatpush1.msra.mxu0 %v173
    %599 = vmatprep.subr.mxu0 0.0
    %600 = vmatpush1.msra.mxu0 %v174
    %601 = vmatprep.subr.mxu0 0.0
    %602 = vmatpush1.msra.mxu0 %v175
    %603 = vmatprep.subr.mxu0 0.0
    %604 = vmatpush1.msra.mxu0 %v176
    %605 = vmatprep.subr.mxu0 0.0
    %606 = vmatpush1.msra.mxu0 %v177
    %607 = vmatprep.subr.mxu0 0.0
    %608 = vmatpush1.msra.mxu0 %v178
    %609 = vmatprep.subr.mxu0 0.0
    %610 = vmatpush1.msra.mxu0 %v179
    %611 = vmatprep.subr.mxu0 0.0
    %612 = vmatpush1.msra.mxu0 %v180
    %613 = vmatprep.subr.mxu0 0.0
    %614 = vmatpush1.msra.mxu0 %v181
    %615 = vmatprep.subr.mxu0 0.0
    %616 = vmatpush1.msra.mxu0 %v182
    %617 = vmatprep.subr.mxu0 0.0
    %618 = vmatpush1.msra.mxu0 %v183
    %619 = vmatprep.subr.mxu0 0.0
    %620 = vmatpush1.msra.mxu0 %v184
    %621 = vmatprep.subr.mxu0 0.0
    %622 = vmatpush1.msra.mxu0 %v185
    %623 = vmatprep.subr.mxu0 0.0
    %624 = vmatpush1.msra.mxu0 %v186
    %625 = vmatprep.subr.mxu0 0.0
    %626 = vmatpush1.msra.mxu0 %v187
    %627 = vmatprep.subr.mxu0 0.0
    %628 = vmatpush1.msra.mxu0 %v188
    %629 = vmatprep.subr.mxu0 0.0
    %630 = vmatpush1.msra.mxu0 %v189
    %631 = vmatprep.subr.mxu0 0.0
    %632 = vmatpush1.msra.mxu0 %v190
    %633 = vmatprep.mubr.f32.mxu0 %v275
    %634 = vmatmul.mubr.f32.gmra.mrb[0].mxu0 %v267
    %v635 = vpop.f32.mrb[0].mxu0
    %v636 = vadd.f32 %v566, %v635
    %v637 = vpop.f32.mrb[0].mxu0
    %638 = vdwg.mxu0
    %639 = vmatprep.subr.mxu0 0.0
    %640 = vmatpush1.msra.mxu0 %v191
    %641 = vmatprep.subr.mxu0 0.0
    %642 = vmatpush1.msra.mxu0 %v192
    %643 = vmatprep.subr.mxu0 0.0
    %644 = vmatpush1.msra.mxu0 %v193
    %645 = vmatprep.subr.mxu0 0.0
    %646 = vmatpush1.msra.mxu0 %v194
    %647 = vmatprep.subr.mxu0 0.0
    %648 = vmatpush1.msra.mxu0 %v195
    %649 = vmatprep.subr.mxu0 0.0
    %650 = vmatpush1.msra.mxu0 %v196
    %651 = vmatprep.subr.mxu0 0.0
    %652 = vmatpush1.msra.mxu0 %v197
    %653 = vmatprep.subr.mxu0 0.0
    %654 = vmatpush1.msra.mxu0 %v198
    %655 = vmatprep.subr.mxu0 0.0
    %656 = vmatpush1.msra.mxu0 %v199
    %657 = vmatprep.subr.mxu0 0.0
    %658 = vmatpush1.msra.mxu0 %v200
    %659 = vmatprep.subr.mxu0 0.0
    %660 = vmatpush1.msra.mxu0 %v201
    %661 = vmatprep.subr.mxu0 0.0
    %662 = vmatpush1.msra.mxu0 %v202
    %663 = vmatprep.subr.mxu0 0.0
    %664 = vmatpush1.msra.mxu0 %v203
    %665 = vmatprep.subr.mxu0 0.0
    %666 = vmatpush1.msra.mxu0 %v204
    %667 = vmatprep.subr.mxu0 0.0
    %668 = vmatpush1.msra.mxu0 %v205
    %669 = vmatprep.subr.mxu0 0.0
    %670 = vmatpush1.msra.mxu0 %v206
    %671 = vmatprep.subr.mxu0 0.0
    %672 = vmatpush1.msra.mxu0 %v207
    %673 = vmatprep.subr.mxu0 0.0
    %674 = vmatpush1.msra.mxu0 %v208
    %675 = vmatprep.subr.mxu0 0.0
    %676 = vmatpush1.msra.mxu0 %v209
    %677 = vmatprep.subr.mxu0 0.0
    %678 = vmatpush1.msra.mxu0 %v210
    %679 = vmatprep.subr.mxu0 0.0
    %680 = vmatpush1.msra.mxu0 %v211
    %681 = vmatprep.subr.mxu0 0.0
    %682 = vmatpush1.msra.mxu0 %v212
    %683 = vmatprep.subr.mxu0 0.0
    %684 = vmatpush1.msra.mxu0 %v213
    %685 = vmatprep.subr.mxu0 0.0
    %686 = vmatpush1.msra.mxu0 %v214
    %687 = vmatprep.subr.mxu0 0.0
    %688 = vmatpush1.msra.mxu0 %v215
    %689 = vmatprep.subr.mxu0 0.0
    %690 = vmatpush1.msra.mxu0 %v216
    %691 = vmatprep.subr.mxu0 0.0
    %692 = vmatpush1.msra.mxu0 %v217
    %693 = vmatprep.subr.mxu0 0.0
    %694 = vmatpush1.msra.mxu0 %v218
    %695 = vmatprep.subr.mxu0 0.0
    %696 = vmatpush1.msra.mxu0 %v219
    %697 = vmatprep.subr.mxu0 0.0
    %698 = vmatpush1.msra.mxu0 %v220
    %699 = vmatprep.subr.mxu0 0.0
    %700 = vmatpush1.msra.mxu0 %v221
    %701 = vmatprep.subr.mxu0 0.0
    %702 = vmatpush1.msra.mxu0 %v222
    %703 = vmatprep.mubr.f32.mxu0 %v276
    %704 = vmatmul.mubr.f32.gmra.mrb[0].mxu0 %v274
    %v705 = vpop.f32.mrb[0].mxu0
    %v706 = vadd.f32 %v636, %v705
    %v707 = vpop.f32.mrb[0].mxu0
    %708 = vdwg.mxu0
    %v709 = vadd.f32 %v27, %v706
    %vm710 = vcmask 254976
    %711 = vst.msk [vmem:[#allocation2] sm:$0x3] %vm710, %v709
    // Predicated region
    $region26: #{forward.5} parent=1 // pred_check
      %p712 = pneg %p21
    $region27: #{forward.5} parent=1 // pred_check_branch
      %714 = sbr.rel (%p712) target = $region29
    $region28: #{forward.5} parent=1 // pred_region
      %v715 = vld [vmem:[#allocation2] sm:$0x3]
      %v716 = vld [vmem:[%s2] sm:$0x1]
      %v718 = vlaneseq
      %v719 = vshrl.u32 %v718, 7
      %v720 = vsub.s32 0, %v719
      %v721 = vrot.slane %v716, %v720
      %v723 = vadd.f32 %v715, %v721
      %v724 = vsel %vm710, %v723, 0.0
      %725 = vadd.xlane.f32.xlu0 %v724
      %v726 = vpop.xlane.xlu0 %725
      %v727 = vrcp.pop 32.0
      %v728 = vmul.f32 %v726, %v727
      %v729 = vsub.f32 %v723, %v728
      %v730 = vmul.f32 %v729, %v729
      %v731 = vsel %vm710, %v730, 0.0
      %732 = vadd.xlane.f32.xlu0 %v731
      %v733 = vpop.xlane.xlu0 %732
      %v734 = vmul.f32 %v733, %v727
      %v735 = vadd.f32 %v734, 1e-05
      %v736 = vrsqrt.pop %v735
      %v737 = vmul.f32 %v729, %v736
      %v738 = vld [vmem:[%s3] sm:$0x1]
      %v740 = vlaneseq
      %v741 = vshrl.u32 %v740, 7
      %v742 = vsub.s32 0, %v741
      %v743 = vrot.slane %v738, %v742
      %v745 = vmul.f32 %v737, %v743
      %v746 = vld [vmem:[%s4] sm:$0x1]
      %v748 = vlaneseq
      %v749 = vshrl.u32 %v748, 7
      %v750 = vsub.s32 0, %v749
      %v751 = vrot.slane %v746, %v750
      %v753 = vadd.f32 %v745, %v751
      %v754 = vtanh.pop %v753
      %755 = vst.msk [vmem:[#allocation3] sm:$0x3] %vm710, %v754
    $region29: #{forward.5} parent=1 // pred_fallthru
      _
    // Predicated region
    $region30: #{forward.5} parent=1 // pred_check
      _
    $region31: #{forward.5} parent=1 // pred_check_branch
      %757 = sbr.rel (0) target = $region33
    $region32: #{forward.5} parent=1 // pred_region
      %s759 = ssub.s32 32, 32
      %760 = vsyncadd [#allocation4], %s759
      %s762 = sshll.u32 [#allocation3], 4
      %s763 = int_to_ptr.vmem [resolvable:$true] %s762
      %765 = dma.vmem_to_hbm [thread:$0]  %s763, 32, %s5, [#allocation4]
    $region33: #{forward.5} parent=1 // pred_fallthru
      _
    // Predicated region
    $region34: #{forward.5} parent=1 // pred_check
      _
    $region35: #{forward.5} parent=1 // pred_check_branch
      %767 = sbr.rel (0) target = $region37
    $region36: #{forward.5} parent=1 // pred_region
      %768 = dma.done [#allocation4], 32
    $region37: #{forward.5} parent=1 // pred_fallthru
      _
    %769 = vsyncpa [#allocation4], 1

// kernel: forward.4
$region0: #{forward.4}
  #allocation0 [shape = 'u32[]', space=smem, size = 0x4, offset = 0x4, fixed_abs, tag = 'smem constant byte address 0x4 - core index']
  #allocation1 [shape = 'u32[144,128]{1,0:T(1,128)}', space=vmem, size = 0x12000, scoped, tag = 'internal scratch']
  %s0 = inlined_call_operand.vmem [shape: f32[2,49,32], index: 0, kind: input, shape index: {}]
  %s1 = inlined_call_operand.vmem [shape: f32[9,32,32], index: 1, kind: input, shape index: {}]
  %s2 = inlined_call_operand.vmem [shape: f32[1,32], index: 2, kind: input, shape index: {}]
  %s3 = inlined_call_operand.vmem [shape: f32[2,48,32], index: 3, kind: output, shape index: {}]
  %s4 = sld [smem:[#allocation0]]
  $region45: #{forward.4} parent=0
    _
  %s6 = ssub.s32 1, %s4
  %s7 = scalar_select 0, %s6, %s4
  loop: start=0, step=1, limit=4
  $region2: #{forward.4} parent=0 // loop_pre_header
    _
  $region3: #{forward.4} parent=0 // loop_header
    %s9 = sphi 0, %s13
    %p10 = scmp.ge.s32.totalorder %s9, 4
    %s19 = sphi 0, %s21
    %s22 = sphi 0, %s19
    %s23 = sphi 0, %s22
    %s39 = sphi 0, %s23
    %s43 = sphi 0, %s43
    %s45 = sphi 0, %s43
    %s46 = sphi 0, %s45
    %s60 = sphi 0, %s46
    %s64 = sphi 0, %s64
    %s66 = sphi 0, %s64
    %s67 = sphi 0, %s66
    %s81 = sphi 0, %s67
    %s87 = sphi 0, %s89
    %s90 = sphi 0, %s87
    %s91 = sphi 0, %s90
    %s107 = sphi 0, %s91
  $region4: #{forward.4} parent=0 // loop_header_branch
    %12 = sbr.rel (%p10) target = $region8
  $region5: #{forward.4} parent=0 // loop_body
    %s14 = ssub.s32 %s9, 1
    %s15 = ssub.s32 %s9, 2
    %s16 = sadd.s32 %s9, 1
    %s17 = ssub.s32 %s9, %s16
    %p18 = scmp.eq.s32.totalorder %s17, 0
    %s20 = sadd.s32 %s19, 1
    %s21 = scalar_select %p18, %s19, %s20
    %p24 = pneg %p18
    %p25 = scmp.eq.s32.totalorder %s9, 1
    %p26 = por %p24, %p25
    %p27 = scmp.ne.s32.totalorder %s19, %s22
    %p28 = scmp.eq.s32.totalorder %s9, 0
    %p29 = por %p27, %p28
    %p30 = scmp.ne.s32.totalorder %s19, %s22
    %p31 = scmp.eq.s32.totalorder %s14, 1
    %p32 = por %p30, %p31
    %p33 = scmp.ne.s32.totalorder %s22, %s23
    %p34 = scmp.eq.s32.totalorder %s14, 0
    %p35 = por %p33, %p34
    %p36 = scmp.ne.s32.totalorder %s22, %s23
    %p37 = scmp.eq.s32.totalorder %s15, 1
    %p38 = por %p36, %p37
    %p40 = scmp.ne.s32.totalorder %s23, %s39
    %p41 = scmp.eq.s32.totalorder %s15, 0
    %p42 = por %p40, %p41
    %s44 = sadd.s32 %s43, 1
    %p47 = scmp.eq.s32.totalorder %s9, 1
    %p48 = scmp.ne.s32.totalorder %s43, %s45
    %p49 = scmp.eq.s32.totalorder %s9, 0
    %p50 = por %p48, %p49
    %p51 = scmp.ne.s32.totalorder %s43, %s45
    %p52 = scmp.eq.s32.totalorder %s14, 1
    %p53 = por %p51, %p52
    %p54 = scmp.ne.s32.totalorder %s45, %s46
    %p55 = scmp.eq.s32.totalorder %s14, 0
    %p56 = por %p54, %p55
    %p57 = scmp.ne.s32.totalorder %s45, %s46
    %p58 = scmp.eq.s32.totalorder %s15, 1
    %p59 = por %p57, %p58
    %p61 = scmp.ne.s32.totalorder %s46, %s60
    %p62 = scmp.eq.s32.totalorder %s15, 0
    %p63 = por %p61, %p62
    %s65 = sadd.s32 %s64, 1
    %p68 = scmp.eq.s32.totalorder %s9, 1
    %p69 = scmp.ne.s32.totalorder %s64, %s66
    %p70 = scmp.eq.s32.totalorder %s9, 0
    %p71 = por %p69, %p70
    %p72 = scmp.ne.s32.totalorder %s64, %s66
    %p73 = scmp.eq.s32.totalorder %s14, 1
    %p74 = por %p72, %p73
    %p75 = scmp.ne.s32.totalorder %s66, %s67
    %p76 = scmp.eq.s32.totalorder %s14, 0
    %p77 = por %p75, %p76
    %p78 = scmp.ne.s32.totalorder %s66, %s67
    %p79 = scmp.eq.s32.totalorder %s15, 1
    %p80 = por %p78, %p79
    %p82 = scmp.ne.s32.totalorder %s67, %s81
    %p83 = scmp.eq.s32.totalorder %s15, 0
    %p84 = por %p82, %p83
    %s85 = ssub.s32 %s9, %s16
    %p86 = scmp.eq.s32.totalorder %s85, 0
    %s88 = sadd.s32 %s87, 1
    %s89 = scalar_select %p86, %s87, %s88
    %p92 = pneg %p86
    %p93 = scmp.eq.s32.totalorder %s9, 1
    %p94 = por %p92, %p93
    %p95 = scmp.ne.s32.totalorder %s87, %s90
    %p96 = scmp.eq.s32.totalorder %s9, 0
    %p97 = por %p95, %p96
    %p98 = scmp.ne.s32.totalorder %s87, %s90
    %p99 = scmp.eq.s32.totalorder %s14, 1
    %p100 = por %p98, %p99
    %p101 = scmp.ne.s32.totalorder %s90, %s91
    %p102 = scmp.eq.s32.totalorder %s14, 0
    %p103 = por %p101, %p102
    %p104 = scmp.ne.s32.totalorder %s90, %s91
    %p105 = scmp.eq.s32.totalorder %s15, 1
    %p106 = por %p104, %p105
    %p108 = scmp.ne.s32.totalorder %s91, %s107
    %p109 = scmp.eq.s32.totalorder %s15, 0
    %p110 = por %p108, %p109
    %p111 = scmp.le.s32.totalorder 1, %s9
    %p112 = scmp.lt.s32.totalorder %s9, 3
    %p113 = pnand %p111, %p112
    %p114 = pneg %p113
    // Predicated region
    $region9: #{forward.4} parent=5 // pred_check
      _
    $region10: #{forward.4} parent=5 // pred_check_branch
      %116 = sbr.rel (%p113) target = $region12
    $region11: #{forward.4} parent=5 // pred_region
      %s117 = ssub.s32 %s9, 1
      // Predicated region
      $region13: #{forward.4} parent=11 // pred_check
        %p118 = pneg %p56
      $region14: #{forward.4} parent=11 // pred_check_branch
        %120 = sbr.rel (%p118) target = $region16
      $region15: #{forward.4} parent=11 // pred_region
        _
      $region16: #{forward.4} parent=11 // pred_fallthru
        _
      // Predicated region
      $region17: #{forward.4} parent=11 // pred_check
        %p121 = pneg %p77
      $region18: #{forward.4} parent=11 // pred_check_branch
        %123 = sbr.rel (%p121) target = $region20
      $region19: #{forward.4} parent=11 // pred_region
        _
      $region20: #{forward.4} parent=11 // pred_fallthru
        _
    $region12: #{forward.4} parent=5 // pred_fallthru
      _
    %p124 = scmp.lt.s32.totalorder %s9, 2
    // Predicated region
    $region21: #{forward.4} parent=5 // pred_check
      %p125 = pneg %p124
    $region22: #{forward.4} parent=5 // pred_check_branch
      %127 = sbr.rel (%p125) target = $region24
    $region23: #{forward.4} parent=5 // pred_region
      // Predicated region
      $region25: #{forward.4} parent=23 // pred_check
        %p128 = pneg %p29
      $region26: #{forward.4} parent=23 // pred_check_branch
        %130 = sbr.rel (%p128) target = $region28
      $region27: #{forward.4} parent=23 // pred_region
        %p131 = scmp.lt.s32.totalorder %s9, 1
        %s132 = scalar_select %p131, %s9, 1
        %s133 = smul.addr %s132, 7
        %s134 = smul.addr %s133, 8
        %s135 = scalar_lea.vmem %s0, %s134
      $region28: #{forward.4} parent=23 // pred_fallthru
        _
    $region24: #{forward.4} parent=5 // pred_fallthru
      _
    %p136 = scmp.le.s32.totalorder 1, %s9
    %p137 = scmp.lt.s32.totalorder %s9, 3
    %p138 = pnand %p136, %p137
    %p139 = pneg %p138
    // Predicated region
    $region29: #{forward.4} parent=5 // pred_check
      _
    $region30: #{forward.4} parent=5 // pred_check_branch
      %141 = sbr.rel (%p138) target = $region32
    $region31: #{forward.4} parent=5 // pred_region
      %s142 = ssub.s32 %s9, 1
      %p143 = scmp.lt.s32.totalorder %s14, 1
      %s144 = scalar_select %p143, %s14, 1
      %s145 = smul.addr %s144, 7
      %s146 = smul.addr %s145, 8
      %s147 = scalar_lea.vmem %s0, %s146
      %p148 = pneg %p35
      %p149 = pneg %p32
      %p150 = pneg %p56
      %p151 = pneg %p53
      %p152 = pneg %p77
      %p153 = pneg %p74
      %p154 = pneg %p103
      %p155 = pneg %p100
      %p156 = scmp.lt.s32.totalorder %s14, 1
      %s157 = scalar_select %p156, %s14, 1
      %s158 = smul.addr %s157, 6
      %s159 = smul.addr %s158, 8
      %s160 = scalar_lea.vmem %s3, %s159
      %p161 = scmp.lt.s32.totalorder %s14, 1
      %s162 = scalar_select %p161, %s14, 1
      %s163 = smul.addr %s162, 7
      %s164 = smul.addr %s163, 8
      %s165 = scalar_lea.vmem %s0, %s164
      %p166 = scmp.lt.s32.totalorder %s14, 1
      %s167 = scalar_select %p166, %s14, 1
      %s168 = smul.addr %s167, 6
      %s169 = smul.addr %s168, 8
      %s170 = scalar_lea.vmem %s3, %s169
      %v171 = vld [vmem:[%s165] sm:$0xff]
      %v172 = vld [vmem:[%s165 + $0x8] sm:$0xff]
      %v173 = vld [vmem:[%s165 + $0x10] sm:$0xff]
      %v174 = vld [vmem:[%s165 + $0x18] sm:$0xff]
      %v175 = vld [vmem:[%s165 + $0x20] sm:$0x1]
      %v176 = vld [vmem:[%s1] sm:$0xff]
      %v177 = vld [vmem:[%s1 + $0x8] sm:$0xff]
      %v178 = vld [vmem:[%s1 + $0x10] sm:$0xff]
      %v179 = vld [vmem:[%s1 + $0x18] sm:$0xff]
      %v180 = vld [vmem:[%s165 + $0x1] sm:$0xff]
      %v181 = vld [vmem:[%s165 + $0x9] sm:$0xff]
      %v182 = vld [vmem:[%s165 + $0x11] sm:$0xff]
      %v183 = vld [vmem:[%s165 + $0x19] sm:$0xff]
      %v184 = vld [vmem:[%s165 + $0x21] sm:$0x1]
      %s185 = scalar_lea.vmem %s1, 32
      %v186 = vld [vmem:[%s185] sm:$0xff]
      %v187 = vld [vmem:[%s185 + $0x8] sm:$0xff]
      %v188 = vld [vmem:[%s185 + $0x10] sm:$0xff]
      %v189 = vld [vmem:[%s185 + $0x18] sm:$0xff]
      %vm190 = vcmask 261120
      %v192 = vsel %vm190, %v180, 0
      %v195 = vsel %vm190, %v181, 0
      %v198 = vsel %vm190, %v182, 0
      %v201 = vsel %vm190, %v183, 0
      %v204 = vsel %vm190, %v184, 0
      %206 = vmatprep.subr.mxu0 0.0
      %207 = vmatpush1.msra.mxu0 %v186
      %208 = vmatprep.subr.mxu0 0.0
      %209 = vmatpush1.msra.mxu0 %v187
      %210 = vmatprep.subr.mxu0 0.0
      %211 = vmatpush1.msra.mxu0 %v188
      %212 = vmatprep.subr.mxu0 0.0
      %213 = vmatpush1.msra.mxu0 %v189
      %214 = vmatprep.subr.mxu0 0.0
      %215 = vmatpush1.msra.mxu0 0.0
      %216 = vmatprep.subr.mxu0 0.0
      %217 = vmatpush1.msra.mxu0 0.0
      %218 = vmatprep.subr.mxu0 0.0
      %219 = vmatpush1.msra.mxu0 0.0
      %220 = vmatprep.subr.mxu0 0.0
      %221 = vmatpush1.msra.mxu0 0.0
      %222 = vmatprep.subr.mxu0 0.0
      %223 = vmatpush1.msra.mxu0 0.0
      %224 = vmatprep.subr.mxu0 0.0
      %225 = vmatpush1.msra.mxu0 0.0
      %226 = vmatprep.subr.mxu0 0.0
      %227 = vmatpush1.msra.mxu0 0.0
      %228 = vmatprep.subr.mxu0 0.0
      %229 = vmatpush1.msra.mxu0 0.0
      %230 = vmatprep.subr.mxu0 0.0
      %231 = vmatpush1.msra.mxu0 0.0
      %232 = vmatprep.subr.mxu0 0.0
      %233 = vmatpush1.msra.mxu0 0.0
      %234 = vmatprep.subr.mxu0 0.0
      %235 = vmatpush1.msra.mxu0 0.0
      %236 = vmatprep.subr.mxu0 0.0
      %237 = vmatpush1.msra.mxu0 0.0
      %238 = vmatprep.subr.mxu0 0.0
      %239 = vmatpush1.msra.mxu0 0.0
      %240 = vmatprep.subr.mxu0 0.0
      %241 = vmatpush1.msra.mxu0 0.0
      %242 = vmatprep.subr.mxu0 0.0
      %243 = vmatpush1.msra.mxu0 0.0
      %244 = vmatprep.subr.mxu0 0.0
      %245 = vmatpush1.msra.mxu0 0.0
      %246 = vmatprep.subr.mxu0 0.0
      %247 = vmatpush1.msra.mxu0 0.0
      %248 = vmatprep.subr.mxu0 0.0
      %249 = vmatpush1.msra.mxu0 0.0
      %250 = vmatprep.subr.mxu0 0.0
      %251 = vmatpush1.msra.mxu0 0.0
      %252 = vmatprep.subr.mxu0 0.0
      %253 = vmatpush1.msra.mxu0 0.0
      %254 = vmatprep.subr.mxu0 0.0
      %255 = vmatpush1.msra.mxu0 0.0
      %256 = vmatprep.subr.mxu0 0.0
      %257 = vmatpush1.msra.mxu0 0.0
      %258 = vmatprep.subr.mxu0 0.0
      %259 = vmatpush1.msra.mxu0 0.0
      %260 = vmatprep.subr.mxu0 0.0
      %261 = vmatpush1.msra.mxu0 0.0
      %262 = vmatprep.subr.mxu0 0.0
      %263 = vmatpush1.msra.mxu0 0.0
      %264 = vmatprep.subr.mxu0 0.0
      %265 = vmatpush1.msra.mxu0 0.0
      %266 = vmatprep.subr.mxu0 0.0
      %267 = vmatpush1.msra.mxu0 0.0
      %268 = vmatprep.subr.mxu0 0.0
      %269 = vmatpush1.msra.mxu0 0.0
      %270 = vmatprep.mubr.f32.mxu0 0.0
      %271 = vmatmul.mubr.f32.gmra.mrb[0].mxu0 %v192
      %v272 = vpop.f32.mrb[0].mxu0
      %v273 = vadd.f32 0.0, %v272
      %v274 = vpop.f32.mrb[0].mxu0
      %275 = vmatprep.mubr.f32.mxu0 0.0
      %276 = vmatmul.mubr.f32.gmra.mrb[0].mxu0 %v195
      %v277 = vpop.f32.mrb[0].mxu0
      %v278 = vadd.f32 0.0, %v277
      %v279 = vpop.f32.mrb[0].mxu0
      %280 = vmatprep.mubr.f32.mxu0 0.0
      %281 = vmatmul.mubr.f32.gmra.mrb[0].mxu0 %v198
      %v282 = vpop.f32.mrb[0].mxu0
      %v283 = vadd.f32 0.0, %v282
      %v284 = vpop.f32.mrb[0].mxu0
      %285 = vmatprep.mubr.f32.mxu0 0.0
      %286 = vmatmul.mubr.f32.gmra.mrb[0].mxu0 %v201
      %v287 = vpop.f32.mrb[0].mxu0
      %v288 = vadd.f32 0.0, %v287
      %v289 = vpop.f32.mrb[0].mxu0
      %290 = vmatprep.mubr.f32.mxu0 0.0
      %291 = vmatmul.mubr.f32.gmra.mrb[0].mxu0 %v204
      %v292 = vpop.f32.mrb[0].mxu0
      %v293 = vadd.f32 0.0, %v292
      %v294 = vpop.f32.mrb[0].mxu0
      %295 = vdwg.mxu0
      %v297 = vsel %vm190, %v171, 0
      %v300 = vsel %vm190, %v172, 0
      %v303 = vsel %vm190, %v173, 0
      %v306 = vsel %vm190, %v174, 0
      %v309 = vsel %vm190, %v175, 0
      %311 = vmatprep.subr.mxu0 0.0
      %312 = vmatpush1.msra.mxu0 %v176
      %313 = vmatprep.subr.mxu0 0.0
      %314 = vmatpush1.msra.mxu0 %v177
      %315 = vmatprep.subr.mxu0 0.0
      %316 = vmatpush1.msra.mxu0 %v178
      %317 = vmatprep.subr.mxu0 0.0
      %318 = vmatpush1.msra.mxu0 %v179
      %319 = vmatprep.subr.mxu0 0.0
      %320 = vmatpush1.msra.mxu0 0.0
      %321 = vmatprep.subr.mxu0 0.0
      %322 = vmatpush1.msra.mxu0 0.0
      %323 = vmatprep.subr.mxu0 0.0
      %324 = vmatpush1.msra.mxu0 0.0
      %325 = vmatprep.subr.mxu0 0.0
      %326 = vmatpush1.msra.mxu0 0.0
      %327 = vmatprep.subr.mxu0 0.0
      %328 = vmatpush1.msra.mxu0 0.0
      %329 = vmatprep.subr.mxu0 0.0
      %330 = vmatpush1.msra.mxu0 0.0
      %331 = vmatprep.subr.mxu0 0.0
      %332 = vmatpush1.msra.mxu0 0.0
      %333 = vmatprep.subr.mxu0 0.0
      %334 = vmatpush1.msra.mxu0 0.0
      %335 = vmatprep.subr.mxu0 0.0
      %336 = vmatpush1.msra.mxu0 0.0
      %337 = vmatprep.subr.mxu0 0.0
      %338 = vmatpush1.msra.mxu0 0.0
      %339 = vmatprep.subr.mxu0 0.0
      %340 = vmatpush1.msra.mxu0 0.0
      %341 = vmatprep.subr.mxu0 0.0
      %342 = vmatpush1.msra.mxu0 0.0
      %343 = vmatprep.subr.mxu0 0.0
      %344 = vmatpush1.msra.mxu0 0.0
      %345 = vmatprep.subr.mxu0 0.0
      %346 = vmatpush1.msra.mxu0 0.0
      %347 = vmatprep.subr.mxu0 0.0
      %348 = vmatpush1.msra.mxu0 0.0
      %349 = vmatprep.subr.mxu0 0.0
      %350 = vmatpush1.msra.mxu0 0.0
      %351 = vmatprep.subr.mxu0 0.0
      %352 = vmatpush1.msra.mxu0 0.0
      %353 = vmatprep.subr.mxu0 0.0
      %354 = vmatpush1.msra.mxu0 0.0
      %355 = vmatprep.subr.mxu0 0.0
      %356 = vmatpush1.msra.mxu0 0.0
      %357 = vmatprep.subr.mxu0 0.0
      %358 = vmatpush1.msra.mxu0 0.0
      %359 = vmatprep.subr.mxu0 0.0
      %360 = vmatpush1.msra.mxu0 0.0
      %361 = vmatprep.subr.mxu0 0.0
      %362 = vmatpush1.msra.mxu0 0.0
      %363 = vmatprep.subr.mxu0 0.0
      %364 = vmatpush1.msra.mxu0 0.0
      %365 = vmatprep.subr.mxu0 0.0
      %366 = vmatpush1.msra.mxu0 0.0
      %367 = vmatprep.subr.mxu0 0.0
      %368 = vmatpush1.msra.mxu0 0.0
      %369 = vmatprep.subr.mxu0 0.0
      %370 = vmatpush1.msra.mxu0 0.0
      %371 = vmatprep.subr.mxu0 0.0
      %372 = vmatpush1.msra.mxu0 0.0
      %373 = vmatprep.subr.mxu0 0.0
      %374 = vmatpush1.msra.mxu0 0.0
      %375 = vmatprep.mubr.f32.mxu0 0.0
      %376 = vmatmul.mubr.f32.gmra.mrb[0].mxu0 %v297
      %v377 = vpop.f32.mrb[0].mxu0
      %v378 = vadd.f32 %v273, %v377
      %v379 = vpop.f32.mrb[0].mxu0
      %380 = vmatprep.mubr.f32.mxu0 0.0
      %381 = vmatmul.mubr.f32.gmra.mrb[0].mxu0 %v300
      %v382 = vpop.f32.mrb[0].mxu0
      %v383 = vadd.f32 %v278, %v382
      %v384 = vpop.f32.mrb[0].mxu0
      %385 = vmatprep.mubr.f32.mxu0 0.0
      %386 = vmatmul.mubr.f32.gmra.mrb[0].mxu0 %v303
      %v387 = vpop.f32.mrb[0].mxu0
      %v388 = vadd.f32 %v283, %v387
      %v389 = vpop.f32.mrb[0].mxu0
      %390 = vmatprep.mubr.f32.mxu0 0.0
      %391 = vmatmul.mubr.f32.gmra.mrb[0].mxu0 %v306
      %v392 = vpop.f32.mrb[0].mxu0
      %v393 = vadd.f32 %v288, %v392
      %v394 = vpop.f32.mrb[0].mxu0
      %395 = vmatprep.mubr.f32.mxu0 0.0
      %396 = vmatmul.mubr.f32.gmra.mrb[0].mxu0 %v309
      %v397 = vpop.f32.mrb[0].mxu0
      %v398 = vadd.f32 %v293, %v397
      %v399 = vpop.f32.mrb[0].mxu0
      %400 = vdwg.mxu0
      %v401 = vld [vmem:[%s165 + $0x2] sm:$0xff]
      %v402 = vld [vmem:[%s165 + $0xa] sm:$0xff]
      %v403 = vld [vmem:[%s165 + $0x12] sm:$0xff]
      %v404 = vld [vmem:[%s165 + $0x1a] sm:$0xff]
      %v405 = vld [vmem:[%s165 + $0x22] sm:$0x1]
      %s406 = scalar_lea.vmem %s1, 64
      %v407 = vld [vmem:[%s406] sm:$0xff]
      %v408 = vld [vmem:[%s406 + $0x8] sm:$0xff]
      %v409 = vld [vmem:[%s406 + $0x10] sm:$0xff]
      %v410 = vld [vmem:[%s406 + $0x18] sm:$0xff]
      %v412 = vsel %vm190, %v401, 0
      %v415 = vsel %vm190, %v402, 0
      %v418 = vsel %vm190, %v403, 0
      %v421 = vsel %vm190, %v404, 0
      %v424 = vsel %vm190, %v405, 0
      %426 = vmatprep.subr.mxu0 0.0
      %427 = vmatpush1.msra.mxu0 %v407
      %428 = vmatprep.subr.mxu0 0.0
      %429 = vmatpush1.msra.mxu0 %v408
      %430 = vmatprep.subr.mxu0 0.0
      %431 = vmatpush1.msra.mxu0 %v409
      %432 = vmatprep.subr.mxu0 0.0
      %433 = vmatpush1.msra.mxu0 %v410
      %434 = vmatprep.subr.mxu0 0.0
      %435 = vmatpush1.msra.mxu0 0.0
      %436 = vmatprep.subr.mxu0 0.0
      %437 = vmatpush1.msra.mxu0 0.0
      %438 = vmatprep.subr.mxu0 0.0
      %439 = vmatpush1.msra.mxu0 0.0
      %440 = vmatprep.subr.mxu0 0.0
      %441 = vmatpush1.msra.mxu0 0.0
      %442 = vmatprep.subr.mxu0 0.0
      %443 = vmatpush1.msra.mxu0 0.0
      %444 = vmatprep.subr.mxu0 0.0
      %445 = vmatpush1.msra.mxu0 0.0
      %446 = vmatprep.subr.mxu0 0.0
      %447 = vmatpush1.msra.mxu0 0.0
      %448 = vmatprep.subr.mxu0 0.0
      %449 = vmatpush1.msra.mxu0 0.0
      %450 = vmatprep.subr.mxu0 0.0
      %451 = vmatpush1.msra.mxu0 0.0
      %452 = vmatprep.subr.mxu0 0.0
      %453 = vmatpush1.msra.mxu0 0.0
      %454 = vmatprep.subr.mxu0 0.0
      %455 = vmatpush1.msra.mxu0 0.0
      %456 = vmatprep.subr.mxu0 0.0
      %457 = vmatpush1.msra.mxu0 0.0
      %458 = vmatprep.subr.mxu0 0.0
      %459 = vmatpush1.msra.mxu0 0.0
      %460 = vmatprep.subr.mxu0 0.0
      %461 = vmatpush1.msra.mxu0 0.0
      %462 = vmatprep.subr.mxu0 0.0
      %463 = vmatpush1.msra.mxu0 0.0
      %464 = vmatprep.subr.mxu0 0.0
      %465 = vmatpush1.msra.mxu0 0.0
      %466 = vmatprep.subr.mxu0 0.0
      %467 = vmatpush1.msra.mxu0 0.0
      %468 = vmatprep.subr.mxu0 0.0
      %469 = vmatpush1.msra.mxu0 0.0
      %470 = vmatprep.subr.mxu0 0.0
      %471 = vmatpush1.msra.mxu0 0.0
      %472 = vmatprep.subr.mxu0 0.0
      %473 = vmatpush1.msra.mxu0 0.0
      %474 = vmatprep.subr.mxu0 0.0
      %475 = vmatpush1.msra.mxu0 0.0
      %476 = vmatprep.subr.mxu0 0.0
      %477 = vmatpush1.msra.mxu0 0.0
      %478 = vmatprep.subr.mxu0 0.0
      %479 = vmatpush1.msra.mxu0 0.0
      %480 = vmatprep.subr.mxu0 0.0
      %481 = vmatpush1.msra.mxu0 0.0
      %482 = vmatprep.subr.mxu0 0.0
      %483 = vmatpush1.msra.mxu0 0.0
      %484 = vmatprep.subr.mxu0 0.0
      %485 = vmatpush1.msra.mxu0 0.0
      %486 = vmatprep.subr.mxu0 0.0
      %487 = vmatpush1.msra.mxu0 0.0
      %488 = vmatprep.subr.mxu0 0.0
      %489 = vmatpush1.msra.mxu0 0.0
      %490 = vmatprep.mubr.f32.mxu0 0.0
      %491 = vmatmul.mubr.f32.gmra.mrb[0].mxu0 %v412
      %v492 = vpop.f32.mrb[0].mxu0
      %v493 = vadd.f32 0.0, %v492
      %v494 = vpop.f32.mrb[0].mxu0
      %495 = vmatprep.mubr.f32.mxu0 0.0
      %496 = vmatmul.mubr.f32.gmra.mrb[0].mxu0 %v415
      %v497 = vpop.f32.mrb[0].mxu0
      %v498 = vadd.f32 0.0, %v497
      %v499 = vpop.f32.mrb[0].mxu0
      %500 = vmatprep.mubr.f32.mxu0 0.0
      %501 = vmatmul.mubr.f32.gmra.mrb[0].mxu0 %v418
      %v502 = vpop.f32.mrb[0].mxu0
      %v503 = vadd.f32 0.0, %v502
      %v504 = vpop.f32.mrb[0].mxu0
      %505 = vmatprep.mubr.f32.mxu0 0.0
      %506 = vmatmul.mubr.f32.gmra.mrb[0].mxu0 %v421
      %v507 = vpop.f32.mrb[0].mxu0
      %v508 = vadd.f32 0.0, %v507
      %v509 = vpop.f32.mrb[0].mxu0
      %510 = vmatprep.mubr.f32.mxu0 0.0
      %511 = vmatmul.mubr.f32.gmra.mrb[0].mxu0 %v424
      %v512 = vpop.f32.mrb[0].mxu0
      %v513 = vadd.f32 0.0, %v512
      %v514 = vpop.f32.mrb[0].mxu0
      %515 = vdwg.mxu0
      %v516 = vadd.f32 %v378, %v493
      %v517 = vadd.f32 %v383, %v498
      %v518 = vadd.f32 %v388, %v503
      %v519 = vadd.f32 %v393, %v508
      %v520 = vadd.f32 %v398, %v513
      %v521 = vld [vmem:[%s165 + $0x7] sm:$0xff]
      %v522 = vld [vmem:[%s165 + $0xf] sm:$0xff]
      %v523 = vld [vmem:[%s165 + $0x17] sm:$0xff]
      %v524 = vld [vmem:[%s165 + $0x1f] sm:$0xff]
      %v525 = vld [vmem:[%s165 + $0x27] sm:$0x1]
      %s526 = scalar_lea.vmem %s1, 96
      %v527 = vld [vmem:[%s526] sm:$0xff]
      %v528 = vld [vmem:[%s526 + $0x8] sm:$0xff]
      %v529 = vld [vmem:[%s526 + $0x10] sm:$0xff]
      %v530 = vld [vmem:[%s526 + $0x18] sm:$0xff]
      %v532 = vsel %vm190, %v521, 0
      %v535 = vsel %vm190, %v522, 0
      %v538 = vsel %vm190, %v523, 0
      %v541 = vsel %vm190, %v524, 0
      %v544 = vsel %vm190, %v525, 0
      %546 = vmatprep.subr.mxu0 0.0
      %547 = vmatpush1.msra.mxu0 %v527
      %548 = vmatprep.subr.mxu0 0.0
      %549 = vmatpush1.msra.mxu0 %v528
      %550 = vmatprep.subr.mxu0 0.0
      %551 = vmatpush1.msra.mxu0 %v529
      %552 = vmatprep.subr.mxu0 0.0
      %553 = vmatpush1.msra.mxu0 %v530
      %554 = vmatprep.subr.mxu0 0.0
      %555 = vmatpush1.msra.mxu0 0.0
      %556 = vmatprep.subr.mxu0 0.0
      %557 = vmatpush1.msra.mxu0 0.0
      %558 = vmatprep.subr.mxu0 0.0
      %559 = vmatpush1.msra.mxu0 0.0
      %560 = vmatprep.subr.mxu0 0.0
      %561 = vmatpush1.msra.mxu0 0.0
      %562 = vmatprep.subr.mxu0 0.0
      %563 = vmatpush1.msra.mxu0 0.0
      %564 = vmatprep.subr.mxu0 0.0
      %565 = vmatpush1.msra.mxu0 0.0
      %566 = vmatprep.subr.mxu0 0.0
      %567 = vmatpush1.msra.mxu0 0.0
      %568 = vmatprep.subr.mxu0 0.0
      %569 = vmatpush1.msra.mxu0 0.0
      %570 = vmatprep.subr.mxu0 0.0
      %571 = vmatpush1.msra.mxu0 0.0
      %572 = vmatprep.subr.mxu0 0.0
      %573 = vmatpush1.msra.mxu0 0.0
      %574 = vmatprep.subr.mxu0 0.0
      %575 = vmatpush1.msra.mxu0 0.0
      %576 = vmatprep.subr.mxu0 0.0
      %577 = vmatpush1.msra.mxu0 0.0
      %578 = vmatprep.subr.mxu0 0.0
      %579 = vmatpush1.msra.mxu0 0.0
      %580 = vmatprep.subr.mxu0 0.0
      %581 = vmatpush1.msra.mxu0 0.0
      %582 = vmatprep.subr.mxu0 0.0
      %583 = vmatpush1.msra.mxu0 0.0
      %584 = vmatprep.subr.mxu0 0.0
      %585 = vmatpush1.msra.mxu0 0.0
      %586 = vmatprep.subr.mxu0 0.0
      %587 = vmatpush1.msra.mxu0 0.0
      %588 = vmatprep.subr.mxu0 0.0
      %589 = vmatpush1.msra.mxu0 0.0
      %590 = vmatprep.subr.mxu0 0.0
      %591 = vmatpush1.msra.mxu0 0.0
      %592 = vmatprep.subr.mxu0 0.0
      %593 = vmatpush1.msra.mxu0 0.0
      %594 = vmatprep.subr.mxu0 0.0
      %595 = vmatpush1.msra.mxu0 0.0
      %596 = vmatprep.subr.mxu0 0.0
      %597 = vmatpush1.msra.mxu0 0.0
      %598 = vmatprep.subr.mxu0 0.0
      %599 = vmatpush1.msra.mxu0 0.0
      %600 = vmatprep.subr.mxu0 0.0
      %601 = vmatpush1.msra.mxu0 0.0
      %602 = vmatprep.subr.mxu0 0.0
      %603 = vmatpush1.msra.mxu0 0.0
      %604 = vmatprep.subr.mxu0 0.0
      %605 = vmatpush1.msra.mxu0 0.0
      %606 = vmatprep.subr.mxu0 0.0
      %607 = vmatpush1.msra.mxu0 0.0
      %608 = vmatprep.subr.mxu0 0.0
      %609 = vmatpush1.msra.mxu0 0.0
      %610 = vmatprep.mubr.f32.mxu0 0.0
      %611 = vmatmul.mubr.f32.gmra.mrb[0].mxu0 %v532
      %v612 = vpop.f32.mrb[0].mxu0
      %v613 = vadd.f32 0.0, %v612
      %v614 = vpop.f32.mrb[0].mxu0
      %615 = vmatprep.mubr.f32.mxu0 0.0
      %616 = vmatmul.mubr.f32.gmra.mrb[0].mxu0 %v535
      %v617 = vpop.f32.mrb[0].mxu0
      %v618 = vadd.f32 0.0, %v617
      %v619 = vpop.f32.mrb[0].mxu0
      %620 = vmatprep.mubr.f32.mxu0 0.0
      %621 = vmatmul.mubr.f32.gmra.mrb[0].mxu0 %v538
      %v622 = vpop.f32.mrb[0].mxu0
      %v623 = vadd.f32 0.0, %v622
      %v624 = vpop.f32.mrb[0].mxu0
      %625 = vmatprep.mubr.f32.mxu0 0.0
      %626 = vmatmul.mubr.f32.gmra.mrb[0].mxu0 %v541
      %v627 = vpop.f32.mrb[0].mxu0
      %v628 = vadd.f32 0.0, %v627
      %v629 = vpop.f32.mrb[0].mxu0
      %630 = vmatprep.mubr.f32.mxu0 0.0
      %631 = vmatmul.mubr.f32.gmra.mrb[0].mxu0 %v544
      %v632 = vpop.f32.mrb[0].mxu0
      %v633 = vadd.f32 0.0, %v632
      %v634 = vpop.f32.mrb[0].mxu0
      %635 = vdwg.mxu0
      %v636 = vadd.f32 %v516, %v613
      %v637 = vadd.f32 %v517, %v618
      %v638 = vadd.f32 %v518, %v623
      %v639 = vadd.f32 %v519, %v628
      %v640 = vadd.f32 %v520, %v633
      %v641 = vld [vmem:[%s165 + $0x8] sm:$0xff]
      %v642 = vld [vmem:[%s165 + $0x10] sm:$0xff]
      %v643 = vld [vmem:[%s165 + $0x18] sm:$0xff]
      %v644 = vld [vmem:[%s165 + $0x20] sm:$0xff]
      %v645 = vld [vmem:[%s165 + $0x28] sm:$0x1]
      %s646 = scalar_lea.vmem %s1, 128
      %v647 = vld [vmem:[%s646] sm:$0xff]
      %v648 = vld [vmem:[%s646 + $0x8] sm:$0xff]
      %v649 = vld [vmem:[%s646 + $0x10] sm:$0xff]
      %v650 = vld [vmem:[%s646 + $0x18] sm:$0xff]
      %v652 = vsel %vm190, %v641, 0
      %v655 = vsel %vm190, %v642, 0
      %v658 = vsel %vm190, %v643, 0
      %v661 = vsel %vm190, %v644, 0
      %v664 = vsel %vm190, %v645, 0
      %666 = vmatprep.subr.mxu0 0.0
      %667 = vmatpush1.msra.mxu0 %v647
      %668 = vmatprep.subr.mxu0 0.0
      %669 = vmatpush1.msra.mxu0 %v648
      %670 = vmatprep.subr.mxu0 0.0
      %671 = vmatpush1.msra.mxu0 %v649
      %672 = vmatprep.subr.mxu0 0.0
      %673 = vmatpush1.msra.mxu0 %v650
      %674 = vmatprep.subr.mxu0 0.0
      %675 = vmatpush1.msra.mxu0 0.0
      %676 = vmatprep.subr.mxu0 0.0
      %677 = vmatpush1.msra.mxu0 0.0
      %678 = vmatprep.subr.mxu0 0.0
      %679 = vmatpush1.msra.mxu0 0.0
      %680 = vmatprep.subr.mxu0 0.0
      %681 = vmatpush1.msra.mxu0 0.0
      %682 = vmatprep.subr.mxu0 0.0
      %683 = vmatpush1.msra.mxu0 0.0
      %684 = vmatprep.subr.mxu0 0.0
      %685 = vmatpush1.msra.mxu0 0.0
      %686 = vmatprep.subr.mxu0 0.0
      %687 = vmatpush1.msra.mxu0 0.0
      %688 = vmatprep.subr.mxu0 0.0
      %689 = vmatpush1.msra.mxu0 0.0
      %690 = vmatprep.subr.mxu0 0.0
      %691 = vmatpush1.msra.mxu0 0.0
      %692 = vmatprep.subr.mxu0 0.0
      %693 = vmatpush1.msra.mxu0 0.0
      %694 = vmatprep.subr.mxu0 0.0
      %695 = vmatpush1.msra.mxu0 0.0
      %696 = vmatprep.subr.mxu0 0.0
      %697 = vmatpush1.msra.mxu0 0.0
      %698 = vmatprep.subr.mxu0 0.0
      %699 = vmatpush1.msra.mxu0 0.0
      %700 = vmatprep.subr.mxu0 0.0
      %701 = vmatpush1.msra.mxu0 0.0
      %702 = vmatprep.subr.mxu0 0.0
      %703 = vmatpush1.msra.mxu0 0.0
      %704 = vmatprep.subr.mxu0 0.0
      %705 = vmatpush1.msra.mxu0 0.0
      %706 = vmatprep.subr.mxu0 0.0
      %707 = vmatpush1.msra.mxu0 0.0
      %708 = vmatprep.subr.mxu0 0.0
      %709 = vmatpush1.msra.mxu0 0.0
      %710 = vmatprep.subr.mxu0 0.0
      %711 = vmatpush1.msra.mxu0 0.0
      %712 = vmatprep.subr.mxu0 0.0
      %713 = vmatpush1.msra.mxu0 0.0
      %714 = vmatprep.subr.mxu0 0.0
      %715 = vmatpush1.msra.mxu0 0.0
      %716 = vmatprep.subr.mxu0 0.0
      %717 = vmatpush1.msra.mxu0 0.0
      %718 = vmatprep.subr.mxu0 0.0
      %719 = vmatpush1.msra.mxu0 0.0
      %720 = vmatprep.subr.mxu0 0.0
      %721 = vmatpush1.msra.mxu0 0.0
      %722 = vmatprep.subr.mxu0 0.0
      %723 = vmatpush1.msra.mxu0 0.0
      %724 = vmatprep.subr.mxu0 0.0
      %725 = vmatpush1.msra.mxu0 0.0
      %726 = vmatprep.subr.mxu0 0.0
      %727 = vmatpush1.msra.mxu0 0.0
      %728 = vmatprep.subr.mxu0 0.0
      %729 = vmatpush1.msra.mxu0 0.0
      %730 = vmatprep.mubr.f32.mxu0 0.0
      %731 = vmatmul.mubr.f32.gmra.mrb[0].mxu0 %v652
      %v732 = vpop.f32.mrb[0].mxu0
      %v733 = vadd.f32 0.0, %v732
      %v734 = vpop.f32.mrb[0].mxu0
      %735 = vmatprep.mubr.f32.mxu0 0.0
      %736 = vmatmul.mubr.f32.gmra.mrb[0].mxu0 %v655
      %v737 = vpop.f32.mrb[0].mxu0
      %v738 = vadd.f32 0.0, %v737
      %v739 = vpop.f32.mrb[0].mxu0
      %740 = vmatprep.mubr.f32.mxu0 0.0
      %741 = vmatmul.mubr.f32.gmra.mrb[0].mxu0 %v658
      %v742 = vpop.f32.mrb[0].mxu0
      %v743 = vadd.f32 0.0, %v742
      %v744 = vpop.f32.mrb[0].mxu0
      %745 = vmatprep.mubr.f32.mxu0 0.0
      %746 = vmatmul.mubr.f32.gmra.mrb[0].mxu0 %v661
      %v747 = vpop.f32.mrb[0].mxu0
      %v748 = vadd.f32 0.0, %v747
      %v749 = vpop.f32.mrb[0].mxu0
      %750 = vmatprep.mubr.f32.mxu0 0.0
      %751 = vmatmul.mubr.f32.gmra.mrb[0].mxu0 %v664
      %v752 = vpop.f32.mrb[0].mxu0
      %v753 = vadd.f32 0.0, %v752
      %v754 = vpop.f32.mrb[0].mxu0
      %755 = vdwg.mxu0
      %v756 = vadd.f32 %v636, %v733
      %v757 = vadd.f32 %v637, %v738
      %v758 = vadd.f32 %v638, %v743
      %v759 = vadd.f32 %v639, %v748
      %v760 = vadd.f32 %v640, %v753
      %v761 = vld [vmem:[%s165 + $0x9] sm:$0xff]
      %v762 = vld [vmem:[%s165 + $0x11] sm:$0xff]
      %v763 = vld [vmem:[%s165 + $0x19] sm:$0xff]
      %v764 = vld [vmem:[%s165 + $0x21] sm:$0xff]
      %v765 = vld [vmem:[%s165 + $0x29] sm:$0x1]
      %s766 = scalar_lea.vmem %s1, 160
      %v767 = vld [vmem:[%s766] sm:$0xff]
      %v768 = vld [vmem:[%s766 + $0x8] sm:$0xff]
      %v769 = vld [vmem:[%s766 + $0x10] sm:$0xff]
      %v770 = vld [vmem:[%s766 + $0x18] sm:$0xff]
      %v772 = vsel %vm190, %v761, 0
      %v775 = vsel %vm190, %v762, 0
      %v778 = vsel %vm190, %v763, 0
      %v781 = vsel %vm190, %v764, 0
      %v784 = vsel %vm190, %v765, 0
      %786 = vmatprep.subr.mxu0 0.0
      %787 = vmatpush1.msra.mxu0 %v767
      %788 = vmatprep.subr.mxu0 0.0
      %789 = vmatpush1.msra.mxu0 %v768
      %790 = vmatprep.subr.mxu0 0.0
      %791 = vmatpush1.msra.mxu0 %v769
      %792 = vmatprep.subr.mxu0 0.0
      %793 = vmatpush1.msra.mxu0 %v770
      %794 = vmatprep.subr.mxu0 0.0
      %795 = vmatpush1.msra.mxu0 0.0
      %796 = vmatprep.subr.mxu0 0.0
      %797 = vmatpush1.msra.mxu0 0.0
      %798 = vmatprep.subr.mxu0 0.0
      %799 = vmatpush1.msra.mxu0 0.0
      %800 = vmatprep.subr.mxu0 0.0
      %801 = vmatpush1.msra.mxu0 0.0
      %802 = vmatprep.subr.mxu0 0.0
      %803 = vmatpush1.msra.mxu0 0.0
      %804 = vmatprep.subr.mxu0 0.0
      %805 = vmatpush1.msra.mxu0 0.0
      %806 = vmatprep.subr.mxu0 0.0
      %807 = vmatpush1.msra.mxu0 0.0
      %808 = vmatprep.subr.mxu0 0.0
      %809 = vmatpush1.msra.mxu0 0.0
      %810 = vmatprep.subr.mxu0 0.0
      %811 = vmatpush1.msra.mxu0 0.0
      %812 = vmatprep.subr.mxu0 0.0
      %813 = vmatpush1.msra.mxu0 0.0
      %814 = vmatprep.subr.mxu0 0.0
      %815 = vmatpush1.msra.mxu0 0.0
      %816 = vmatprep.subr.mxu0 0.0
      %817 = vmatpush1.msra.mxu0 0.0
      %818 = vmatprep.subr.mxu0 0.0
      %819 = vmatpush1.msra.mxu0 0.0
      %820 = vmatprep.subr.mxu0 0.0
      %821 = vmatpush1.msra.mxu0 0.0
      %822 = vmatprep.subr.mxu0 0.0
      %823 = vmatpush1.msra.mxu0 0.0
      %824 = vmatprep.subr.mxu0 0.0
      %825 = vmatpush1.msra.mxu0 0.0
      %826 = vmatprep.subr.mxu0 0.0
      %827 = vmatpush1.msra.mxu0 0.0
      %828 = vmatprep.subr.mxu0 0.0
      %829 = vmatpush1.msra.mxu0 0.0
      %830 = vmatprep.subr.mxu0 0.0
      %831 = vmatpush1.msra.mxu0 0.0
      %832 = vmatprep.subr.mxu0 0.0
      %833 = vmatpush1.msra.mxu0 0.0
      %834 = vmatprep.subr.mxu0 0.0
      %835 = vmatpush1.msra.mxu0 0.0
      %836 = vmatprep.subr.mxu0 0.0
      %837 = vmatpush1.msra.mxu0 0.0
      %838 = vmatprep.subr.mxu0 0.0
      %839 = vmatpush1.msra.mxu0 0.0
      %840 = vmatprep.subr.mxu0 0.0
      %841 = vmatpush1.msra.mxu0 0.0
      %842 = vmatprep.subr.mxu0 0.0
      %843 = vmatpush1.msra.mxu0 0.0
      %844 = vmatprep.subr.mxu0 0.0
      %845 = vmatpush1.msra.mxu0 0.0
      %846 = vmatprep.subr.mxu0 0.0
      %847 = vmatpush1.msra.mxu0 0.0
      %848 = vmatprep.subr.mxu0 0.0
      %849 = vmatpush1.msra.mxu0 0.0
      %850 = vmatprep.mubr.f32.mxu0 0.0
      %851 = vmatmul.mubr.f32.gmra.mrb[0].mxu0 %v772
      %v852 = vpop.f32.mrb[0].mxu0
      %v853 = vadd.f32 0.0, %v852
      %v854 = vpop.f32.mrb[0].mxu0
      %855 = vmatprep.mubr.f32.mxu0 0.0
      %856 = vmatmul.mubr.f32.gmra.mrb[0].mxu0 %v775
      %v857 = vpop.f32.mrb[0].mxu0
      %v858 = vadd.f32 0.0, %v857
      %v859 = vpop.f32.mrb[0].mxu0
      %860 = vmatprep.mubr.f32.mxu0 0.0
      %861 = vmatmul.mubr.f32.gmra.mrb[0].mxu0 %v778
      %v862 = vpop.f32.mrb[0].mxu0
      %v863 = vadd.f32 0.0, %v862
      %v864 = vpop.f32.mrb[0].mxu0
      %865 = vmatprep.mubr.f32.mxu0 0.0
      %866 = vmatmul.mubr.f32.gmra.mrb[0].mxu0 %v781
      %v867 = vpop.f32.mrb[0].mxu0
      %v868 = vadd.f32 0.0, %v867
      %v869 = vpop.f32.mrb[0].mxu0
      %870 = vmatprep.mubr.f32.mxu0 0.0
      %871 = vmatmul.mubr.f32.gmra.mrb[0].mxu0 %v784
      %v872 = vpop.f32.mrb[0].mxu0
      %v873 = vadd.f32 0.0, %v872
      %v874 = vpop.f32.mrb[0].mxu0
      %875 = vdwg.mxu0
      %v876 = vadd.f32 %v756, %v853
      %v877 = vadd.f32 %v757, %v858
      %v878 = vadd.f32 %v758, %v863
      %v879 = vadd.f32 %v759, %v868
      %v880 = vadd.f32 %v760, %v873
      %v881 = vld [vmem:[%s165 + $0xe] sm:$0xff]
      %v882 = vld [vmem:[%s165 + $0x16] sm:$0xff]
      %v883 = vld [vmem:[%s165 + $0x1e] sm:$0xff]
      %v884 = vld [vmem:[%s165 + $0x26] sm:$0xff]
      %v885 = vld [vmem:[%s165 + $0x2e] sm:$0x1]
      %s886 = scalar_lea.vmem %s1, 192
      %v887 = vld [vmem:[%s886] sm:$0xff]
      %v888 = vld [vmem:[%s886 + $0x8] sm:$0xff]
      %v889 = vld [vmem:[%s886 + $0x10] sm:$0xff]
      %v890 = vld [vmem:[%s886 + $0x18] sm:$0xff]
      %v892 = vsel %vm190, %v881, 0
      %v895 = vsel %vm190, %v882, 0
      %v898 = vsel %vm190, %v883, 0
      %v901 = vsel %vm190, %v884, 0
      %v904 = vsel %vm190, %v885, 0
      %906 = vmatprep.subr.mxu0 0.0
      %907 = vmatpush1.msra.mxu0 %v887
      %908 = vmatprep.subr.mxu0 0.0
      %909 = vmatpush1.msra.mxu0 %v888
      %910 = vmatprep.subr.mxu0 0.0
      %911 = vmatpush1.msra.mxu0 %v889
      %912 = vmatprep.subr.mxu0 0.0
      %913 = vmatpush1.msra.mxu0 %v890
      %914 = vmatprep.subr.mxu0 0.0
      %915 = vmatpush1.msra.mxu0 0.0
      %916 = vmatprep.subr.mxu0 0.0
      %917 = vmatpush1.msra.mxu0 0.0
      %918 = vmatprep.subr.mxu0 0.0
      %919 = vmatpush1.msra.mxu0 0.0
      %920 = vmatprep.subr.mxu0 0.0
      %921 = vmatpush1.msra.mxu0 0.0
      %922 = vmatprep.subr.mxu0 0.0
      %923 = vmatpush1.msra.mxu0 0.0
      %924 = vmatprep.subr.mxu0 0.0
      %925 = vmatpush1.msra.mxu0 0.0
      %926 = vmatprep.subr.mxu0 0.0
      %927 = vmatpush1.msra.mxu0 0.0
      %928 = vmatprep.subr.mxu0 0.0
      %929 = vmatpush1.msra.mxu0 0.0
      %930 = vmatprep.subr.mxu0 0.0
      %931 = vmatpush1.msra.mxu0 0.0
      %932 = vmatprep.subr.mxu0 0.0
      %933 = vmatpush1.msra.mxu0 0.0
      %934 = vmatprep.subr.mxu0 0.0
      %935 = vmatpush1.msra.mxu0 0.0
      %936 = vmatprep.subr.mxu0 0.0
      %937 = vmatpush1.msra.mxu0 0.0
      %938 = vmatprep.subr.mxu0 0.0
      %939 = vmatpush1.msra.mxu0 0.0
      %940 = vmatprep.subr.mxu0 0.0
      %941 = vmatpush1.msra.mxu0 0.0
      %942 = vmatprep.subr.mxu0 0.0
      %943 = vmatpush1.msra.mxu0 0.0
      %944 = vmatprep.subr.mxu0 0.0
      %945 = vmatpush1.msra.mxu0 0.0
      %946 = vmatprep.subr.mxu0 0.0
      %947 = vmatpush1.msra.mxu0 0.0
      %948 = vmatprep.subr.mxu0 0.0
      %949 = vmatpush1.msra.mxu0 0.0
      %950 = vmatprep.subr.mxu0 0.0
      %951 = vmatpush1.msra.mxu0 0.0
      %952 = vmatprep.subr.mxu0 0.0
      %953 = vmatpush1.msra.mxu0 0.0
      %954 = vmatprep.subr.mxu0 0.0
      %955 = vmatpush1.msra.mxu0 0.0
      %956 = vmatprep.subr.mxu0 0.0
      %957 = vmatpush1.msra.mxu0 0.0
      %958 = vmatprep.subr.mxu0 0.0
      %959 = vmatpush1.msra.mxu0 0.0
      %960 = vmatprep.subr.mxu0 0.0
      %961 = vmatpush1.msra.mxu0 0.0
      %962 = vmatprep.subr.mxu0 0.0
      %963 = vmatpush1.msra.mxu0 0.0
      %964 = vmatprep.subr.mxu0 0.0
      %965 = vmatpush1.msra.mxu0 0.0
      %966 = vmatprep.subr.mxu0 0.0
      %967 = vmatpush1.msra.mxu0 0.0
      %968 = vmatprep.subr.mxu0 0.0
      %969 = vmatpush1.msra.mxu0 0.0
      %970 = vmatprep.mubr.f32.mxu0 0.0
      %971 = vmatmul.mubr.f32.gmra.mrb[0].mxu0 %v892
      %v972 = vpop.f32.mrb[0].mxu0
      %v973 = vadd.f32 0.0, %v972
      %v974 = vpop.f32.mrb[0].mxu0
      %975 = vmatprep.mubr.f32.mxu0 0.0
      %976 = vmatmul.mubr.f32.gmra.mrb[0].mxu0 %v895
      %v977 = vpop.f32.mrb[0].mxu0
      %v978 = vadd.f32 0.0, %v977
      %v979 = vpop.f32.mrb[0].mxu0
      %980 = vmatprep.mubr.f32.mxu0 0.0
      %981 = vmatmul.mubr.f32.gmra.mrb[0].mxu0 %v898
      %v982 = vpop.f32.mrb[0].mxu0
      %v983 = vadd.f32 0.0, %v982
      %v984 = vpop.f32.mrb[0].mxu0
      %985 = vmatprep.mubr.f32.mxu0 0.0
      %986 = vmatmul.mubr.f32.gmra.mrb[0].mxu0 %v901
      %v987 = vpop.f32.mrb[0].mxu0
      %v988 = vadd.f32 0.0, %v987
      %v989 = vpop.f32.mrb[0].mxu0
      %990 = vmatprep.mubr.f32.mxu0 0.0
      %991 = vmatmul.mubr.f32.gmra.mrb[0].mxu0 %v904
      %v992 = vpop.f32.mrb[0].mxu0
      %v993 = vadd.f32 0.0, %v992
      %v994 = vpop.f32.mrb[0].mxu0
      %995 = vdwg.mxu0
      %v996 = vadd.f32 %v876, %v973
      %v997 = vadd.f32 %v877, %v978
      %v998 = vadd.f32 %v878, %v983
      %v999 = vadd.f32 %v879, %v988
      %v1000 = vadd.f32 %v880, %v993
      %v1001 = vld [vmem:[%s165 + $0xf] sm:$0xff]
      %v1002 = vld [vmem:[%s165 + $0x17] sm:$0xff]
      %v1003 = vld [vmem:[%s165 + $0x1f] sm:$0xff]
      %v1004 = vld [vmem:[%s165 + $0x27] sm:$0xff]
      %v1005 = vld [vmem:[%s165 + $0x2f] sm:$0x1]
      %s1006 = scalar_lea.vmem %s1, 224
      %v1007 = vld [vmem:[%s1006] sm:$0xff]
      %v1008 = vld [vmem:[%s1006 + $0x8] sm:$0xff]
      %v1009 = vld [vmem:[%s1006 + $0x10] sm:$0xff]
      %v1010 = vld [vmem:[%s1006 + $0x18] sm:$0xff]
      %v1012 = vsel %vm190, %v1001, 0
      %v1015 = vsel %vm190, %v1002, 0
      %v1018 = vsel %vm190, %v1003, 0
      %v1021 = vsel %vm190, %v1004, 0
      %v1024 = vsel %vm190, %v1005, 0
      %1026 = vmatprep.subr.mxu0 0.0
      %1027 = vmatpush1.msra.mxu0 %v1007
      %1028 = vmatprep.subr.mxu0 0.0
      %1029 = vmatpush1.msra.mxu0 %v1008
      %1030 = vmatprep.subr.mxu0 0.0
      %1031 = vmatpush1.msra.mxu0 %v1009
      %1032 = vmatprep.subr.mxu0 0.0
      %1033 = vmatpush1.msra.mxu0 %v1010
      %1034 = vmatprep.subr.mxu0 0.0
      %1035 = vmatpush1.msra.mxu0 0.0
      %1036 = vmatprep.subr.mxu0 0.0
      %1037 = vmatpush1.msra.mxu0 0.0
      %1038 = vmatprep.subr.mxu0 0.0
      %1039 = vmatpush1.msra.mxu0 0.0
      %1040 = vmatprep.subr.mxu0 0.0
      %1041 = vmatpush1.msra.mxu0 0.0
      %1042 = vmatprep.subr.mxu0 0.0
      %1043 = vmatpush1.msra.mxu0 0.0
      %1044 = vmatprep.subr.mxu0 0.0
      %1045 = vmatpush1.msra.mxu0 0.0
      %1046 = vmatprep.subr.mxu0 0.0
      %1047 = vmatpush1.msra.mxu0 0.0
      %1048 = vmatprep.subr.mxu0 0.0
      %1049 = vmatpush1.msra.mxu0 0.0
      %1050 = vmatprep.subr.mxu0 0.0
      %1051 = vmatpush1.msra.mxu0 0.0
      %1052 = vmatprep.subr.mxu0 0.0
      %1053 = vmatpush1.msra.mxu0 0.0
      %1054 = vmatprep.subr.mxu0 0.0
      %1055 = vmatpush1.msra.mxu0 0.0
      %1056 = vmatprep.subr.mxu0 0.0
      %1057 = vmatpush1.msra.mxu0 0.0
      %1058 = vmatprep.subr.mxu0 0.0
      %1059 = vmatpush1.msra.mxu0 0.0
      %1060 = vmatprep.subr.mxu0 0.0
      %1061 = vmatpush1.msra.mxu0 0.0
      %1062 = vmatprep.subr.mxu0 0.0
      %1063 = vmatpush1.msra.mxu0 0.0
      %1064 = vmatprep.subr.mxu0 0.0
      %1065 = vmatpush1.msra.mxu0 0.0
      %1066 = vmatprep.subr.mxu0 0.0
      %1067 = vmatpush1.msra.mxu0 0.0
      %1068 = vmatprep.subr.mxu0 0.0
      %1069 = vmatpush1.msra.mxu0 0.0
      %1070 = vmatprep.subr.mxu0 0.0
      %1071 = vmatpush1.msra.mxu0 0.0
      %1072 = vmatprep.subr.mxu0 0.0
      %1073 = vmatpush1.msra.mxu0 0.0
      %1074 = vmatprep.subr.mxu0 0.0
      %1075 = vmatpush1.msra.mxu0 0.0
      %1076 = vmatprep.subr.mxu0 0.0
      %1077 = vmatpush1.msra.mxu0 0.0
      %1078 = vmatprep.subr.mxu0 0.0
      %1079 = vmatpush1.msra.mxu0 0.0
      %1080 = vmatprep.subr.mxu0 0.0
      %1081 = vmatpush1.msra.mxu0 0.0
      %1082 = vmatprep.subr.mxu0 0.0
      %1083 = vmatpush1.msra.mxu0 0.0
      %1084 = vmatprep.subr.mxu0 0.0
      %1085 = vmatpush1.msra.mxu0 0.0
      %1086 = vmatprep.subr.mxu0 0.0
      %1087 = vmatpush1.msra.mxu0 0.0
      %1088 = vmatprep.subr.mxu0 0.0
      %1089 = vmatpush1.msra.mxu0 0.0
      %1090 = vmatprep.mubr.f32.mxu0 0.0
      %1091 = vmatmul.mubr.f32.gmra.mrb[0].mxu0 %v1012
      %v1092 = vpop.f32.mrb[0].mxu0
      %v1093 = vadd.f32 0.0, %v1092
      %v1094 = vpop.f32.mrb[0].mxu0
      %1095 = vmatprep.mubr.f32.mxu0 0.0
      %1096 = vmatmul.mubr.f32.gmra.mrb[0].mxu0 %v1015
      %v1097 = vpop.f32.mrb[0].mxu0
      %v1098 = vadd.f32 0.0, %v1097
      %v1099 = vpop.f32.mrb[0].mxu0
      %1100 = vmatprep.mubr.f32.mxu0 0.0
      %1101 = vmatmul.mubr.f32.gmra.mrb[0].mxu0 %v1018
      %v1102 = vpop.f32.mrb[0].mxu0
      %v1103 = vadd.f32 0.0, %v1102
      %v1104 = vpop.f32.mrb[0].mxu0
      %1105 = vmatprep.mubr.f32.mxu0 0.0
      %1106 = vmatmul.mubr.f32.gmra.mrb[0].mxu0 %v1021
      %v1107 = vpop.f32.mrb[0].mxu0
      %v1108 = vadd.f32 0.0, %v1107
      %v1109 = vpop.f32.mrb[0].mxu0
      %1110 = vmatprep.mubr.f32.mxu0 0.0
      %1111 = vmatmul.mubr.f32.gmra.mrb[0].mxu0 %v1024
      %v1112 = vpop.f32.mrb[0].mxu0
      %v1113 = vadd.f32 0.0, %v1112
      %v1114 = vpop.f32.mrb[0].mxu0
      %1115 = vdwg.mxu0
      %v1116 = vadd.f32 %v996, %v1093
      %v1117 = vadd.f32 %v997, %v1098
      %v1118 = vadd.f32 %v998, %v1103
      %v1119 = vadd.f32 %v999, %v1108
      %v1120 = vadd.f32 %v1000, %v1113
      %v1121 = vld [vmem:[%s165 + $0x10] sm:$0xff]
      %v1122 = vld [vmem:[%s165 + $0x18] sm:$0xff]
      %v1123 = vld [vmem:[%s165 + $0x20] sm:$0xff]
      %v1124 = vld [vmem:[%s165 + $0x28] sm:$0xff]
      %v1125 = vld [vmem:[%s165 + $0x30] sm:$0x1]
      %s1126 = scalar_lea.vmem %s1, 256
      %v1127 = vld [vmem:[%s1126] sm:$0xff]
      %v1128 = vld [vmem:[%s1126 + $0x8] sm:$0xff]
      %v1129 = vld [vmem:[%s1126 + $0x10] sm:$0xff]
      %v1130 = vld [vmem:[%s1126 + $0x18] sm:$0xff]
      %v1132 = vsel %vm190, %v1121, 0
      %v1135 = vsel %vm190, %v1122, 0
      %v1138 = vsel %vm190, %v1123, 0
      %v1141 = vsel %vm190, %v1124, 0
      %v1144 = vsel %vm190, %v1125, 0
      %1146 = vmatprep.subr.mxu0 0.0
      %1147 = vmatpush1.msra.mxu0 %v1127
      %1148 = vmatprep.subr.mxu0 0.0
      %1149 = vmatpush1.msra.mxu0 %v1128
      %1150 = vmatprep.subr.mxu0 0.0
      %1151 = vmatpush1.msra.mxu0 %v1129
      %1152 = vmatprep.subr.mxu0 0.0
      %1153 = vmatpush1.msra.mxu0 %v1130
      %1154 = vmatprep.subr.mxu0 0.0
      %1155 = vmatpush1.msra.mxu0 0.0
      %1156 = vmatprep.subr.mxu0 0.0
      %1157 = vmatpush1.msra.mxu0 0.0
      %1158 = vmatprep.subr.mxu0 0.0
      %1159 = vmatpush1.msra.mxu0 0.0
      %1160 = vmatprep.subr.mxu0 0.0
      %1161 = vmatpush1.msra.mxu0 0.0
      %1162 = vmatprep.subr.mxu0 0.0
      %1163 = vmatpush1.msra.mxu0 0.0
      %1164 = vmatprep.subr.mxu0 0.0
      %1165 = vmatpush1.msra.mxu0 0.0
      %1166 = vmatprep.subr.mxu0 0.0
      %1167 = vmatpush1.msra.mxu0 0.0
      %1168 = vmatprep.subr.mxu0 0.0
      %1169 = vmatpush1.msra.mxu0 0.0
      %1170 = vmatprep.subr.mxu0 0.0
      %1171 = vmatpush1.msra.mxu0 0.0
      %1172 = vmatprep.subr.mxu0 0.0
      %1173 = vmatpush1.msra.mxu0 0.0
      %1174 = vmatprep.subr.mxu0 0.0
      %1175 = vmatpush1.msra.mxu0 0.0
      %1176 = vmatprep.subr.mxu0 0.0
      %1177 = vmatpush1.msra.mxu0 0.0
      %1178 = vmatprep.subr.mxu0 0.0
      %1179 = vmatpush1.msra.mxu0 0.0
      %1180 = vmatprep.subr.mxu0 0.0
      %1181 = vmatpush1.msra.mxu0 0.0
      %1182 = vmatprep.subr.mxu0 0.0
      %1183 = vmatpush1.msra.mxu0 0.0
      %1184 = vmatprep.subr.mxu0 0.0
      %1185 = vmatpush1.msra.mxu0 0.0
      %1186 = vmatprep.subr.mxu0 0.0
      %1187 = vmatpush1.msra.mxu0 0.0
      %1188 = vmatprep.subr.mxu0 0.0
      %1189 = vmatpush1.msra.mxu0 0.0
      %1190 = vmatprep.subr.mxu0 0.0
      %1191 = vmatpush1.msra.mxu0 0.0
      %1192 = vmatprep.subr.mxu0 0.0
      %1193 = vmatpush1.msra.mxu0 0.0
      %1194 = vmatprep.subr.mxu0 0.0
      %1195 = vmatpush1.msra.mxu0 0.0
      %1196 = vmatprep.subr.mxu0 0.0
      %1197 = vmatpush1.msra.mxu0 0.0
      %1198 = vmatprep.subr.mxu0 0.0
      %1199 = vmatpush1.msra.mxu0 0.0
      %1200 = vmatprep.subr.mxu0 0.0
      %1201 = vmatpush1.msra.mxu0 0.0
      %1202 = vmatprep.subr.mxu0 0.0
      %1203 = vmatpush1.msra.mxu0 0.0
      %1204 = vmatprep.subr.mxu0 0.0
      %1205 = vmatpush1.msra.mxu0 0.0
      %1206 = vmatprep.subr.mxu0 0.0
      %1207 = vmatpush1.msra.mxu0 0.0
      %1208 = vmatprep.subr.mxu0 0.0
      %1209 = vmatpush1.msra.mxu0 0.0
      %1210 = vmatprep.mubr.f32.mxu0 0.0
      %1211 = vmatmul.mubr.f32.gmra.mrb[0].mxu0 %v1132
      %v1212 = vpop.f32.mrb[0].mxu0
      %v1213 = vadd.f32 0.0, %v1212
      %v1214 = vpop.f32.mrb[0].mxu0
      %1215 = vmatprep.mubr.f32.mxu0 0.0
      %1216 = vmatmul.mubr.f32.gmra.mrb[0].mxu0 %v1135
      %v1217 = vpop.f32.mrb[0].mxu0
      %v1218 = vadd.f32 0.0, %v1217
      %v1219 = vpop.f32.mrb[0].mxu0
      %1220 = vmatprep.mubr.f32.mxu0 0.0
      %1221 = vmatmul.mubr.f32.gmra.mrb[0].mxu0 %v1138
      %v1222 = vpop.f32.mrb[0].mxu0
      %v1223 = vadd.f32 0.0, %v1222
      %v1224 = vpop.f32.mrb[0].mxu0
      %1225 = vmatprep.mubr.f32.mxu0 0.0
      %1226 = vmatmul.mubr.f32.gmra.mrb[0].mxu0 %v1141
      %v1227 = vpop.f32.mrb[0].mxu0
      %v1228 = vadd.f32 0.0, %v1227
      %v1229 = vpop.f32.mrb[0].mxu0
      %1230 = vmatprep.mubr.f32.mxu0 0.0
      %1231 = vmatmul.mubr.f32.gmra.mrb[0].mxu0 %v1144
      %v1232 = vpop.f32.mrb[0].mxu0
      %v1233 = vadd.f32 0.0, %v1232
      %v1234 = vpop.f32.mrb[0].mxu0
      %1235 = vdwg.mxu0
      %v1236 = vadd.f32 %v1116, %v1213
      %v1237 = vadd.f32 %v1117, %v1218
      %v1238 = vadd.f32 %v1118, %v1223
      %v1239 = vadd.f32 %v1119, %v1228
      %v1240 = vadd.f32 %v1120, %v1233
      %v1241 = vld [vmem:[%s2] sm:$0x1]
      %v1243 = vlaneseq
      %v1244 = vshrl.u32 %v1243, 7
      %v1245 = vsub.s32 0, %v1244
      %v1246 = vrot.slane %v1241, %v1245
      %v1248 = vadd.f32 %v1236, %v1246
      %v1249 = vadd.f32 %v1237, %v1246
      %v1250 = vadd.f32 %v1238, %v1246
      %v1251 = vadd.f32 %v1239, %v1246
      %v1252 = vadd.f32 %v1240, %v1246
      %v1253 = vmax.f32 %v1248, 0.0
      %v1254 = vmax.f32 %v1249, 0.0
      %v1255 = vmax.f32 %v1250, 0.0
      %v1256 = vmax.f32 %v1251, 0.0
      %v1257 = vmax.f32 %v1252, 0.0
      %1258 = vst.msk [vmem:[%s170] sm:$0xff] %vm190, 0.0
      %1259 = vst.msk [vmem:[%s170 + $0x8] sm:$0xff] %vm190, 0.0
      %1260 = vst.msk [vmem:[%s170 + $0x10] sm:$0xff] %vm190, 0.0
      %1261 = vst.msk [vmem:[%s170 + $0x18] sm:$0xff] %vm190, 0.0
      %1262 = vst.msk [vmem:[%s170 + $0x20] sm:$0xff] %vm190, 0.0
      %1263 = vst.msk [vmem:[%s170 + $0x28] sm:$0xff] %vm190, 0.0
      %1264 = vst.msk [vmem:[%s170] sm:$0xff] %vm190, %v1253
      %1265 = vst.msk [vmem:[%s170 + $0x8] sm:$0xff] %vm190, %v1254
      %1266 = vst.msk [vmem:[%s170 + $0x10] sm:$0xff] %vm190, %v1255
      %1267 = vst.msk [vmem:[%s170 + $0x18] sm:$0xff] %vm190, %v1256
      %vm1268 = vcmask 253952
      %1269 = vst.msk [vmem:[%s170 + $0x20] sm:$0x1] %vm1268, %v1257
      %p1270 = scmp.lt.s32.totalorder %s14, 1
      %s1271 = scalar_select %p1270, %s14, 1
      %s1272 = smul.addr %s1271, 6
      %s1273 = smul.addr %s1272, 8
      %s1274 = scalar_lea.vmem %s3, %s1273
      // Predicated region
      $region33: #{forward.4} parent=31 // pred_check
        %p1275 = pneg %p100
      $region34: #{forward.4} parent=31 // pred_check_branch
        %1277 = sbr.rel (%p1275) target = $region36
      $region35: #{forward.4} parent=31 // pred_region
        _
      $region36: #{forward.4} parent=31 // pred_fallthru
        _
    $region32: #{forward.4} parent=5 // pred_fallthru
      _
    %p1278 = scmp.le.s32.totalorder 2, %s9
    // Predicated region
    $region37: #{forward.4} parent=5 // pred_check
      %p1279 = pneg %p1278
    $region38: #{forward.4} parent=5 // pred_check_branch
      %1281 = sbr.rel (%p1279) target = $region40
    $region39: #{forward.4} parent=5 // pred_region
      %s1282 = ssub.s32 %s9, 2
      // Predicated region
      $region41: #{forward.4} parent=39 // pred_check
        %p1283 = pneg %p106
      $region42: #{forward.4} parent=39 // pred_check_branch
        %1285 = sbr.rel (%p1283) target = $region44
      $region43: #{forward.4} parent=39 // pred_region
        %p1286 = scmp.lt.s32.totalorder %s15, 1
        %s1287 = scalar_select %p1286, %s15, 1
        %s1288 = smul.addr %s1287, 6
        %s1289 = smul.addr %s1288, 8
        %s1290 = scalar_lea.vmem %s3, %s1289
      $region44: #{forward.4} parent=39 // pred_fallthru
        _
    $region40: #{forward.4} parent=5 // pred_fallthru
      _
  $region6: #{forward.4} parent=0 // loop_footer
    %s13 = sadd.s32 1, %s9
  $region7: #{forward.4} parent=0 // loop_footer_branch
    %8 = sbr.rel target = $region3
  $region8: #{forward.4} parent=0 // loop_exit
    _

</llo_original>
